<compile_context>
chip_gen: v5e
topology: v5e:2x2
jax: 0.10.0
libtpu: 0.0.40
codegen_flags: <defaults>
</compile_context>

<pallas_src>
import jax
import jax.numpy as jnp
from jax import lax
from jax.experimental import pallas as pl
from jax.experimental.pallas import tpu as pltpu

EPS = 1e-5


def _resnet_block_kernel(x_ref, w1_ref, b1_ref, w2_ref, b2_ref, o_ref, pad_ref):
    """One batch element per grid step.

    x_ref:   (1, H, W, C)   input activation (NHWC block)
    w*_ref:  (3, 3*C, C)    conv weights, bf16, kh folded into the K dim
    b*_ref:  (1, C)         conv bias, f32
    o_ref:   (1, H, W, C)   output
    pad_ref: (H+2, W+2, C)  f32 VMEM scratch reused by both convs
    """
    H, W, C = x_ref.shape[1], x_ref.shape[2], x_ref.shape[3]
    HW = H * W

    x = x_ref[0].astype(jnp.float32)                       # (H, W, C)

    def fill_pad(img):
        # ReflectionPad2d(1): interior + 4 mirrored edge strips written
        # directly into the scratch (small stores, no XLU concat shuffles).
        pad_ref[1:H + 1, 1:W + 1, :] = img
        pad_ref[0:1, 1:W + 1, :] = img[1:2, :, :]
        pad_ref[H + 1:H + 2, 1:W + 1, :] = img[H - 2:H - 1, :, :]
        pad_ref[:, 0:1, :] = pad_ref[:, 2:3, :]
        pad_ref[:, W + 1:W + 2, :] = pad_ref[:, W - 1:W, :]

    def conv3x3(img, w_ref, b_ref):
        # 3x3 conv as 3 MXU matmuls: for each kw shift, the three kh-shifted
        # patches are concatenated along the channel (lane) axis so the
        # contraction dim is K = 3*C.  Operands in bf16, accumulate in f32.
        fill_pad(img)
        acc = jnp.zeros((HW, C), jnp.float32)
        for j in range(3):
            lhs = jnp.concatenate(
                [pad_ref[i:i + H, j:j + W, :] for i in range(3)],
                axis=-1).reshape(HW, 3 * C).astype(jnp.bfloat16)
            acc = acc + jnp.dot(lhs, w_ref[j],
                                preferred_element_type=jnp.float32)
        # Bias add hoisted out of the kw loop.
        return acc + b_ref[0].astype(jnp.float32)[None, :]

    def instance_norm(y):
        # nn.InstanceNorm2d defaults: per-(sample, channel) stats over H*W,
        # biased variance, eps=1e-5, no affine.  Fused normalize pass.
        mean = jnp.mean(y, axis=0, keepdims=True)           # (1, C)
        d = y - mean
        var = jnp.mean(d * d, axis=0, keepdims=True)        # (1, C)
        return d * lax.rsqrt(var + EPS)

    h = conv3x3(x, w1_ref, b1_ref)                          # (HW, C) f32
    h = instance_norm(h)
    h = jnp.maximum(h, 0.0)                                 # ReLU
    h = conv3x3(h.reshape(H, W, C), w2_ref, b2_ref)
    h = instance_norm(h)
    o_ref[0] = (x + h.reshape(H, W, C)).astype(o_ref.dtype)


def _prep_weight(w_hwio):
    """(3, 3, Cin, Cout) HWIO -> (kw, 3*Cin, Cout) bf16, kh folded into K."""
    kh, kw, cin, cout = w_hwio.shape
    return jnp.transpose(w_hwio, (1, 0, 2, 3)).reshape(
        kw, kh * cin, cout).astype(jnp.bfloat16)


@jax.jit
def resnet_block_nhwc(x, w1, b1, w2, b2):
    """NHWC-native entry point.  x: (B, H, W, C); w*: (3, 3, C, C) HWIO."""
    B, H, W, C = x.shape
    w1r, w2r = _prep_weight(w1), _prep_weight(w2)
    b1_2d = b1.reshape(1, C).astype(jnp.float32)
    b2_2d = b2.reshape(1, C).astype(jnp.float32)

    full3 = lambda b: (0, 0, 0)
    full2 = lambda b: (0, 0)

    return pl.pallas_call(
        _resnet_block_kernel,
        out_shape=jax.ShapeDtypeStruct((B, H, W, C), x.dtype),
        grid_spec=pltpu.PrefetchScalarGridSpec(
            num_scalar_prefetch=0,
            grid=(B,),
            in_specs=[
                pl.BlockSpec((1, H, W, C), lambda b: (b, 0, 0, 0)),   # x
                pl.BlockSpec((3, 3 * C, C), full3),                   # w1
                pl.BlockSpec((1, C), full2),                          # b1
                pl.BlockSpec((3, 3 * C, C), full3),                   # w2
                pl.BlockSpec((1, C), full2),                          # b2
            ],
            out_specs=pl.BlockSpec((1, H, W, C), lambda b: (b, 0, 0, 0)),
            scratch_shapes=[pltpu.VMEM((H + 2, W + 2, C), jnp.float32)],
        ),
        compiler_params=pltpu.CompilerParams(
            dimension_semantics=("parallel",),
            vmem_limit_bytes=32 * 1024 * 1024),
    )(x, w1r, b1_2d, w2r, b2_2d)


@jax.jit
def resnet_block(x_nchw, w1, b1, w2, b2):
    """PyTorch-style NCHW adapter.  Prefer resnet_block_nhwc inside an NHWC
    model to avoid these two full-HBM transpose passes."""
    x = jnp.transpose(x_nchw, (0, 2, 3, 1))
    out = resnet_block_nhwc(x, w1, b1, w2, b2)
    return jnp.transpose(out, (0, 3, 1, 2))


# ---------------- pure-JAX references (for verification) ----------------
def _ref_conv3x3(y_nchw, w_hwio, bias, mxu_dtype):
    p = jnp.pad(y_nchw, ((0, 0), (0, 0), (1, 1), (1, 1)), mode="reflect")
    out = lax.conv_general_dilated(
        p.astype(mxu_dtype), w_hwio.astype(mxu_dtype),
        window_strides=(1, 1), padding="VALID",
        dimension_numbers=("NCHW", "HWIO", "NCHW"),
        preferred_element_type=jnp.float32)
    return out + bias.reshape(1, -1, 1, 1)


def _ref_instance_norm(y_nchw):
    m = jnp.mean(y_nchw, axis=(2, 3), keepdims=True)
    v = jnp.var(y_nchw, axis=(2, 3), keepdims=True)   # biased, like PyTorch IN
    return (y_nchw - m) / jnp.sqrt(v + EPS)


def _ref_block(x, w1, b1, w2, b2, mxu_dtype=jnp.float32):
    h = _ref_instance_norm(_ref_conv3x3(x, w1, b1, mxu_dtype))
    h = jnp.maximum(h, 0.0)
    h = _ref_instance_norm(_ref_conv3x3(h, w2, b2, mxu_dtype))
    return x + h


if __name__ == "__main__":
    B, C, H, W = 2, 8, 16, 16
    key = jax.random.PRNGKey(0)
    kx, kw1, kb1, kw2, kb2 = jax.random.split(key, 5)

    x = jax.random.normal(kx, (B, C, H, W), jnp.float32)
    # Conv2d(dim, dim, 3, bias=use_bias) with use_bias=True; weights in HWIO
    # (pass zero biases to model use_bias=False).
    w1 = jax.random.normal(kw1, (3, 3, C, C), jnp.float32) * 0.1
    b1 = jax.random.normal(kb1, (C,), jnp.float32) * 0.05
    w2 = jax.random.normal(kw2, (3, 3, C, C), jnp.float32) * 0.1
    b2 = jax.random.normal(kb2, (C,), jnp.float32) * 0.05

    out = jax.block_until_ready(resnet_block(x, w1, b1, w2, b2))
    assert out.shape == (B, C, H, W)

    # Tight check vs a reference that also rounds the conv operands to bf16
    # (same structure: reflect pad, conv, instance norm, relu, residual).
    ref_bf16 = _ref_block(x, w1, b1, w2, b2, mxu_dtype=jnp.bfloat16)
    err_bf16 = float(jnp.max(jnp.abs(out - ref_bf16)))
    assert err_bf16 < 2e-2, err_bf16

    # Loose sanity check vs the full-f32 reference (kernel uses bf16 MXU
    # operands with f32 accumulation, so the tolerance is relaxed).
    ref_f32 = _ref_block(x, w1, b1, w2, b2, mxu_dtype=jnp.float32)
    err_f32 = float(jnp.max(jnp.abs(out - ref_f32)))
    assert err_f32 < 2e-1, err_f32

    print("KERNEL_OK")
</pallas_src>

<mosaic_0001>
module attributes {stable_mosaic.version = 11 : i64} {
  func.func @_resnet_block_kernel(%arg0: i32, %arg1: memref<1x16x16x8xf32, #tpu.memory_space<vmem>>, %arg2: memref<3x24x8xbf16, #tpu.memory_space<vmem>>, %arg3: memref<1x8xf32, #tpu.memory_space<vmem>>, %arg4: memref<3x24x8xbf16, #tpu.memory_space<vmem>>, %arg5: memref<1x8xf32, #tpu.memory_space<vmem>>, %arg6: memref<1x16x16x8xf32, #tpu.memory_space<vmem>>, %arg7: memref<18x18x8xf32, #tpu.memory_space<vmem>>) attributes {dimension_semantics = [#tpu.dimension_semantics<parallel>], iteration_bounds = array<i64: 2>, scalar_prefetch = 0 : i64, scratch_operands = 1 : i64, tpu.core_type = #tpu.core_type<tc>, window_params = [{transform_indices = @transform_0, window_bounds = array<i64: 1, 16, 16, 8>}, {pipeline_mode = #tpu.pipeline_mode<synchronous>, transform_indices = @transform_1, window_bounds = array<i64: 3, 24, 8>}, {pipeline_mode = #tpu.pipeline_mode<synchronous>, transform_indices = @transform_2, window_bounds = array<i64: 1, 8>}, {pipeline_mode = #tpu.pipeline_mode<synchronous>, transform_indices = @transform_3, window_bounds = array<i64: 3, 24, 8>}, {pipeline_mode = #tpu.pipeline_mode<synchronous>, transform_indices = @transform_4, window_bounds = array<i64: 1, 8>}, {transform_indices = @transform_5, window_bounds = array<i64: 1, 16, 16, 8>}]} {
    %c0 = arith.constant 0 : index
    %c0_0 = arith.constant 0 : index
    %c0_1 = arith.constant 0 : index
    %c0_2 = arith.constant 0 : index
    %0 = vector.load %arg1[%c0, %c0_0, %c0_1, %c0_2] : memref<1x16x16x8xf32, #tpu.memory_space<vmem>>, vector<1x16x16x8xf32>
    %1 = vector.shape_cast %0 : vector<1x16x16x8xf32> to vector<16x16x8xf32>
    %c1 = arith.constant 1 : index
    %c1_3 = arith.constant 1 : index
    %c0_4 = arith.constant 0 : index
    %2 = vector.load %arg7[%c1, %c1_3, %c0_4] : memref<18x18x8xf32, #tpu.memory_space<vmem>>, vector<16x16x8xf32>
    tpu.vector_store %arg7[%c1, %c1_3, %c0_4], %1 {strides = array<i32>} : memref<18x18x8xf32, #tpu.memory_space<vmem>>, vector<16x16x8xf32>,
    %3 = vector.extract_strided_slice %1 {offsets = [1, 0, 0], sizes = [1, 16, 8], strides = [1, 1, 1]} : vector<16x16x8xf32> to vector<1x16x8xf32>
    %c0_5 = arith.constant 0 : index
    %c1_6 = arith.constant 1 : index
    %c0_7 = arith.constant 0 : index
    %4 = vector.load %arg7[%c0_5, %c1_6, %c0_7] : memref<18x18x8xf32, #tpu.memory_space<vmem>>, vector<1x16x8xf32>
    tpu.vector_store %arg7[%c0_5, %c1_6, %c0_7], %3 {strides = array<i32>} : memref<18x18x8xf32, #tpu.memory_space<vmem>>, vector<1x16x8xf32>,
    %5 = vector.extract_strided_slice %1 {offsets = [14, 0, 0], sizes = [1, 16, 8], strides = [1, 1, 1]} : vector<16x16x8xf32> to vector<1x16x8xf32>
    %c17 = arith.constant 17 : index
    %c1_8 = arith.constant 1 : index
    %c0_9 = arith.constant 0 : index
    %6 = vector.load %arg7[%c17, %c1_8, %c0_9] : memref<18x18x8xf32, #tpu.memory_space<vmem>>, vector<1x16x8xf32>
    tpu.vector_store %arg7[%c17, %c1_8, %c0_9], %5 {strides = array<i32>} : memref<18x18x8xf32, #tpu.memory_space<vmem>>, vector<1x16x8xf32>,
    %c0_10 = arith.constant 0 : index
    %c2 = arith.constant 2 : index
    %c0_11 = arith.constant 0 : index
    %7 = vector.load %arg7[%c0_10, %c2, %c0_11] : memref<18x18x8xf32, #tpu.memory_space<vmem>>, vector<18x1x8xf32>
    %c0_12 = arith.constant 0 : index
    %c0_13 = arith.constant 0 : index
    %c0_14 = arith.constant 0 : index
    %8 = vector.load %arg7[%c0_12, %c0_13, %c0_14] : memref<18x18x8xf32, #tpu.memory_space<vmem>>, vector<18x1x8xf32>
    tpu.vector_store %arg7[%c0_12, %c0_13, %c0_14], %7 {strides = array<i32>} : memref<18x18x8xf32, #tpu.memory_space<vmem>>, vector<18x1x8xf32>,
    %c0_15 = arith.constant 0 : index
    %c15 = arith.constant 15 : index
    %c0_16 = arith.constant 0 : index
    %9 = vector.load %arg7[%c0_15, %c15, %c0_16] : memref<18x18x8xf32, #tpu.memory_space<vmem>>, vector<18x1x8xf32>
    %c0_17 = arith.constant 0 : index
    %c17_18 = arith.constant 17 : index
    %c0_19 = arith.constant 0 : index
    %10 = vector.load %arg7[%c0_17, %c17_18, %c0_19] : memref<18x18x8xf32, #tpu.memory_space<vmem>>, vector<18x1x8xf32>
    tpu.vector_store %arg7[%c0_17, %c17_18, %c0_19], %9 {strides = array<i32>} : memref<18x18x8xf32, #tpu.memory_space<vmem>>, vector<18x1x8xf32>,
    %cst = arith.constant 0.000000e+00 : f32
    %11 = vector.broadcast %cst : f32 to vector<256x8xf32>
    %c0_20 = arith.constant 0 : index
    %c0_21 = arith.constant 0 : index
    %c0_22 = arith.constant 0 : index
    %12 = vector.load %arg7[%c0_20, %c0_21, %c0_22] : memref<18x18x8xf32, #tpu.memory_space<vmem>>, vector<16x16x8xf32>
    %c1_23 = arith.constant 1 : index
    %c0_24 = arith.constant 0 : index
    %c0_25 = arith.constant 0 : index
    %13 = vector.load %arg7[%c1_23, %c0_24, %c0_25] : memref<18x18x8xf32, #tpu.memory_space<vmem>>, vector<16x16x8xf32>
    %c2_26 = arith.constant 2 : index
    %c0_27 = arith.constant 0 : index
    %c0_28 = arith.constant 0 : index
    %14 = vector.load %arg7[%c2_26, %c0_27, %c0_28] : memref<18x18x8xf32, #tpu.memory_space<vmem>>, vector<16x16x8xf32>
    %15 = tpu.concatenate %12, %13, %14 in 2 : vector<16x16x8xf32>, vector<16x16x8xf32>, vector<16x16x8xf32> -> vector<16x16x24xf32>
    %16 = vector.shape_cast %15 : vector<16x16x24xf32> to vector<256x24xf32>
    %17 = arith.truncf %16 : vector<256x24xf32> to vector<256x24xbf16>
    %c0_29 = arith.constant 0 : index
    %c0_30 = arith.constant 0 : index
    %c0_31 = arith.constant 0 : index
    %18 = vector.load %arg2[%c0_29, %c0_30, %c0_31] : memref<3x24x8xbf16, #tpu.memory_space<vmem>>, vector<1x24x8xbf16>
    %19 = vector.shape_cast %18 : vector<1x24x8xbf16> to vector<24x8xbf16>
    %cst_32 = arith.constant dense<0.000000e+00> : vector<256x8xf32>
    %20 = tpu.matmul %17, %19, %cst_32 {dimension_numbers = #tpu.dot_dimension_numbers<[1], [0], [0], [1], [0, 0, 1, 1], [], []>} : vector<256x24xbf16>, vector<24x8xbf16>, vector<256x8xf32> -> vector<256x8xf32>
    %21 = arith.addf %11, %20 : vector<256x8xf32>
    %c0_33 = arith.constant 0 : index
    %c1_34 = arith.constant 1 : index
    %c0_35 = arith.constant 0 : index
    %22 = vector.load %arg7[%c0_33, %c1_34, %c0_35] : memref<18x18x8xf32, #tpu.memory_space<vmem>>, vector<16x16x8xf32>
    %c1_36 = arith.constant 1 : index
    %c1_37 = arith.constant 1 : index
    %c0_38 = arith.constant 0 : index
    %23 = vector.load %arg7[%c1_36, %c1_37, %c0_38] : memref<18x18x8xf32, #tpu.memory_space<vmem>>, vector<16x16x8xf32>
    %c2_39 = arith.constant 2 : index
    %c1_40 = arith.constant 1 : index
    %c0_41 = arith.constant 0 : index
    %24 = vector.load %arg7[%c2_39, %c1_40, %c0_41] : memref<18x18x8xf32, #tpu.memory_space<vmem>>, vector<16x16x8xf32>
    %25 = tpu.concatenate %22, %23, %24 in 2 : vector<16x16x8xf32>, vector<16x16x8xf32>, vector<16x16x8xf32> -> vector<16x16x24xf32>
    %26 = vector.shape_cast %25 : vector<16x16x24xf32> to vector<256x24xf32>
    %27 = arith.truncf %26 : vector<256x24xf32> to vector<256x24xbf16>
    %c1_42 = arith.constant 1 : index
    %c0_43 = arith.constant 0 : index
    %c0_44 = arith.constant 0 : index
    %28 = vector.load %arg2[%c1_42, %c0_43, %c0_44] : memref<3x24x8xbf16, #tpu.memory_space<vmem>>, vector<1x24x8xbf16>
    %29 = vector.shape_cast %28 : vector<1x24x8xbf16> to vector<24x8xbf16>
    %cst_45 = arith.constant dense<0.000000e+00> : vector<256x8xf32>
    %30 = tpu.matmul %27, %29, %cst_45 {dimension_numbers = #tpu.dot_dimension_numbers<[1], [0], [0], [1], [0, 0, 1, 1], [], []>} : vector<256x24xbf16>, vector<24x8xbf16>, vector<256x8xf32> -> vector<256x8xf32>
    %31 = arith.addf %21, %30 : vector<256x8xf32>
    %c0_46 = arith.constant 0 : index
    %c2_47 = arith.constant 2 : index
    %c0_48 = arith.constant 0 : index
    %32 = vector.load %arg7[%c0_46, %c2_47, %c0_48] : memref<18x18x8xf32, #tpu.memory_space<vmem>>, vector<16x16x8xf32>
    %c1_49 = arith.constant 1 : index
    %c2_50 = arith.constant 2 : index
    %c0_51 = arith.constant 0 : index
    %33 = vector.load %arg7[%c1_49, %c2_50, %c0_51] : memref<18x18x8xf32, #tpu.memory_space<vmem>>, vector<16x16x8xf32>
    %c2_52 = arith.constant 2 : index
    %c2_53 = arith.constant 2 : index
    %c0_54 = arith.constant 0 : index
    %34 = vector.load %arg7[%c2_52, %c2_53, %c0_54] : memref<18x18x8xf32, #tpu.memory_space<vmem>>, vector<16x16x8xf32>
    %35 = tpu.concatenate %32, %33, %34 in 2 : vector<16x16x8xf32>, vector<16x16x8xf32>, vector<16x16x8xf32> -> vector<16x16x24xf32>
    %36 = vector.shape_cast %35 : vector<16x16x24xf32> to vector<256x24xf32>
    %37 = arith.truncf %36 : vector<256x24xf32> to vector<256x24xbf16>
    %c2_55 = arith.constant 2 : index
    %c0_56 = arith.constant 0 : index
    %c0_57 = arith.constant 0 : index
    %38 = vector.load %arg2[%c2_55, %c0_56, %c0_57] : memref<3x24x8xbf16, #tpu.memory_space<vmem>>, vector<1x24x8xbf16>
    %39 = vector.shape_cast %38 : vector<1x24x8xbf16> to vector<24x8xbf16>
    %cst_58 = arith.constant dense<0.000000e+00> : vector<256x8xf32>
    %40 = tpu.matmul %37, %39, %cst_58 {dimension_numbers = #tpu.dot_dimension_numbers<[1], [0], [0], [1], [0, 0, 1, 1], [], []>} : vector<256x24xbf16>, vector<24x8xbf16>, vector<256x8xf32> -> vector<256x8xf32>
    %41 = arith.addf %31, %40 : vector<256x8xf32>
    %c0_59 = arith.constant 0 : index
    %c0_60 = arith.constant 0 : index
    %42 = vector.load %arg3[%c0_59, %c0_60] : memref<1x8xf32, #tpu.memory_space<vmem>>, vector<1x8xf32>
    %43 = vector.shape_cast %42 : vector<1x8xf32> to vector<8xf32>
    %44 = vector.shape_cast %43 : vector<8xf32> to vector<1x8xf32>
    %45 = vector.broadcast %44 : vector<1x8xf32> to vector<256x8xf32>
    %46 = arith.addf %41, %45 : vector<256x8xf32>
    %cst_61 = arith.constant dense<0.000000e+00> : vector<8xf32>
    %47 = vector.multi_reduction <add>, %46, %cst_61 [0] : vector<256x8xf32> to vector<8xf32>
    %48 = vector.shape_cast %47 : vector<8xf32> to vector<1x8xf32>
    %cst_62 = arith.constant 2.560000e+02 : f32
    %49 = vector.broadcast %cst_62 : f32 to vector<1x8xf32>
    %50 = arith.divf %48, %49 : vector<1x8xf32>
    %51 = vector.broadcast %50 : vector<1x8xf32> to vector<256x8xf32>
    %52 = arith.subf %46, %51 : vector<256x8xf32>
    %53 = arith.mulf %52, %52 : vector<256x8xf32>
    %cst_63 = arith.constant dense<0.000000e+00> : vector<8xf32>
    %54 = vector.multi_reduction <add>, %53, %cst_63 [0] : vector<256x8xf32> to vector<8xf32>
    %55 = vector.shape_cast %54 : vector<8xf32> to vector<1x8xf32>
    %cst_64 = arith.constant 2.560000e+02 : f32
    %56 = vector.broadcast %cst_64 : f32 to vector<1x8xf32>
    %57 = arith.divf %55, %56 : vector<1x8xf32>
    %cst_65 = arith.constant 9.99999974E-6 : f32
    %58 = vector.broadcast %cst_65 : f32 to vector<1x8xf32>
    %59 = arith.addf %57, %58 : vector<1x8xf32>
    %60 = math.rsqrt %59 : vector<1x8xf32>
    %61 = vector.broadcast %60 : vector<1x8xf32> to vector<256x8xf32>
    %62 = arith.mulf %52, %61 : vector<256x8xf32>
    %cst_66 = arith.constant 0.000000e+00 : f32
    %63 = vector.broadcast %cst_66 : f32 to vector<256x8xf32>
    %64 = arith.maximumf %62, %63 : vector<256x8xf32>
    %65 = vector.shape_cast %64 : vector<256x8xf32> to vector<16x16x8xf32>
    %c1_67 = arith.constant 1 : index
    %c1_68 = arith.constant 1 : index
    %c0_69 = arith.constant 0 : index
    %66 = vector.load %arg7[%c1_67, %c1_68, %c0_69] : memref<18x18x8xf32, #tpu.memory_space<vmem>>, vector<16x16x8xf32>
    tpu.vector_store %arg7[%c1_67, %c1_68, %c0_69], %65 {strides = array<i32>} : memref<18x18x8xf32, #tpu.memory_space<vmem>>, vector<16x16x8xf32>,
    %67 = vector.extract_strided_slice %65 {offsets = [1, 0, 0], sizes = [1, 16, 8], strides = [1, 1, 1]} : vector<16x16x8xf32> to vector<1x16x8xf32>
    %c0_70 = arith.constant 0 : index
    %c1_71 = arith.constant 1 : index
    %c0_72 = arith.constant 0 : index
    %68 = vector.load %arg7[%c0_70, %c1_71, %c0_72] : memref<18x18x8xf32, #tpu.memory_space<vmem>>, vector<1x16x8xf32>
    tpu.vector_store %arg7[%c0_70, %c1_71, %c0_72], %67 {strides = array<i32>} : memref<18x18x8xf32, #tpu.memory_space<vmem>>, vector<1x16x8xf32>,
    %69 = vector.extract_strided_slice %65 {offsets = [14, 0, 0], sizes = [1, 16, 8], strides = [1, 1, 1]} : vector<16x16x8xf32> to vector<1x16x8xf32>
    %c17_73 = arith.constant 17 : index
    %c1_74 = arith.constant 1 : index
    %c0_75 = arith.constant 0 : index
    %70 = vector.load %arg7[%c17_73, %c1_74, %c0_75] : memref<18x18x8xf32, #tpu.memory_space<vmem>>, vector<1x16x8xf32>
    tpu.vector_store %arg7[%c17_73, %c1_74, %c0_75], %69 {strides = array<i32>} : memref<18x18x8xf32, #tpu.memory_space<vmem>>, vector<1x16x8xf32>,
    %c0_76 = arith.constant 0 : index
    %c2_77 = arith.constant 2 : index
    %c0_78 = arith.constant 0 : index
    %71 = vector.load %arg7[%c0_76, %c2_77, %c0_78] : memref<18x18x8xf32, #tpu.memory_space<vmem>>, vector<18x1x8xf32>
    %c0_79 = arith.constant 0 : index
    %c0_80 = arith.constant 0 : index
    %c0_81 = arith.constant 0 : index
    %72 = vector.load %arg7[%c0_79, %c0_80, %c0_81] : memref<18x18x8xf32, #tpu.memory_space<vmem>>, vector<18x1x8xf32>
    tpu.vector_store %arg7[%c0_79, %c0_80, %c0_81], %71 {strides = array<i32>} : memref<18x18x8xf32, #tpu.memory_space<vmem>>, vector<18x1x8xf32>,
    %c0_82 = arith.constant 0 : index
    %c15_83 = arith.constant 15 : index
    %c0_84 = arith.constant 0 : index
    %73 = vector.load %arg7[%c0_82, %c15_83, %c0_84] : memref<18x18x8xf32, #tpu.memory_space<vmem>>, vector<18x1x8xf32>
    %c0_85 = arith.constant 0 : index
    %c17_86 = arith.constant 17 : index
    %c0_87 = arith.constant 0 : index
    %74 = vector.load %arg7[%c0_85, %c17_86, %c0_87] : memref<18x18x8xf32, #tpu.memory_space<vmem>>, vector<18x1x8xf32>
    tpu.vector_store %arg7[%c0_85, %c17_86, %c0_87], %73 {strides = array<i32>} : memref<18x18x8xf32, #tpu.memory_space<vmem>>, vector<18x1x8xf32>,
    %cst_88 = arith.constant 0.000000e+00 : f32
    %75 = vector.broadcast %cst_88 : f32 to vector<256x8xf32>
    %c0_89 = arith.constant 0 : index
    %c0_90 = arith.constant 0 : index
    %c0_91 = arith.constant 0 : index
    %76 = vector.load %arg7[%c0_89, %c0_90, %c0_91] : memref<18x18x8xf32, #tpu.memory_space<vmem>>, vector<16x16x8xf32>
    %c1_92 = arith.constant 1 : index
    %c0_93 = arith.constant 0 : index
    %c0_94 = arith.constant 0 : index
    %77 = vector.load %arg7[%c1_92, %c0_93, %c0_94] : memref<18x18x8xf32, #tpu.memory_space<vmem>>, vector<16x16x8xf32>
    %c2_95 = arith.constant 2 : index
    %c0_96 = arith.constant 0 : index
    %c0_97 = arith.constant 0 : index
    %78 = vector.load %arg7[%c2_95, %c0_96, %c0_97] : memref<18x18x8xf32, #tpu.memory_space<vmem>>, vector<16x16x8xf32>
    %79 = tpu.concatenate %76, %77, %78 in 2 : vector<16x16x8xf32>, vector<16x16x8xf32>, vector<16x16x8xf32> -> vector<16x16x24xf32>
    %80 = vector.shape_cast %79 : vector<16x16x24xf32> to vector<256x24xf32>
    %81 = arith.truncf %80 : vector<256x24xf32> to vector<256x24xbf16>
    %c0_98 = arith.constant 0 : index
    %c0_99 = arith.constant 0 : index
    %c0_100 = arith.constant 0 : index
    %82 = vector.load %arg4[%c0_98, %c0_99, %c0_100] : memref<3x24x8xbf16, #tpu.memory_space<vmem>>, vector<1x24x8xbf16>
    %83 = vector.shape_cast %82 : vector<1x24x8xbf16> to vector<24x8xbf16>
    %cst_101 = arith.constant dense<0.000000e+00> : vector<256x8xf32>
    %84 = tpu.matmul %81, %83, %cst_101 {dimension_numbers = #tpu.dot_dimension_numbers<[1], [0], [0], [1], [0, 0, 1, 1], [], []>} : vector<256x24xbf16>, vector<24x8xbf16>, vector<256x8xf32> -> vector<256x8xf32>
    %85 = arith.addf %75, %84 : vector<256x8xf32>
    %c0_102 = arith.constant 0 : index
    %c1_103 = arith.constant 1 : index
    %c0_104 = arith.constant 0 : index
    %86 = vector.load %arg7[%c0_102, %c1_103, %c0_104] : memref<18x18x8xf32, #tpu.memory_space<vmem>>, vector<16x16x8xf32>
    %c1_105 = arith.constant 1 : index
    %c1_106 = arith.constant 1 : index
    %c0_107 = arith.constant 0 : index
    %87 = vector.load %arg7[%c1_105, %c1_106, %c0_107] : memref<18x18x8xf32, #tpu.memory_space<vmem>>, vector<16x16x8xf32>
    %c2_108 = arith.constant 2 : index
    %c1_109 = arith.constant 1 : index
    %c0_110 = arith.constant 0 : index
    %88 = vector.load %arg7[%c2_108, %c1_109, %c0_110] : memref<18x18x8xf32, #tpu.memory_space<vmem>>, vector<16x16x8xf32>
    %89 = tpu.concatenate %86, %87, %88 in 2 : vector<16x16x8xf32>, vector<16x16x8xf32>, vector<16x16x8xf32> -> vector<16x16x24xf32>
    %90 = vector.shape_cast %89 : vector<16x16x24xf32> to vector<256x24xf32>
    %91 = arith.truncf %90 : vector<256x24xf32> to vector<256x24xbf16>
    %c1_111 = arith.constant 1 : index
    %c0_112 = arith.constant 0 : index
    %c0_113 = arith.constant 0 : index
    %92 = vector.load %arg4[%c1_111, %c0_112, %c0_113] : memref<3x24x8xbf16, #tpu.memory_space<vmem>>, vector<1x24x8xbf16>
    %93 = vector.shape_cast %92 : vector<1x24x8xbf16> to vector<24x8xbf16>
    %cst_114 = arith.constant dense<0.000000e+00> : vector<256x8xf32>
    %94 = tpu.matmul %91, %93, %cst_114 {dimension_numbers = #tpu.dot_dimension_numbers<[1], [0], [0], [1], [0, 0, 1, 1], [], []>} : vector<256x24xbf16>, vector<24x8xbf16>, vector<256x8xf32> -> vector<256x8xf32>
    %95 = arith.addf %85, %94 : vector<256x8xf32>
    %c0_115 = arith.constant 0 : index
    %c2_116 = arith.constant 2 : index
    %c0_117 = arith.constant 0 : index
    %96 = vector.load %arg7[%c0_115, %c2_116, %c0_117] : memref<18x18x8xf32, #tpu.memory_space<vmem>>, vector<16x16x8xf32>
    %c1_118 = arith.constant 1 : index
    %c2_119 = arith.constant 2 : index
    %c0_120 = arith.constant 0 : index
    %97 = vector.load %arg7[%c1_118, %c2_119, %c0_120] : memref<18x18x8xf32, #tpu.memory_space<vmem>>, vector<16x16x8xf32>
    %c2_121 = arith.constant 2 : index
    %c2_122 = arith.constant 2 : index
    %c0_123 = arith.constant 0 : index
    %98 = vector.load %arg7[%c2_121, %c2_122, %c0_123] : memref<18x18x8xf32, #tpu.memory_space<vmem>>, vector<16x16x8xf32>
    %99 = tpu.concatenate %96, %97, %98 in 2 : vector<16x16x8xf32>, vector<16x16x8xf32>, vector<16x16x8xf32> -> vector<16x16x24xf32>
    %100 = vector.shape_cast %99 : vector<16x16x24xf32> to vector<256x24xf32>
    %101 = arith.truncf %100 : vector<256x24xf32> to vector<256x24xbf16>
    %c2_124 = arith.constant 2 : index
    %c0_125 = arith.constant 0 : index
    %c0_126 = arith.constant 0 : index
    %102 = vector.load %arg4[%c2_124, %c0_125, %c0_126] : memref<3x24x8xbf16, #tpu.memory_space<vmem>>, vector<1x24x8xbf16>
    %103 = vector.shape_cast %102 : vector<1x24x8xbf16> to vector<24x8xbf16>
    %cst_127 = arith.constant dense<0.000000e+00> : vector<256x8xf32>
    %104 = tpu.matmul %101, %103, %cst_127 {dimension_numbers = #tpu.dot_dimension_numbers<[1], [0], [0], [1], [0, 0, 1, 1], [], []>} : vector<256x24xbf16>, vector<24x8xbf16>, vector<256x8xf32> -> vector<256x8xf32>
    %105 = arith.addf %95, %104 : vector<256x8xf32>
    %c0_128 = arith.constant 0 : index
    %c0_129 = arith.constant 0 : index
    %106 = vector.load %arg5[%c0_128, %c0_129] : memref<1x8xf32, #tpu.memory_space<vmem>>, vector<1x8xf32>
    %107 = vector.shape_cast %106 : vector<1x8xf32> to vector<8xf32>
    %108 = vector.shape_cast %107 : vector<8xf32> to vector<1x8xf32>
    %109 = vector.broadcast %108 : vector<1x8xf32> to vector<256x8xf32>
    %110 = arith.addf %105, %109 : vector<256x8xf32>
    %cst_130 = arith.constant dense<0.000000e+00> : vector<8xf32>
    %111 = vector.multi_reduction <add>, %110, %cst_130 [0] : vector<256x8xf32> to vector<8xf32>
    %112 = vector.shape_cast %111 : vector<8xf32> to vector<1x8xf32>
    %cst_131 = arith.constant 2.560000e+02 : f32
    %113 = vector.broadcast %cst_131 : f32 to vector<1x8xf32>
    %114 = arith.divf %112, %113 : vector<1x8xf32>
    %115 = vector.broadcast %114 : vector<1x8xf32> to vector<256x8xf32>
    %116 = arith.subf %110, %115 : vector<256x8xf32>
    %117 = arith.mulf %116, %116 : vector<256x8xf32>
    %cst_132 = arith.constant dense<0.000000e+00> : vector<8xf32>
    %118 = vector.multi_reduction <add>, %117, %cst_132 [0] : vector<256x8xf32> to vector<8xf32>
    %119 = vector.shape_cast %118 : vector<8xf32> to vector<1x8xf32>
    %cst_133 = arith.constant 2.560000e+02 : f32
    %120 = vector.broadcast %cst_133 : f32 to vector<1x8xf32>
    %121 = arith.divf %119, %120 : vector<1x8xf32>
    %cst_134 = arith.constant 9.99999974E-6 : f32
    %122 = vector.broadcast %cst_134 : f32 to vector<1x8xf32>
    %123 = arith.addf %121, %122 : vector<1x8xf32>
    %124 = math.rsqrt %123 : vector<1x8xf32>
    %125 = vector.broadcast %124 : vector<1x8xf32> to vector<256x8xf32>
    %126 = arith.mulf %116, %125 : vector<256x8xf32>
    %127 = vector.shape_cast %126 : vector<256x8xf32> to vector<16x16x8xf32>
    %128 = arith.addf %1, %127 : vector<16x16x8xf32>
    %c0_135 = arith.constant 0 : index
    %c0_136 = arith.constant 0 : index
    %c0_137 = arith.constant 0 : index
    %c0_138 = arith.constant 0 : index
    %129 = vector.load %arg6[%c0_135, %c0_136, %c0_137, %c0_138] : memref<1x16x16x8xf32, #tpu.memory_space<vmem>>, vector<1x16x16x8xf32>
    %130 = vector.shape_cast %129 : vector<1x16x16x8xf32> to vector<16x16x8xf32>
    %131 = vector.shape_cast %128 : vector<16x16x8xf32> to vector<1x16x16x8xf32>
    tpu.vector_store %arg6[%c0_135, %c0_136, %c0_137, %c0_138], %131 {strides = array<i32>} : memref<1x16x16x8xf32, #tpu.memory_space<vmem>>, vector<1x16x16x8xf32>,
    return
  }
  func.func @transform_0(%arg0: i32) -> (i32, i32, i32, i32) {
    %c0_i32 = arith.constant 0 : i32
    %c0_i32_0 = arith.constant 0 : i32
    %c0_i32_1 = arith.constant 0 : i32
    %c0_i32_2 = arith.constant 0 : i32
    return %arg0, %c0_i32, %c0_i32_0, %c0_i32_1 : i32, i32, i32, i32
  }
  func.func @transform_1(%arg0: i32) -> (i32, i32, i32) {
    %c0_i32 = arith.constant 0 : i32
    %c0_i32_0 = arith.constant 0 : i32
    %c0_i32_1 = arith.constant 0 : i32
    %c0_i32_2 = arith.constant 0 : i32
    return %c0_i32, %c0_i32_0, %c0_i32_1 : i32, i32, i32
  }
  func.func @transform_2(%arg0: i32) -> (i32, i32) {
    %c0_i32 = arith.constant 0 : i32
    %c0_i32_0 = arith.constant 0 : i32
    %c0_i32_1 = arith.constant 0 : i32
    return %c0_i32, %c0_i32_0 : i32, i32
  }
  func.func @transform_3(%arg0: i32) -> (i32, i32, i32) {
    %c0_i32 = arith.constant 0 : i32
    %c0_i32_0 = arith.constant 0 : i32
    %c0_i32_1 = arith.constant 0 : i32
    %c0_i32_2 = arith.constant 0 : i32
    return %c0_i32, %c0_i32_0, %c0_i32_1 : i32, i32, i32
  }
  func.func @transform_4(%arg0: i32) -> (i32, i32) {
    %c0_i32 = arith.constant 0 : i32
    %c0_i32_0 = arith.constant 0 : i32
    %c0_i32_1 = arith.constant 0 : i32
    return %c0_i32, %c0_i32_0 : i32, i32
  }
  func.func @transform_5(%arg0: i32) -> (i32, i32, i32, i32) {
    %c0_i32 = arith.constant 0 : i32
    %c0_i32_0 = arith.constant 0 : i32
    %c0_i32_1 = arith.constant 0 : i32
    %c0_i32_2 = arith.constant 0 : i32
    return %arg0, %c0_i32, %c0_i32_0, %c0_i32_1 : i32, i32, i32, i32
  }
}

</mosaic_0001>

<llo_original>
// kernel: resnet_block_nhwc.1
$region0: #{resnet_block_nhwc.1}
  #allocation0 [shape = 'u32[]', space=smem, size = 0x4, offset = 0x4, fixed_abs, tag = 'smem constant byte address 0x4 - core index']
  #allocation1 [shape = 'u32[72,128]{1,0:T(1,128)}', space=vmem, size = 0x9000, scoped, tag = 'internal scratch']
  #allocation2 [shape = 'f32[18,18,8]{2,1,0:T(8,128)}', space=vmem, size = 0x36000, scoped, tag = 'scratch operand']
  %s0 = inlined_call_operand.vmem [shape: f32[2,16,16,8], index: 0, kind: input, shape index: {}]
  %s1 = inlined_call_operand.vmem [shape: bf16[3,24,8], index: 1, kind: input, shape index: {}]
  %s2 = inlined_call_operand.vmem [shape: f32[1,8], index: 2, kind: input, shape index: {}]
  %s3 = inlined_call_operand.vmem [shape: bf16[3,24,8], index: 3, kind: input, shape index: {}]
  %s4 = inlined_call_operand.vmem [shape: f32[1,8], index: 4, kind: input, shape index: {}]
  %s5 = inlined_call_operand.vmem [shape: f32[2,16,16,8], index: 5, kind: output, shape index: {}]
  %s6 = sld [smem:[#allocation0]]
  $region53: #{resnet_block_nhwc.1} parent=0
    _
  %s8 = ssub.s32 1, %s6
  %s9 = scalar_select 0, %s8, %s6
  loop: start=0, step=1, limit=4
  $region2: #{resnet_block_nhwc.1} parent=0 // loop_pre_header
    _
  $region3: #{resnet_block_nhwc.1} parent=0 // loop_header
    %s11 = sphi 0, %s15
    %p12 = scmp.ge.s32.totalorder %s11, 4
    %s21 = sphi 0, %s23
    %s24 = sphi 0, %s21
    %s25 = sphi 0, %s24
    %s41 = sphi 0, %s25
    %s45 = sphi 0, %s45
    %s47 = sphi 0, %s45
    %s48 = sphi 0, %s47
    %s62 = sphi 0, %s48
    %s66 = sphi 0, %s66
    %s68 = sphi 0, %s66
    %s69 = sphi 0, %s68
    %s83 = sphi 0, %s69
    %s87 = sphi 0, %s87
    %s89 = sphi 0, %s87
    %s90 = sphi 0, %s89
    %s104 = sphi 0, %s90
    %s108 = sphi 0, %s108
    %s110 = sphi 0, %s108
    %s111 = sphi 0, %s110
    %s125 = sphi 0, %s111
    %s131 = sphi 0, %s133
    %s134 = sphi 0, %s131
    %s135 = sphi 0, %s134
    %s151 = sphi 0, %s135
  $region4: #{resnet_block_nhwc.1} parent=0 // loop_header_branch
    %14 = sbr.rel (%p12) target = $region8
  $region5: #{resnet_block_nhwc.1} parent=0 // loop_body
    %s16 = ssub.s32 %s11, 1
    %s17 = ssub.s32 %s11, 2
    %s18 = sadd.s32 %s11, 1
    %s19 = ssub.s32 %s11, %s18
    %p20 = scmp.eq.s32.totalorder %s19, 0
    %s22 = sadd.s32 %s21, 1
    %s23 = scalar_select %p20, %s21, %s22
    %p26 = pneg %p20
    %p27 = scmp.eq.s32.totalorder %s11, 1
    %p28 = por %p26, %p27
    %p29 = scmp.ne.s32.totalorder %s21, %s24
    %p30 = scmp.eq.s32.totalorder %s11, 0
    %p31 = por %p29, %p30
    %p32 = scmp.ne.s32.totalorder %s21, %s24
    %p33 = scmp.eq.s32.totalorder %s16, 1
    %p34 = por %p32, %p33
    %p35 = scmp.ne.s32.totalorder %s24, %s25
    %p36 = scmp.eq.s32.totalorder %s16, 0
    %p37 = por %p35, %p36
    %p38 = scmp.ne.s32.totalorder %s24, %s25
    %p39 = scmp.eq.s32.totalorder %s17, 1
    %p40 = por %p38, %p39
    %p42 = scmp.ne.s32.totalorder %s25, %s41
    %p43 = scmp.eq.s32.totalorder %s17, 0
    %p44 = por %p42, %p43
    %s46 = sadd.s32 %s45, 1
    %p49 = scmp.eq.s32.totalorder %s11, 1
    %p50 = scmp.ne.s32.totalorder %s45, %s47
    %p51 = scmp.eq.s32.totalorder %s11, 0
    %p52 = por %p50, %p51
    %p53 = scmp.ne.s32.totalorder %s45, %s47
    %p54 = scmp.eq.s32.totalorder %s16, 1
    %p55 = por %p53, %p54
    %p56 = scmp.ne.s32.totalorder %s47, %s48
    %p57 = scmp.eq.s32.totalorder %s16, 0
    %p58 = por %p56, %p57
    %p59 = scmp.ne.s32.totalorder %s47, %s48
    %p60 = scmp.eq.s32.totalorder %s17, 1
    %p61 = por %p59, %p60
    %p63 = scmp.ne.s32.totalorder %s48, %s62
    %p64 = scmp.eq.s32.totalorder %s17, 0
    %p65 = por %p63, %p64
    %s67 = sadd.s32 %s66, 1
    %p70 = scmp.eq.s32.totalorder %s11, 1
    %p71 = scmp.ne.s32.totalorder %s66, %s68
    %p72 = scmp.eq.s32.totalorder %s11, 0
    %p73 = por %p71, %p72
    %p74 = scmp.ne.s32.totalorder %s66, %s68
    %p75 = scmp.eq.s32.totalorder %s16, 1
    %p76 = por %p74, %p75
    %p77 = scmp.ne.s32.totalorder %s68, %s69
    %p78 = scmp.eq.s32.totalorder %s16, 0
    %p79 = por %p77, %p78
    %p80 = scmp.ne.s32.totalorder %s68, %s69
    %p81 = scmp.eq.s32.totalorder %s17, 1
    %p82 = por %p80, %p81
    %p84 = scmp.ne.s32.totalorder %s69, %s83
    %p85 = scmp.eq.s32.totalorder %s17, 0
    %p86 = por %p84, %p85
    %s88 = sadd.s32 %s87, 1
    %p91 = scmp.eq.s32.totalorder %s11, 1
    %p92 = scmp.ne.s32.totalorder %s87, %s89
    %p93 = scmp.eq.s32.totalorder %s11, 0
    %p94 = por %p92, %p93
    %p95 = scmp.ne.s32.totalorder %s87, %s89
    %p96 = scmp.eq.s32.totalorder %s16, 1
    %p97 = por %p95, %p96
    %p98 = scmp.ne.s32.totalorder %s89, %s90
    %p99 = scmp.eq.s32.totalorder %s16, 0
    %p100 = por %p98, %p99
    %p101 = scmp.ne.s32.totalorder %s89, %s90
    %p102 = scmp.eq.s32.totalorder %s17, 1
    %p103 = por %p101, %p102
    %p105 = scmp.ne.s32.totalorder %s90, %s104
    %p106 = scmp.eq.s32.totalorder %s17, 0
    %p107 = por %p105, %p106
    %s109 = sadd.s32 %s108, 1
    %p112 = scmp.eq.s32.totalorder %s11, 1
    %p113 = scmp.ne.s32.totalorder %s108, %s110
    %p114 = scmp.eq.s32.totalorder %s11, 0
    %p115 = por %p113, %p114
    %p116 = scmp.ne.s32.totalorder %s108, %s110
    %p117 = scmp.eq.s32.totalorder %s16, 1
    %p118 = por %p116, %p117
    %p119 = scmp.ne.s32.totalorder %s110, %s111
    %p120 = scmp.eq.s32.totalorder %s16, 0
    %p121 = por %p119, %p120
    %p122 = scmp.ne.s32.totalorder %s110, %s111
    %p123 = scmp.eq.s32.totalorder %s17, 1
    %p124 = por %p122, %p123
    %p126 = scmp.ne.s32.totalorder %s111, %s125
    %p127 = scmp.eq.s32.totalorder %s17, 0
    %p128 = por %p126, %p127
    %s129 = ssub.s32 %s11, %s18
    %p130 = scmp.eq.s32.totalorder %s129, 0
    %s132 = sadd.s32 %s131, 1
    %s133 = scalar_select %p130, %s131, %s132
    %p136 = pneg %p130
    %p137 = scmp.eq.s32.totalorder %s11, 1
    %p138 = por %p136, %p137
    %p139 = scmp.ne.s32.totalorder %s131, %s134
    %p140 = scmp.eq.s32.totalorder %s11, 0
    %p141 = por %p139, %p140
    %p142 = scmp.ne.s32.totalorder %s131, %s134
    %p143 = scmp.eq.s32.totalorder %s16, 1
    %p144 = por %p142, %p143
    %p145 = scmp.ne.s32.totalorder %s134, %s135
    %p146 = scmp.eq.s32.totalorder %s16, 0
    %p147 = por %p145, %p146
    %p148 = scmp.ne.s32.totalorder %s134, %s135
    %p149 = scmp.eq.s32.totalorder %s17, 1
    %p150 = por %p148, %p149
    %p152 = scmp.ne.s32.totalorder %s135, %s151
    %p153 = scmp.eq.s32.totalorder %s17, 0
    %p154 = por %p152, %p153
    %p155 = scmp.le.s32.totalorder 1, %s11
    %p156 = scmp.lt.s32.totalorder %s11, 3
    %p157 = pnand %p155, %p156
    %p158 = pneg %p157
    // Predicated region
    $region9: #{resnet_block_nhwc.1} parent=5 // pred_check
      _
    $region10: #{resnet_block_nhwc.1} parent=5 // pred_check_branch
      %160 = sbr.rel (%p157) target = $region12
    $region11: #{resnet_block_nhwc.1} parent=5 // pred_region
      %s161 = ssub.s32 %s11, 1
      // Predicated region
      $region13: #{resnet_block_nhwc.1} parent=11 // pred_check
        %p162 = pneg %p58
      $region14: #{resnet_block_nhwc.1} parent=11 // pred_check_branch
        %164 = sbr.rel (%p162) target = $region16
      $region15: #{resnet_block_nhwc.1} parent=11 // pred_region
        _
      $region16: #{resnet_block_nhwc.1} parent=11 // pred_fallthru
        _
      // Predicated region
      $region17: #{resnet_block_nhwc.1} parent=11 // pred_check
        %p165 = pneg %p79
      $region18: #{resnet_block_nhwc.1} parent=11 // pred_check_branch
        %167 = sbr.rel (%p165) target = $region20
      $region19: #{resnet_block_nhwc.1} parent=11 // pred_region
        _
      $region20: #{resnet_block_nhwc.1} parent=11 // pred_fallthru
        _
      // Predicated region
      $region21: #{resnet_block_nhwc.1} parent=11 // pred_check
        %p168 = pneg %p100
      $region22: #{resnet_block_nhwc.1} parent=11 // pred_check_branch
        %170 = sbr.rel (%p168) target = $region24
      $region23: #{resnet_block_nhwc.1} parent=11 // pred_region
        _
      $region24: #{resnet_block_nhwc.1} parent=11 // pred_fallthru
        _
      // Predicated region
      $region25: #{resnet_block_nhwc.1} parent=11 // pred_check
        %p171 = pneg %p121
      $region26: #{resnet_block_nhwc.1} parent=11 // pred_check_branch
        %173 = sbr.rel (%p171) target = $region28
      $region27: #{resnet_block_nhwc.1} parent=11 // pred_region
        _
      $region28: #{resnet_block_nhwc.1} parent=11 // pred_fallthru
        _
    $region12: #{resnet_block_nhwc.1} parent=5 // pred_fallthru
      _
    %p174 = scmp.lt.s32.totalorder %s11, 2
    // Predicated region
    $region29: #{resnet_block_nhwc.1} parent=5 // pred_check
      %p175 = pneg %p174
    $region30: #{resnet_block_nhwc.1} parent=5 // pred_check_branch
      %177 = sbr.rel (%p175) target = $region32
    $region31: #{resnet_block_nhwc.1} parent=5 // pred_region
      // Predicated region
      $region33: #{resnet_block_nhwc.1} parent=31 // pred_check
        %p178 = pneg %p31
      $region34: #{resnet_block_nhwc.1} parent=31 // pred_check_branch
        %180 = sbr.rel (%p178) target = $region36
      $region35: #{resnet_block_nhwc.1} parent=31 // pred_region
        %p181 = scmp.lt.s32.totalorder %s11, 1
        %s182 = scalar_select %p181, %s11, 1
        %s183 = smul.addr %s182, 32
        %s184 = smul.addr %s183, 8
        %s185 = scalar_lea.vmem %s0, %s184
      $region36: #{resnet_block_nhwc.1} parent=31 // pred_fallthru
        _
    $region32: #{resnet_block_nhwc.1} parent=5 // pred_fallthru
      _
    %p186 = scmp.le.s32.totalorder 1, %s11
    %p187 = scmp.lt.s32.totalorder %s11, 3
    %p188 = pnand %p186, %p187
    %p189 = pneg %p188
    // Predicated region
    $region37: #{resnet_block_nhwc.1} parent=5 // pred_check
      _
    $region38: #{resnet_block_nhwc.1} parent=5 // pred_check_branch
      %191 = sbr.rel (%p188) target = $region40
    $region39: #{resnet_block_nhwc.1} parent=5 // pred_region
      %s192 = ssub.s32 %s11, 1
      %p193 = scmp.lt.s32.totalorder %s16, 1
      %s194 = scalar_select %p193, %s16, 1
      %s195 = smul.addr %s194, 32
      %s196 = smul.addr %s195, 8
      %s197 = scalar_lea.vmem %s0, %s196
      %p198 = pneg %p37
      %p199 = pneg %p34
      %p200 = pneg %p58
      %p201 = pneg %p55
      %p202 = pneg %p79
      %p203 = pneg %p76
      %p204 = pneg %p100
      %p205 = pneg %p97
      %p206 = pneg %p121
      %p207 = pneg %p118
      %p208 = pneg %p147
      %p209 = pneg %p144
      %p210 = scmp.lt.s32.totalorder %s16, 1
      %s211 = scalar_select %p210, %s16, 1
      %s212 = smul.addr %s211, 32
      %s213 = smul.addr %s212, 8
      %s214 = scalar_lea.vmem %s5, %s213
      %p215 = scmp.lt.s32.totalorder %s16, 1
      %s216 = scalar_select %p215, %s16, 1
      %s217 = smul.addr %s216, 32
      %s218 = smul.addr %s217, 8
      %s219 = scalar_lea.vmem %s0, %s218
      %p220 = scmp.lt.s32.totalorder %s16, 1
      %s221 = scalar_select %p220, %s16, 1
      %s222 = smul.addr %s221, 32
      %s223 = smul.addr %s222, 8
      %s224 = scalar_lea.vmem %s5, %s223
      %v226 = vld [vmem:[%s219] sm:$0xff]
      %v227 = vld [vmem:[%s219 + $0x8] sm:$0xff]
      %v228 = vld [vmem:[%s219 + $0x10] sm:$0xff]
      %v229 = vld [vmem:[%s219 + $0x18] sm:$0xff]
      %v230 = vld [vmem:[%s219 + $0x20] sm:$0xff]
      %v231 = vld [vmem:[%s219 + $0x28] sm:$0xff]
      %v232 = vld [vmem:[%s219 + $0x30] sm:$0xff]
      %v233 = vld [vmem:[%s219 + $0x38] sm:$0xff]
      %v234 = vld [vmem:[%s219 + $0x40] sm:$0xff]
      %v235 = vld [vmem:[%s219 + $0x48] sm:$0xff]
      %v236 = vld [vmem:[%s219 + $0x50] sm:$0xff]
      %v237 = vld [vmem:[%s219 + $0x58] sm:$0xff]
      %v238 = vld [vmem:[%s219 + $0x60] sm:$0xff]
      %v239 = vld [vmem:[%s219 + $0x68] sm:$0xff]
      %v240 = vld [vmem:[%s219 + $0x70] sm:$0xff]
      %v241 = vld [vmem:[%s219 + $0x78] sm:$0xff]
      %v242 = vld [vmem:[%s219 + $0x80] sm:$0xff]
      %v243 = vld [vmem:[%s219 + $0x88] sm:$0xff]
      %v244 = vld [vmem:[%s219 + $0x90] sm:$0xff]
      %v245 = vld [vmem:[%s219 + $0x98] sm:$0xff]
      %v246 = vld [vmem:[%s219 + $0xa0] sm:$0xff]
      %v247 = vld [vmem:[%s219 + $0xa8] sm:$0xff]
      %v248 = vld [vmem:[%s219 + $0xb0] sm:$0xff]
      %v249 = vld [vmem:[%s219 + $0xb8] sm:$0xff]
      %v250 = vld [vmem:[%s219 + $0xc0] sm:$0xff]
      %v251 = vld [vmem:[%s219 + $0xc8] sm:$0xff]
      %v252 = vld [vmem:[%s219 + $0xd0] sm:$0xff]
      %v253 = vld [vmem:[%s219 + $0xd8] sm:$0xff]
      %v254 = vld [vmem:[%s219 + $0xe0] sm:$0xff]
      %v255 = vld [vmem:[%s219 + $0xe8] sm:$0xff]
      %v256 = vld [vmem:[%s219 + $0xf0] sm:$0xff]
      %v257 = vld [vmem:[%s219 + $0xf8] sm:$0xff]
      %s258 = scalar_lea.vmem [#allocation2], 24
      %vm259 = vcmask 64512
      %260 = vst.msk [vmem:[%s258 + $0x1] sm:$0xff] %vm259, %v226
      %261 = vst.msk [vmem:[%s258 + $0x9] sm:$0xff] %vm259, %v227
      %262 = vst.msk [vmem:[%s258 + $0x19] sm:$0xff] %vm259, %v228
      %263 = vst.msk [vmem:[%s258 + $0x21] sm:$0xff] %vm259, %v229
      %264 = vst.msk [vmem:[%s258 + $0x31] sm:$0xff] %vm259, %v230
      %265 = vst.msk [vmem:[%s258 + $0x39] sm:$0xff] %vm259, %v231
      %266 = vst.msk [vmem:[%s258 + $0x49] sm:$0xff] %vm259, %v232
      %267 = vst.msk [vmem:[%s258 + $0x51] sm:$0xff] %vm259, %v233
      %268 = vst.msk [vmem:[%s258 + $0x61] sm:$0xff] %vm259, %v234
      %269 = vst.msk [vmem:[%s258 + $0x69] sm:$0xff] %vm259, %v235
      %270 = vst.msk [vmem:[%s258 + $0x79] sm:$0xff] %vm259, %v236
      %271 = vst.msk [vmem:[%s258 + $0x81] sm:$0xff] %vm259, %v237
      %272 = vst.msk [vmem:[%s258 + $0x91] sm:$0xff] %vm259, %v238
      %273 = vst.msk [vmem:[%s258 + $0x99] sm:$0xff] %vm259, %v239
      %274 = vst.msk [vmem:[%s258 + $0xa9] sm:$0xff] %vm259, %v240
      %275 = vst.msk [vmem:[%s258 + $0xb1] sm:$0xff] %vm259, %v241
      %276 = vst.msk [vmem:[%s258 + $0xc1] sm:$0xff] %vm259, %v242
      %277 = vst.msk [vmem:[%s258 + $0xc9] sm:$0xff] %vm259, %v243
      %278 = vst.msk [vmem:[%s258 + $0xd9] sm:$0xff] %vm259, %v244
      %279 = vst.msk [vmem:[%s258 + $0xe1] sm:$0xff] %vm259, %v245
      %280 = vst.msk [vmem:[%s258 + $0xf1] sm:$0xff] %vm259, %v246
      %281 = vst.msk [vmem:[%s258 + $0xf9] sm:$0xff] %vm259, %v247
      %282 = vst.msk [vmem:[%s258 + $0x109] sm:$0xff] %vm259, %v248
      %283 = vst.msk [vmem:[%s258 + $0x111] sm:$0xff] %vm259, %v249
      %284 = vst.msk [vmem:[%s258 + $0x121] sm:$0xff] %vm259, %v250
      %285 = vst.msk [vmem:[%s258 + $0x129] sm:$0xff] %vm259, %v251
      %286 = vst.msk [vmem:[%s258 + $0x139] sm:$0xff] %vm259, %v252
      %287 = vst.msk [vmem:[%s258 + $0x141] sm:$0xff] %vm259, %v253
      %288 = vst.msk [vmem:[%s258 + $0x151] sm:$0xff] %vm259, %v254
      %289 = vst.msk [vmem:[%s258 + $0x159] sm:$0xff] %vm259, %v255
      %290 = vst.msk [vmem:[%s258 + $0x169] sm:$0xff] %vm259, %v256
      %291 = vst.msk [vmem:[%s258 + $0x171] sm:$0xff] %vm259, %v257
      %292 = vst.msk [vmem:[#allocation2 + $0x1] sm:$0xff] %vm259, %v228
      %293 = vst.msk [vmem:[#allocation2 + $0x9] sm:$0xff] %vm259, %v229
      %s294 = scalar_lea.vmem [#allocation2], 408
      %295 = vst.msk [vmem:[%s294 + $0x1] sm:$0xff] %vm259, %v254
      %296 = vst.msk [vmem:[%s294 + $0x9] sm:$0xff] %vm259, %v255
      %v297 = vld [vmem:[#allocation2 + $0x2] sm:$0x1]
      %v298 = vld [vmem:[#allocation2 + $0x1a] sm:$0x1]
      %v299 = vld [vmem:[#allocation2 + $0x32] sm:$0x1]
      %v300 = vld [vmem:[#allocation2 + $0x4a] sm:$0x1]
      %v301 = vld [vmem:[#allocation2 + $0x62] sm:$0x1]
      %v302 = vld [vmem:[#allocation2 + $0x7a] sm:$0x1]
      %v303 = vld [vmem:[#allocation2 + $0x92] sm:$0x1]
      %v304 = vld [vmem:[#allocation2 + $0xaa] sm:$0x1]
      %v305 = vld [vmem:[#allocation2 + $0xc2] sm:$0x1]
      %v306 = vld [vmem:[#allocation2 + $0xda] sm:$0x1]
      %v307 = vld [vmem:[#allocation2 + $0xf2] sm:$0x1]
      %v308 = vld [vmem:[#allocation2 + $0x10a] sm:$0x1]
      %v309 = vld [vmem:[#allocation2 + $0x122] sm:$0x1]
      %v310 = vld [vmem:[#allocation2 + $0x13a] sm:$0x1]
      %v311 = vld [vmem:[#allocation2 + $0x152] sm:$0x1]
      %v312 = vld [vmem:[#allocation2 + $0x16a] sm:$0x1]
      %v313 = vld [vmem:[#allocation2 + $0x182] sm:$0x1]
      %v314 = vld [vmem:[#allocation2 + $0x19a] sm:$0x1]
      %vm315 = vcmask 57344
      %316 = vst.msk [vmem:[#allocation2] sm:$0x1] %vm315, %v297
      %317 = vst.msk [vmem:[#allocation2 + $0x18] sm:$0x1] %vm315, %v298
      %318 = vst.msk [vmem:[#allocation2 + $0x30] sm:$0x1] %vm315, %v299
      %319 = vst.msk [vmem:[#allocation2 + $0x48] sm:$0x1] %vm315, %v300
      %320 = vst.msk [vmem:[#allocation2 + $0x60] sm:$0x1] %vm315, %v301
      %321 = vst.msk [vmem:[#allocation2 + $0x78] sm:$0x1] %vm315, %v302
      %322 = vst.msk [vmem:[#allocation2 + $0x90] sm:$0x1] %vm315, %v303
      %323 = vst.msk [vmem:[#allocation2 + $0xa8] sm:$0x1] %vm315, %v304
      %324 = vst.msk [vmem:[#allocation2 + $0xc0] sm:$0x1] %vm315, %v305
      %325 = vst.msk [vmem:[#allocation2 + $0xd8] sm:$0x1] %vm315, %v306
      %326 = vst.msk [vmem:[#allocation2 + $0xf0] sm:$0x1] %vm315, %v307
      %327 = vst.msk [vmem:[#allocation2 + $0x108] sm:$0x1] %vm315, %v308
      %328 = vst.msk [vmem:[#allocation2 + $0x120] sm:$0x1] %vm315, %v309
      %329 = vst.msk [vmem:[#allocation2 + $0x138] sm:$0x1] %vm315, %v310
      %330 = vst.msk [vmem:[#allocation2 + $0x150] sm:$0x1] %vm315, %v311
      %331 = vst.msk [vmem:[#allocation2 + $0x168] sm:$0x1] %vm315, %v312
      %332 = vst.msk [vmem:[#allocation2 + $0x180] sm:$0x1] %vm315, %v313
      %333 = vst.msk [vmem:[#allocation2 + $0x198] sm:$0x1] %vm315, %v314
      %v334 = vld [vmem:[#allocation2 + $0xf] sm:$0x1]
      %v335 = vld [vmem:[#allocation2 + $0x27] sm:$0x1]
      %v336 = vld [vmem:[#allocation2 + $0x3f] sm:$0x1]
      %v337 = vld [vmem:[#allocation2 + $0x57] sm:$0x1]
      %v338 = vld [vmem:[#allocation2 + $0x6f] sm:$0x1]
      %v339 = vld [vmem:[#allocation2 + $0x87] sm:$0x1]
      %v340 = vld [vmem:[#allocation2 + $0x9f] sm:$0x1]
      %v341 = vld [vmem:[#allocation2 + $0xb7] sm:$0x1]
      %v342 = vld [vmem:[#allocation2 + $0xcf] sm:$0x1]
      %v343 = vld [vmem:[#allocation2 + $0xe7] sm:$0x1]
      %v344 = vld [vmem:[#allocation2 + $0xff] sm:$0x1]
      %v345 = vld [vmem:[#allocation2 + $0x117] sm:$0x1]
      %v346 = vld [vmem:[#allocation2 + $0x12f] sm:$0x1]
      %v347 = vld [vmem:[#allocation2 + $0x147] sm:$0x1]
      %v348 = vld [vmem:[#allocation2 + $0x15f] sm:$0x1]
      %v349 = vld [vmem:[#allocation2 + $0x177] sm:$0x1]
      %v350 = vld [vmem:[#allocation2 + $0x18f] sm:$0x1]
      %v351 = vld [vmem:[#allocation2 + $0x1a7] sm:$0x1]
      %352 = vst.msk [vmem:[#allocation2 + $0x11] sm:$0x1] %vm315, %v334
      %353 = vst.msk [vmem:[#allocation2 + $0x29] sm:$0x1] %vm315, %v335
      %354 = vst.msk [vmem:[#allocation2 + $0x41] sm:$0x1] %vm315, %v336
      %355 = vst.msk [vmem:[#allocation2 + $0x59] sm:$0x1] %vm315, %v337
      %356 = vst.msk [vmem:[#allocation2 + $0x71] sm:$0x1] %vm315, %v338
      %357 = vst.msk [vmem:[#allocation2 + $0x89] sm:$0x1] %vm315, %v339
      %358 = vst.msk [vmem:[#allocation2 + $0xa1] sm:$0x1] %vm315, %v340
      %359 = vst.msk [vmem:[#allocation2 + $0xb9] sm:$0x1] %vm315, %v341
      %360 = vst.msk [vmem:[#allocation2 + $0xd1] sm:$0x1] %vm315, %v342
      %361 = vst.msk [vmem:[#allocation2 + $0xe9] sm:$0x1] %vm315, %v343
      %362 = vst.msk [vmem:[#allocation2 + $0x101] sm:$0x1] %vm315, %v344
      %363 = vst.msk [vmem:[#allocation2 + $0x119] sm:$0x1] %vm315, %v345
      %364 = vst.msk [vmem:[#allocation2 + $0x131] sm:$0x1] %vm315, %v346
      %365 = vst.msk [vmem:[#allocation2 + $0x149] sm:$0x1] %vm315, %v347
      %366 = vst.msk [vmem:[#allocation2 + $0x161] sm:$0x1] %vm315, %v348
      %367 = vst.msk [vmem:[#allocation2 + $0x179] sm:$0x1] %vm315, %v349
      %368 = vst.msk [vmem:[#allocation2 + $0x191] sm:$0x1] %vm315, %v350
      %369 = vst.msk [vmem:[#allocation2 + $0x1a9] sm:$0x1] %vm315, %v351
      %v370 = vld [vmem:[#allocation2] sm:$0xff]
      %v371 = vld [vmem:[#allocation2 + $0x8] sm:$0xff]
      %v372 = vld [vmem:[#allocation2 + $0x18] sm:$0xff]
      %v373 = vld [vmem:[#allocation2 + $0x20] sm:$0xff]
      %v374 = vld [vmem:[#allocation2 + $0x30] sm:$0xff]
      %v375 = vld [vmem:[#allocation2 + $0x38] sm:$0xff]
      %v376 = vld [vmem:[#allocation2 + $0x48] sm:$0xff]
      %v377 = vld [vmem:[#allocation2 + $0x50] sm:$0xff]
      %v378 = vld [vmem:[#allocation2 + $0x60] sm:$0xff]
      %v379 = vld [vmem:[#allocation2 + $0x68] sm:$0xff]
      %v380 = vld [vmem:[#allocation2 + $0x78] sm:$0xff]
      %v381 = vld [vmem:[#allocation2 + $0x80] sm:$0xff]
      %v382 = vld [vmem:[#allocation2 + $0x90] sm:$0xff]
      %v383 = vld [vmem:[#allocation2 + $0x98] sm:$0xff]
      %v384 = vld [vmem:[#allocation2 + $0xa8] sm:$0xff]
      %v385 = vld [vmem:[#allocation2 + $0xb0] sm:$0xff]
      %v386 = vld [vmem:[#allocation2 + $0xc0] sm:$0xff]
      %v387 = vld [vmem:[#allocation2 + $0xc8] sm:$0xff]
      %v388 = vld [vmem:[#allocation2 + $0xd8] sm:$0xff]
      %v389 = vld [vmem:[#allocation2 + $0xe0] sm:$0xff]
      %v390 = vld [vmem:[#allocation2 + $0xf0] sm:$0xff]
      %v391 = vld [vmem:[#allocation2 + $0xf8] sm:$0xff]
      %v392 = vld [vmem:[#allocation2 + $0x108] sm:$0xff]
      %v393 = vld [vmem:[#allocation2 + $0x110] sm:$0xff]
      %v394 = vld [vmem:[#allocation2 + $0x120] sm:$0xff]
      %v395 = vld [vmem:[#allocation2 + $0x128] sm:$0xff]
      %v396 = vld [vmem:[#allocation2 + $0x138] sm:$0xff]
      %v397 = vld [vmem:[#allocation2 + $0x140] sm:$0xff]
      %v398 = vld [vmem:[#allocation2 + $0x150] sm:$0xff]
      %v399 = vld [vmem:[#allocation2 + $0x158] sm:$0xff]
      %v400 = vld [vmem:[#allocation2 + $0x168] sm:$0xff]
      %v401 = vld [vmem:[#allocation2 + $0x170] sm:$0xff]
      %v402 = vld [vmem:[%s258] sm:$0xff]
      %v403 = vld [vmem:[%s258 + $0x8] sm:$0xff]
      %v404 = vld [vmem:[%s258 + $0x18] sm:$0xff]
      %v405 = vld [vmem:[%s258 + $0x20] sm:$0xff]
      %v406 = vld [vmem:[%s258 + $0x30] sm:$0xff]
      %v407 = vld [vmem:[%s258 + $0x38] sm:$0xff]
      %v408 = vld [vmem:[%s258 + $0x48] sm:$0xff]
      %v409 = vld [vmem:[%s258 + $0x50] sm:$0xff]
      %v410 = vld [vmem:[%s258 + $0x60] sm:$0xff]
      %v411 = vld [vmem:[%s258 + $0x68] sm:$0xff]
      %v412 = vld [vmem:[%s258 + $0x78] sm:$0xff]
      %v413 = vld [vmem:[%s258 + $0x80] sm:$0xff]
      %v414 = vld [vmem:[%s258 + $0x90] sm:$0xff]
      %v415 = vld [vmem:[%s258 + $0x98] sm:$0xff]
      %v416 = vld [vmem:[%s258 + $0xa8] sm:$0xff]
      %v417 = vld [vmem:[%s258 + $0xb0] sm:$0xff]
      %v418 = vld [vmem:[%s258 + $0xc0] sm:$0xff]
      %v419 = vld [vmem:[%s258 + $0xc8] sm:$0xff]
      %v420 = vld [vmem:[%s258 + $0xd8] sm:$0xff]
      %v421 = vld [vmem:[%s258 + $0xe0] sm:$0xff]
      %v422 = vld [vmem:[%s258 + $0xf0] sm:$0xff]
      %v423 = vld [vmem:[%s258 + $0xf8] sm:$0xff]
      %v424 = vld [vmem:[%s258 + $0x108] sm:$0xff]
      %v425 = vld [vmem:[%s258 + $0x110] sm:$0xff]
      %v426 = vld [vmem:[%s258 + $0x120] sm:$0xff]
      %v427 = vld [vmem:[%s258 + $0x128] sm:$0xff]
      %v428 = vld [vmem:[%s258 + $0x138] sm:$0xff]
      %v429 = vld [vmem:[%s258 + $0x140] sm:$0xff]
      %v430 = vld [vmem:[%s258 + $0x150] sm:$0xff]
      %v431 = vld [vmem:[%s258 + $0x158] sm:$0xff]
      %v432 = vld [vmem:[%s258 + $0x168] sm:$0xff]
      %v433 = vld [vmem:[%s258 + $0x170] sm:$0xff]
      %s434 = scalar_lea.vmem [#allocation2], 48
      %v435 = vld [vmem:[%s434] sm:$0xff]
      %v436 = vld [vmem:[%s434 + $0x8] sm:$0xff]
      %v437 = vld [vmem:[%s434 + $0x18] sm:$0xff]
      %v438 = vld [vmem:[%s434 + $0x20] sm:$0xff]
      %v439 = vld [vmem:[%s434 + $0x30] sm:$0xff]
      %v440 = vld [vmem:[%s434 + $0x38] sm:$0xff]
      %v441 = vld [vmem:[%s434 + $0x48] sm:$0xff]
      %v442 = vld [vmem:[%s434 + $0x50] sm:$0xff]
      %v443 = vld [vmem:[%s434 + $0x60] sm:$0xff]
      %v444 = vld [vmem:[%s434 + $0x68] sm:$0xff]
      %v445 = vld [vmem:[%s434 + $0x78] sm:$0xff]
      %v446 = vld [vmem:[%s434 + $0x80] sm:$0xff]
      %v447 = vld [vmem:[%s434 + $0x90] sm:$0xff]
      %v448 = vld [vmem:[%s434 + $0x98] sm:$0xff]
      %v449 = vld [vmem:[%s434 + $0xa8] sm:$0xff]
      %v450 = vld [vmem:[%s434 + $0xb0] sm:$0xff]
      %v451 = vld [vmem:[%s434 + $0xc0] sm:$0xff]
      %v452 = vld [vmem:[%s434 + $0xc8] sm:$0xff]
      %v453 = vld [vmem:[%s434 + $0xd8] sm:$0xff]
      %v454 = vld [vmem:[%s434 + $0xe0] sm:$0xff]
      %v455 = vld [vmem:[%s434 + $0xf0] sm:$0xff]
      %v456 = vld [vmem:[%s434 + $0xf8] sm:$0xff]
      %v457 = vld [vmem:[%s434 + $0x108] sm:$0xff]
      %v458 = vld [vmem:[%s434 + $0x110] sm:$0xff]
      %v459 = vld [vmem:[%s434 + $0x120] sm:$0xff]
      %v460 = vld [vmem:[%s434 + $0x128] sm:$0xff]
      %v461 = vld [vmem:[%s434 + $0x138] sm:$0xff]
      %v462 = vld [vmem:[%s434 + $0x140] sm:$0xff]
      %v463 = vld [vmem:[%s434 + $0x150] sm:$0xff]
      %v464 = vld [vmem:[%s434 + $0x158] sm:$0xff]
      %v465 = vld [vmem:[%s434 + $0x168] sm:$0xff]
      %v466 = vld [vmem:[%s434 + $0x170] sm:$0xff]
      %499 = vrot.lane.b32.xlu0 %v402, 8
      %v500 = vpop.permute.xlu0 %499
      %501 = vrot.lane.b32.xlu0 %v403, 8
      %v502 = vpop.permute.xlu0 %501
      %503 = vrot.lane.b32.xlu0 %v404, 8
      %v504 = vpop.permute.xlu0 %503
      %505 = vrot.lane.b32.xlu0 %v405, 8
      %v506 = vpop.permute.xlu0 %505
      %507 = vrot.lane.b32.xlu0 %v406, 8
      %v508 = vpop.permute.xlu0 %507
      %509 = vrot.lane.b32.xlu0 %v407, 8
      %v510 = vpop.permute.xlu0 %509
      %511 = vrot.lane.b32.xlu0 %v408, 8
      %v512 = vpop.permute.xlu0 %511
      %513 = vrot.lane.b32.xlu0 %v409, 8
      %v514 = vpop.permute.xlu0 %513
      %515 = vrot.lane.b32.xlu0 %v410, 8
      %v516 = vpop.permute.xlu0 %515
      %517 = vrot.lane.b32.xlu0 %v411, 8
      %v518 = vpop.permute.xlu0 %517
      %519 = vrot.lane.b32.xlu0 %v412, 8
      %v520 = vpop.permute.xlu0 %519
      %521 = vrot.lane.b32.xlu0 %v413, 8
      %v522 = vpop.permute.xlu0 %521
      %523 = vrot.lane.b32.xlu0 %v414, 8
      %v524 = vpop.permute.xlu0 %523
      %525 = vrot.lane.b32.xlu0 %v415, 8
      %v526 = vpop.permute.xlu0 %525
      %527 = vrot.lane.b32.xlu0 %v416, 8
      %v528 = vpop.permute.xlu0 %527
      %529 = vrot.lane.b32.xlu0 %v417, 8
      %v530 = vpop.permute.xlu0 %529
      %531 = vrot.lane.b32.xlu0 %v418, 8
      %v532 = vpop.permute.xlu0 %531
      %533 = vrot.lane.b32.xlu0 %v419, 8
      %v534 = vpop.permute.xlu0 %533
      %535 = vrot.lane.b32.xlu0 %v420, 8
      %v536 = vpop.permute.xlu0 %535
      %537 = vrot.lane.b32.xlu0 %v421, 8
      %v538 = vpop.permute.xlu0 %537
      %539 = vrot.lane.b32.xlu0 %v422, 8
      %v540 = vpop.permute.xlu0 %539
      %541 = vrot.lane.b32.xlu0 %v423, 8
      %v542 = vpop.permute.xlu0 %541
      %543 = vrot.lane.b32.xlu0 %v424, 8
      %v544 = vpop.permute.xlu0 %543
      %545 = vrot.lane.b32.xlu0 %v425, 8
      %v546 = vpop.permute.xlu0 %545
      %547 = vrot.lane.b32.xlu0 %v426, 8
      %v548 = vpop.permute.xlu0 %547
      %549 = vrot.lane.b32.xlu0 %v427, 8
      %v550 = vpop.permute.xlu0 %549
      %551 = vrot.lane.b32.xlu0 %v428, 8
      %v552 = vpop.permute.xlu0 %551
      %553 = vrot.lane.b32.xlu0 %v429, 8
      %v554 = vpop.permute.xlu0 %553
      %555 = vrot.lane.b32.xlu0 %v430, 8
      %v556 = vpop.permute.xlu0 %555
      %557 = vrot.lane.b32.xlu0 %v431, 8
      %v558 = vpop.permute.xlu0 %557
      %559 = vrot.lane.b32.xlu0 %v432, 8
      %v560 = vpop.permute.xlu0 %559
      %561 = vrot.lane.b32.xlu0 %v433, 8
      %v562 = vpop.permute.xlu0 %561
      %627 = vrot.lane.b32.xlu0 %v435, 16
      %v628 = vpop.permute.xlu0 %627
      %629 = vrot.lane.b32.xlu0 %v436, 16
      %v630 = vpop.permute.xlu0 %629
      %631 = vrot.lane.b32.xlu0 %v437, 16
      %v632 = vpop.permute.xlu0 %631
      %633 = vrot.lane.b32.xlu0 %v438, 16
      %v634 = vpop.permute.xlu0 %633
      %635 = vrot.lane.b32.xlu0 %v439, 16
      %v636 = vpop.permute.xlu0 %635
      %637 = vrot.lane.b32.xlu0 %v440, 16
      %v638 = vpop.permute.xlu0 %637
      %639 = vrot.lane.b32.xlu0 %v441, 16
      %v640 = vpop.permute.xlu0 %639
      %641 = vrot.lane.b32.xlu0 %v442, 16
      %v642 = vpop.permute.xlu0 %641
      %643 = vrot.lane.b32.xlu0 %v443, 16
      %v644 = vpop.permute.xlu0 %643
      %645 = vrot.lane.b32.xlu0 %v444, 16
      %v646 = vpop.permute.xlu0 %645
      %647 = vrot.lane.b32.xlu0 %v445, 16
      %v648 = vpop.permute.xlu0 %647
      %649 = vrot.lane.b32.xlu0 %v446, 16
      %v650 = vpop.permute.xlu0 %649
      %651 = vrot.lane.b32.xlu0 %v447, 16
      %v652 = vpop.permute.xlu0 %651
      %653 = vrot.lane.b32.xlu0 %v448, 16
      %v654 = vpop.permute.xlu0 %653
      %655 = vrot.lane.b32.xlu0 %v449, 16
      %v656 = vpop.permute.xlu0 %655
      %657 = vrot.lane.b32.xlu0 %v450, 16
      %v658 = vpop.permute.xlu0 %657
      %659 = vrot.lane.b32.xlu0 %v451, 16
      %v660 = vpop.permute.xlu0 %659
      %661 = vrot.lane.b32.xlu0 %v452, 16
      %v662 = vpop.permute.xlu0 %661
      %663 = vrot.lane.b32.xlu0 %v453, 16
      %v664 = vpop.permute.xlu0 %663
      %665 = vrot.lane.b32.xlu0 %v454, 16
      %v666 = vpop.permute.xlu0 %665
      %667 = vrot.lane.b32.xlu0 %v455, 16
      %v668 = vpop.permute.xlu0 %667
      %669 = vrot.lane.b32.xlu0 %v456, 16
      %v670 = vpop.permute.xlu0 %669
      %671 = vrot.lane.b32.xlu0 %v457, 16
      %v672 = vpop.permute.xlu0 %671
      %673 = vrot.lane.b32.xlu0 %v458, 16
      %v674 = vpop.permute.xlu0 %673
      %675 = vrot.lane.b32.xlu0 %v459, 16
      %v676 = vpop.permute.xlu0 %675
      %677 = vrot.lane.b32.xlu0 %v460, 16
      %v678 = vpop.permute.xlu0 %677
      %679 = vrot.lane.b32.xlu0 %v461, 16
      %v680 = vpop.permute.xlu0 %679
      %681 = vrot.lane.b32.xlu0 %v462, 16
      %v682 = vpop.permute.xlu0 %681
      %683 = vrot.lane.b32.xlu0 %v463, 16
      %v684 = vpop.permute.xlu0 %683
      %685 = vrot.lane.b32.xlu0 %v464, 16
      %v686 = vpop.permute.xlu0 %685
      %687 = vrot.lane.b32.xlu0 %v465, 16
      %v688 = vpop.permute.xlu0 %687
      %689 = vrot.lane.b32.xlu0 %v466, 16
      %v690 = vpop.permute.xlu0 %689
      %v723 = vsel %vm259, %v370, %v500
      %v724 = vsel %vm259, %v371, %v502
      %v725 = vsel %vm259, %v372, %v504
      %v726 = vsel %vm259, %v373, %v506
      %v727 = vsel %vm259, %v374, %v508
      %v728 = vsel %vm259, %v375, %v510
      %v729 = vsel %vm259, %v376, %v512
      %v730 = vsel %vm259, %v377, %v514
      %v731 = vsel %vm259, %v378, %v516
      %v732 = vsel %vm259, %v379, %v518
      %v733 = vsel %vm259, %v380, %v520
      %v734 = vsel %vm259, %v381, %v522
      %v735 = vsel %vm259, %v382, %v524
      %v736 = vsel %vm259, %v383, %v526
      %v737 = vsel %vm259, %v384, %v528
      %v738 = vsel %vm259, %v385, %v530
      %v739 = vsel %vm259, %v386, %v532
      %v740 = vsel %vm259, %v387, %v534
      %v741 = vsel %vm259, %v388, %v536
      %v742 = vsel %vm259, %v389, %v538
      %v743 = vsel %vm259, %v390, %v540
      %v744 = vsel %vm259, %v391, %v542
      %v745 = vsel %vm259, %v392, %v544
      %v746 = vsel %vm259, %v393, %v546
      %v747 = vsel %vm259, %v394, %v548
      %v748 = vsel %vm259, %v395, %v550
      %v749 = vsel %vm259, %v396, %v552
      %v750 = vsel %vm259, %v397, %v554
      %v751 = vsel %vm259, %v398, %v556
      %v752 = vsel %vm259, %v399, %v558
      %v753 = vsel %vm259, %v400, %v560
      %v754 = vsel %vm259, %v401, %v562
      %vm755 = vcmask 130048
      %v756 = vsel %vm755, %v723, %v628
      %v757 = vsel %vm755, %v724, %v630
      %v758 = vsel %vm755, %v725, %v632
      %v759 = vsel %vm755, %v726, %v634
      %v760 = vsel %vm755, %v727, %v636
      %v761 = vsel %vm755, %v728, %v638
      %v762 = vsel %vm755, %v729, %v640
      %v763 = vsel %vm755, %v730, %v642
      %v764 = vsel %vm755, %v731, %v644
      %v765 = vsel %vm755, %v732, %v646
      %v766 = vsel %vm755, %v733, %v648
      %v767 = vsel %vm755, %v734, %v650
      %v768 = vsel %vm755, %v735, %v652
      %v769 = vsel %vm755, %v736, %v654
      %v770 = vsel %vm755, %v737, %v656
      %v771 = vsel %vm755, %v738, %v658
      %v772 = vsel %vm755, %v739, %v660
      %v773 = vsel %vm755, %v740, %v662
      %v774 = vsel %vm755, %v741, %v664
      %v775 = vsel %vm755, %v742, %v666
      %v776 = vsel %vm755, %v743, %v668
      %v777 = vsel %vm755, %v744, %v670
      %v778 = vsel %vm755, %v745, %v672
      %v779 = vsel %vm755, %v746, %v674
      %v780 = vsel %vm755, %v747, %v676
      %v781 = vsel %vm755, %v748, %v678
      %v782 = vsel %vm755, %v749, %v680
      %v783 = vsel %vm755, %v750, %v682
      %v784 = vsel %vm755, %v751, %v684
      %v785 = vsel %vm755, %v752, %v686
      %v786 = vsel %vm755, %v753, %v688
      %v787 = vsel %vm755, %v754, %v690
      %v788 = vpack.c.bf16 %v757, %v756
      %v789 = vpack.c.bf16 %v759, %v758
      %v790 = vpack.c.bf16 %v761, %v760
      %v791 = vpack.c.bf16 %v763, %v762
      %v792 = vpack.c.bf16 %v765, %v764
      %v793 = vpack.c.bf16 %v767, %v766
      %v794 = vpack.c.bf16 %v769, %v768
      %v795 = vpack.c.bf16 %v771, %v770
      %v796 = vpack.c.bf16 %v773, %v772
      %v797 = vpack.c.bf16 %v775, %v774
      %v798 = vpack.c.bf16 %v777, %v776
      %v799 = vpack.c.bf16 %v779, %v778
      %v800 = vpack.c.bf16 %v781, %v780
      %v801 = vpack.c.bf16 %v783, %v782
      %v802 = vpack.c.bf16 %v785, %v784
      %v803 = vpack.c.bf16 %v787, %v786
      %v804 = vld [vmem:[%s1] sm:$0xf]
      %v805 = vld [vmem:[%s1 + $0x4] sm:$0xf]
      %v806 = vld [vmem:[%s1 + $0x8] sm:$0xf]
      %v807 = vld [vmem:[#allocation2 + $0x1] sm:$0xff]
      %v808 = vld [vmem:[#allocation2 + $0x9] sm:$0xff]
      %v809 = vld [vmem:[#allocation2 + $0x19] sm:$0xff]
      %v810 = vld [vmem:[#allocation2 + $0x21] sm:$0xff]
      %v811 = vld [vmem:[#allocation2 + $0x31] sm:$0xff]
      %v812 = vld [vmem:[#allocation2 + $0x39] sm:$0xff]
      %v813 = vld [vmem:[#allocation2 + $0x49] sm:$0xff]
      %v814 = vld [vmem:[#allocation2 + $0x51] sm:$0xff]
      %v815 = vld [vmem:[#allocation2 + $0x61] sm:$0xff]
      %v816 = vld [vmem:[#allocation2 + $0x69] sm:$0xff]
      %v817 = vld [vmem:[#allocation2 + $0x79] sm:$0xff]
      %v818 = vld [vmem:[#allocation2 + $0x81] sm:$0xff]
      %v819 = vld [vmem:[#allocation2 + $0x91] sm:$0xff]
      %v820 = vld [vmem:[#allocation2 + $0x99] sm:$0xff]
      %v821 = vld [vmem:[#allocation2 + $0xa9] sm:$0xff]
      %v822 = vld [vmem:[#allocation2 + $0xb1] sm:$0xff]
      %v823 = vld [vmem:[#allocation2 + $0xc1] sm:$0xff]
      %v824 = vld [vmem:[#allocation2 + $0xc9] sm:$0xff]
      %v825 = vld [vmem:[#allocation2 + $0xd9] sm:$0xff]
      %v826 = vld [vmem:[#allocation2 + $0xe1] sm:$0xff]
      %v827 = vld [vmem:[#allocation2 + $0xf1] sm:$0xff]
      %v828 = vld [vmem:[#allocation2 + $0xf9] sm:$0xff]
      %v829 = vld [vmem:[#allocation2 + $0x109] sm:$0xff]
      %v830 = vld [vmem:[#allocation2 + $0x111] sm:$0xff]
      %v831 = vld [vmem:[#allocation2 + $0x121] sm:$0xff]
      %v832 = vld [vmem:[#allocation2 + $0x129] sm:$0xff]
      %v833 = vld [vmem:[#allocation2 + $0x139] sm:$0xff]
      %v834 = vld [vmem:[#allocation2 + $0x141] sm:$0xff]
      %v835 = vld [vmem:[#allocation2 + $0x151] sm:$0xff]
      %v836 = vld [vmem:[#allocation2 + $0x159] sm:$0xff]
      %v837 = vld [vmem:[#allocation2 + $0x169] sm:$0xff]
      %v838 = vld [vmem:[#allocation2 + $0x171] sm:$0xff]
      %v839 = vld [vmem:[%s258 + $0x1] sm:$0xff]
      %v840 = vld [vmem:[%s258 + $0x9] sm:$0xff]
      %v841 = vld [vmem:[%s258 + $0x19] sm:$0xff]
      %v842 = vld [vmem:[%s258 + $0x21] sm:$0xff]
      %v843 = vld [vmem:[%s258 + $0x31] sm:$0xff]
      %v844 = vld [vmem:[%s258 + $0x39] sm:$0xff]
      %v845 = vld [vmem:[%s258 + $0x49] sm:$0xff]
      %v846 = vld [vmem:[%s258 + $0x51] sm:$0xff]
      %v847 = vld [vmem:[%s258 + $0x61] sm:$0xff]
      %v848 = vld [vmem:[%s258 + $0x69] sm:$0xff]
      %v849 = vld [vmem:[%s258 + $0x79] sm:$0xff]
      %v850 = vld [vmem:[%s258 + $0x81] sm:$0xff]
      %v851 = vld [vmem:[%s258 + $0x91] sm:$0xff]
      %v852 = vld [vmem:[%s258 + $0x99] sm:$0xff]
      %v853 = vld [vmem:[%s258 + $0xa9] sm:$0xff]
      %v854 = vld [vmem:[%s258 + $0xb1] sm:$0xff]
      %v855 = vld [vmem:[%s258 + $0xc1] sm:$0xff]
      %v856 = vld [vmem:[%s258 + $0xc9] sm:$0xff]
      %v857 = vld [vmem:[%s258 + $0xd9] sm:$0xff]
      %v858 = vld [vmem:[%s258 + $0xe1] sm:$0xff]
      %v859 = vld [vmem:[%s258 + $0xf1] sm:$0xff]
      %v860 = vld [vmem:[%s258 + $0xf9] sm:$0xff]
      %v861 = vld [vmem:[%s258 + $0x109] sm:$0xff]
      %v862 = vld [vmem:[%s258 + $0x111] sm:$0xff]
      %v863 = vld [vmem:[%s258 + $0x121] sm:$0xff]
      %v864 = vld [vmem:[%s258 + $0x129] sm:$0xff]
      %v865 = vld [vmem:[%s258 + $0x139] sm:$0xff]
      %v866 = vld [vmem:[%s258 + $0x141] sm:$0xff]
      %v867 = vld [vmem:[%s258 + $0x151] sm:$0xff]
      %v868 = vld [vmem:[%s258 + $0x159] sm:$0xff]
      %v869 = vld [vmem:[%s258 + $0x169] sm:$0xff]
      %v870 = vld [vmem:[%s258 + $0x171] sm:$0xff]
      %v871 = vld [vmem:[%s434 + $0x1] sm:$0xff]
      %v872 = vld [vmem:[%s434 + $0x9] sm:$0xff]
      %v873 = vld [vmem:[%s434 + $0x19] sm:$0xff]
      %v874 = vld [vmem:[%s434 + $0x21] sm:$0xff]
      %v875 = vld [vmem:[%s434 + $0x31] sm:$0xff]
      %v876 = vld [vmem:[%s434 + $0x39] sm:$0xff]
      %v877 = vld [vmem:[%s434 + $0x49] sm:$0xff]
      %v878 = vld [vmem:[%s434 + $0x51] sm:$0xff]
      %v879 = vld [vmem:[%s434 + $0x61] sm:$0xff]
      %v880 = vld [vmem:[%s434 + $0x69] sm:$0xff]
      %v881 = vld [vmem:[%s434 + $0x79] sm:$0xff]
      %v882 = vld [vmem:[%s434 + $0x81] sm:$0xff]
      %v883 = vld [vmem:[%s434 + $0x91] sm:$0xff]
      %v884 = vld [vmem:[%s434 + $0x99] sm:$0xff]
      %v885 = vld [vmem:[%s434 + $0xa9] sm:$0xff]
      %v886 = vld [vmem:[%s434 + $0xb1] sm:$0xff]
      %v887 = vld [vmem:[%s434 + $0xc1] sm:$0xff]
      %v888 = vld [vmem:[%s434 + $0xc9] sm:$0xff]
      %v889 = vld [vmem:[%s434 + $0xd9] sm:$0xff]
      %v890 = vld [vmem:[%s434 + $0xe1] sm:$0xff]
      %v891 = vld [vmem:[%s434 + $0xf1] sm:$0xff]
      %v892 = vld [vmem:[%s434 + $0xf9] sm:$0xff]
      %v893 = vld [vmem:[%s434 + $0x109] sm:$0xff]
      %v894 = vld [vmem:[%s434 + $0x111] sm:$0xff]
      %v895 = vld [vmem:[%s434 + $0x121] sm:$0xff]
      %v896 = vld [vmem:[%s434 + $0x129] sm:$0xff]
      %v897 = vld [vmem:[%s434 + $0x139] sm:$0xff]
      %v898 = vld [vmem:[%s434 + $0x141] sm:$0xff]
      %v899 = vld [vmem:[%s434 + $0x151] sm:$0xff]
      %v900 = vld [vmem:[%s434 + $0x159] sm:$0xff]
      %v901 = vld [vmem:[%s434 + $0x169] sm:$0xff]
      %v902 = vld [vmem:[%s434 + $0x171] sm:$0xff]
      %935 = vrot.lane.b32.xlu0 %v839, 8
      %v936 = vpop.permute.xlu0 %935
      %937 = vrot.lane.b32.xlu0 %v840, 8
      %v938 = vpop.permute.xlu0 %937
      %939 = vrot.lane.b32.xlu0 %v841, 8
      %v940 = vpop.permute.xlu0 %939
      %941 = vrot.lane.b32.xlu0 %v842, 8
      %v942 = vpop.permute.xlu0 %941
      %943 = vrot.lane.b32.xlu0 %v843, 8
      %v944 = vpop.permute.xlu0 %943
      %945 = vrot.lane.b32.xlu0 %v844, 8
      %v946 = vpop.permute.xlu0 %945
      %947 = vrot.lane.b32.xlu0 %v845, 8
      %v948 = vpop.permute.xlu0 %947
      %949 = vrot.lane.b32.xlu0 %v846, 8
      %v950 = vpop.permute.xlu0 %949
      %951 = vrot.lane.b32.xlu0 %v847, 8
      %v952 = vpop.permute.xlu0 %951
      %953 = vrot.lane.b32.xlu0 %v848, 8
      %v954 = vpop.permute.xlu0 %953
      %955 = vrot.lane.b32.xlu0 %v849, 8
      %v956 = vpop.permute.xlu0 %955
      %957 = vrot.lane.b32.xlu0 %v850, 8
      %v958 = vpop.permute.xlu0 %957
      %959 = vrot.lane.b32.xlu0 %v851, 8
      %v960 = vpop.permute.xlu0 %959
      %961 = vrot.lane.b32.xlu0 %v852, 8
      %v962 = vpop.permute.xlu0 %961
      %963 = vrot.lane.b32.xlu0 %v853, 8
      %v964 = vpop.permute.xlu0 %963
      %965 = vrot.lane.b32.xlu0 %v854, 8
      %v966 = vpop.permute.xlu0 %965
      %967 = vrot.lane.b32.xlu0 %v855, 8
      %v968 = vpop.permute.xlu0 %967
      %969 = vrot.lane.b32.xlu0 %v856, 8
      %v970 = vpop.permute.xlu0 %969
      %971 = vrot.lane.b32.xlu0 %v857, 8
      %v972 = vpop.permute.xlu0 %971
      %973 = vrot.lane.b32.xlu0 %v858, 8
      %v974 = vpop.permute.xlu0 %973
      %975 = vrot.lane.b32.xlu0 %v859, 8
      %v976 = vpop.permute.xlu0 %975
      %977 = vrot.lane.b32.xlu0 %v860, 8
      %v978 = vpop.permute.xlu0 %977
      %979 = vrot.lane.b32.xlu0 %v861, 8
      %v980 = vpop.permute.xlu0 %979
      %981 = vrot.lane.b32.xlu0 %v862, 8
      %v982 = vpop.permute.xlu0 %981
      %983 = vrot.lane.b32.xlu0 %v863, 8
      %v984 = vpop.permute.xlu0 %983
      %985 = vrot.lane.b32.xlu0 %v864, 8
      %v986 = vpop.permute.xlu0 %985
      %987 = vrot.lane.b32.xlu0 %v865, 8
      %v988 = vpop.permute.xlu0 %987
      %989 = vrot.lane.b32.xlu0 %v866, 8
      %v990 = vpop.permute.xlu0 %989
      %991 = vrot.lane.b32.xlu0 %v867, 8
      %v992 = vpop.permute.xlu0 %991
      %993 = vrot.lane.b32.xlu0 %v868, 8
      %v994 = vpop.permute.xlu0 %993
      %995 = vrot.lane.b32.xlu0 %v869, 8
      %v996 = vpop.permute.xlu0 %995
      %997 = vrot.lane.b32.xlu0 %v870, 8
      %v998 = vpop.permute.xlu0 %997
      %1063 = vrot.lane.b32.xlu0 %v871, 16
      %v1064 = vpop.permute.xlu0 %1063
      %1065 = vrot.lane.b32.xlu0 %v872, 16
      %v1066 = vpop.permute.xlu0 %1065
      %1067 = vrot.lane.b32.xlu0 %v873, 16
      %v1068 = vpop.permute.xlu0 %1067
      %1069 = vrot.lane.b32.xlu0 %v874, 16
      %v1070 = vpop.permute.xlu0 %1069
      %1071 = vrot.lane.b32.xlu0 %v875, 16
      %v1072 = vpop.permute.xlu0 %1071
      %1073 = vrot.lane.b32.xlu0 %v876, 16
      %v1074 = vpop.permute.xlu0 %1073
      %1075 = vrot.lane.b32.xlu0 %v877, 16
      %v1076 = vpop.permute.xlu0 %1075
      %1077 = vrot.lane.b32.xlu0 %v878, 16
      %v1078 = vpop.permute.xlu0 %1077
      %1079 = vrot.lane.b32.xlu0 %v879, 16
      %v1080 = vpop.permute.xlu0 %1079
      %1081 = vrot.lane.b32.xlu0 %v880, 16
      %v1082 = vpop.permute.xlu0 %1081
      %1083 = vrot.lane.b32.xlu0 %v881, 16
      %v1084 = vpop.permute.xlu0 %1083
      %1085 = vrot.lane.b32.xlu0 %v882, 16
      %v1086 = vpop.permute.xlu0 %1085
      %1087 = vrot.lane.b32.xlu0 %v883, 16
      %v1088 = vpop.permute.xlu0 %1087
      %1089 = vrot.lane.b32.xlu0 %v884, 16
      %v1090 = vpop.permute.xlu0 %1089
      %1091 = vrot.lane.b32.xlu0 %v885, 16
      %v1092 = vpop.permute.xlu0 %1091
      %1093 = vrot.lane.b32.xlu0 %v886, 16
      %v1094 = vpop.permute.xlu0 %1093
      %1095 = vrot.lane.b32.xlu0 %v887, 16
      %v1096 = vpop.permute.xlu0 %1095
      %1097 = vrot.lane.b32.xlu0 %v888, 16
      %v1098 = vpop.permute.xlu0 %1097
      %1099 = vrot.lane.b32.xlu0 %v889, 16
      %v1100 = vpop.permute.xlu0 %1099
      %1101 = vrot.lane.b32.xlu0 %v890, 16
      %v1102 = vpop.permute.xlu0 %1101
      %1103 = vrot.lane.b32.xlu0 %v891, 16
      %v1104 = vpop.permute.xlu0 %1103
      %1105 = vrot.lane.b32.xlu0 %v892, 16
      %v1106 = vpop.permute.xlu0 %1105
      %1107 = vrot.lane.b32.xlu0 %v893, 16
      %v1108 = vpop.permute.xlu0 %1107
      %1109 = vrot.lane.b32.xlu0 %v894, 16
      %v1110 = vpop.permute.xlu0 %1109
      %1111 = vrot.lane.b32.xlu0 %v895, 16
      %v1112 = vpop.permute.xlu0 %1111
      %1113 = vrot.lane.b32.xlu0 %v896, 16
      %v1114 = vpop.permute.xlu0 %1113
      %1115 = vrot.lane.b32.xlu0 %v897, 16
      %v1116 = vpop.permute.xlu0 %1115
      %1117 = vrot.lane.b32.xlu0 %v898, 16
      %v1118 = vpop.permute.xlu0 %1117
      %1119 = vrot.lane.b32.xlu0 %v899, 16
      %v1120 = vpop.permute.xlu0 %1119
      %1121 = vrot.lane.b32.xlu0 %v900, 16
      %v1122 = vpop.permute.xlu0 %1121
      %1123 = vrot.lane.b32.xlu0 %v901, 16
      %v1124 = vpop.permute.xlu0 %1123
      %1125 = vrot.lane.b32.xlu0 %v902, 16
      %v1126 = vpop.permute.xlu0 %1125
      %v1159 = vsel %vm259, %v807, %v936
      %v1160 = vsel %vm259, %v808, %v938
      %v1161 = vsel %vm259, %v809, %v940
      %v1162 = vsel %vm259, %v810, %v942
      %v1163 = vsel %vm259, %v811, %v944
      %v1164 = vsel %vm259, %v812, %v946
      %v1165 = vsel %vm259, %v813, %v948
      %v1166 = vsel %vm259, %v814, %v950
      %v1167 = vsel %vm259, %v815, %v952
      %v1168 = vsel %vm259, %v816, %v954
      %v1169 = vsel %vm259, %v817, %v956
      %v1170 = vsel %vm259, %v818, %v958
      %v1171 = vsel %vm259, %v819, %v960
      %v1172 = vsel %vm259, %v820, %v962
      %v1173 = vsel %vm259, %v821, %v964
      %v1174 = vsel %vm259, %v822, %v966
      %v1175 = vsel %vm259, %v823, %v968
      %v1176 = vsel %vm259, %v824, %v970
      %v1177 = vsel %vm259, %v825, %v972
      %v1178 = vsel %vm259, %v826, %v974
      %v1179 = vsel %vm259, %v827, %v976
      %v1180 = vsel %vm259, %v828, %v978
      %v1181 = vsel %vm259, %v829, %v980
      %v1182 = vsel %vm259, %v830, %v982
      %v1183 = vsel %vm259, %v831, %v984
      %v1184 = vsel %vm259, %v832, %v986
      %v1185 = vsel %vm259, %v833, %v988
      %v1186 = vsel %vm259, %v834, %v990
      %v1187 = vsel %vm259, %v835, %v992
      %v1188 = vsel %vm259, %v836, %v994
      %v1189 = vsel %vm259, %v837, %v996
      %v1190 = vsel %vm259, %v838, %v998
      %v1191 = vsel %vm755, %v1159, %v1064
      %v1192 = vsel %vm755, %v1160, %v1066
      %v1193 = vsel %vm755, %v1161, %v1068
      %v1194 = vsel %vm755, %v1162, %v1070
      %v1195 = vsel %vm755, %v1163, %v1072
      %v1196 = vsel %vm755, %v1164, %v1074
      %v1197 = vsel %vm755, %v1165, %v1076
      %v1198 = vsel %vm755, %v1166, %v1078
      %v1199 = vsel %vm755, %v1167, %v1080
      %v1200 = vsel %vm755, %v1168, %v1082
      %v1201 = vsel %vm755, %v1169, %v1084
      %v1202 = vsel %vm755, %v1170, %v1086
      %v1203 = vsel %vm755, %v1171, %v1088
      %v1204 = vsel %vm755, %v1172, %v1090
      %v1205 = vsel %vm755, %v1173, %v1092
      %v1206 = vsel %vm755, %v1174, %v1094
      %v1207 = vsel %vm755, %v1175, %v1096
      %v1208 = vsel %vm755, %v1176, %v1098
      %v1209 = vsel %vm755, %v1177, %v1100
      %v1210 = vsel %vm755, %v1178, %v1102
      %v1211 = vsel %vm755, %v1179, %v1104
      %v1212 = vsel %vm755, %v1180, %v1106
      %v1213 = vsel %vm755, %v1181, %v1108
      %v1214 = vsel %vm755, %v1182, %v1110
      %v1215 = vsel %vm755, %v1183, %v1112
      %v1216 = vsel %vm755, %v1184, %v1114
      %v1217 = vsel %vm755, %v1185, %v1116
      %v1218 = vsel %vm755, %v1186, %v1118
      %v1219 = vsel %vm755, %v1187, %v1120
      %v1220 = vsel %vm755, %v1188, %v1122
      %v1221 = vsel %vm755, %v1189, %v1124
      %v1222 = vsel %vm755, %v1190, %v1126
      %v1223 = vpack.c.bf16 %v1192, %v1191
      %v1224 = vpack.c.bf16 %v1194, %v1193
      %v1225 = vpack.c.bf16 %v1196, %v1195
      %v1226 = vpack.c.bf16 %v1198, %v1197
      %v1227 = vpack.c.bf16 %v1200, %v1199
      %v1228 = vpack.c.bf16 %v1202, %v1201
      %v1229 = vpack.c.bf16 %v1204, %v1203
      %v1230 = vpack.c.bf16 %v1206, %v1205
      %v1231 = vpack.c.bf16 %v1208, %v1207
      %v1232 = vpack.c.bf16 %v1210, %v1209
      %v1233 = vpack.c.bf16 %v1212, %v1211
      %v1234 = vpack.c.bf16 %v1214, %v1213
      %v1235 = vpack.c.bf16 %v1216, %v1215
      %v1236 = vpack.c.bf16 %v1218, %v1217
      %v1237 = vpack.c.bf16 %v1220, %v1219
      %v1238 = vpack.c.bf16 %v1222, %v1221
      %s1239 = scalar_lea.vmem %s1, 12
      %v1240 = vld [vmem:[%s1239] sm:$0xf]
      %v1241 = vld [vmem:[%s1239 + $0x4] sm:$0xf]
      %v1242 = vld [vmem:[%s1239 + $0x8] sm:$0xf]
      %v1246 = vunpack.c.l.b16 %v1240
      %v1247 = vunpack.c.l.b16 %v1241
      %v1248 = vunpack.c.l.b16 %v1242
      %v1249 = vpack.c.b16 %v1247, %v1246
      %v1250 = vpack.c.b16 %v1248, %v1248
      %vm1252 = vcmask 195584
      %v1254 = vsel %vm1252, %v1223, 0
      %v1257 = vsel %vm1252, %v1224, 0
      %v1260 = vsel %vm1252, %v1225, 0
      %v1263 = vsel %vm1252, %v1226, 0
      %v1266 = vsel %vm1252, %v1227, 0
      %v1269 = vsel %vm1252, %v1228, 0
      %v1272 = vsel %vm1252, %v1229, 0
      %v1275 = vsel %vm1252, %v1230, 0
      %v1278 = vsel %vm1252, %v1231, 0
      %v1281 = vsel %vm1252, %v1232, 0
      %v1284 = vsel %vm1252, %v1233, 0
      %v1287 = vsel %vm1252, %v1234, 0
      %v1290 = vsel %vm1252, %v1235, 0
      %v1293 = vsel %vm1252, %v1236, 0
      %v1296 = vsel %vm1252, %v1237, 0
      %v1299 = vsel %vm1252, %v1238, 0
      %vm1301 = vcmask 1043456
      %v1303 = vsel %vm1301, %v1250, 0
      %1305 = vmatpush.bf16.msra.mxu0 0
      %1306 = vmatpush.bf16.msra.mxu0 0
      %1307 = vmatpush.bf16.msra.mxu0 0
      %1308 = vmatpush.bf16.msra.mxu0 0
      %1309 = vmatpush.bf16.msra.mxu0 0
      %1310 = vmatpush.bf16.msra.mxu0 0
      %1311 = vmatpush.bf16.msra.mxu0 %v1303
      %1312 = vmatpush.bf16.msra.mxu0 %v1249
      %1313 = vmatmul.bf16.gmra.mxu0 %v1254
      %v1314 = vpop.f32.mrf.mxu0
      %v1315 = vadd.f32 0.0, %v1314
      %v1316 = vpop.f32.mrf.mxu0
      %v1317 = vadd.f32 0.0, %v1316
      %1318 = vmatmul.bf16.gmra.mxu0 %v1257
      %v1319 = vpop.f32.mrf.mxu0
      %v1320 = vadd.f32 0.0, %v1319
      %v1321 = vpop.f32.mrf.mxu0
      %v1322 = vadd.f32 0.0, %v1321
      %1323 = vmatmul.bf16.gmra.mxu0 %v1260
      %v1324 = vpop.f32.mrf.mxu0
      %v1325 = vadd.f32 0.0, %v1324
      %v1326 = vpop.f32.mrf.mxu0
      %v1327 = vadd.f32 0.0, %v1326
      %1328 = vmatmul.bf16.gmra.mxu0 %v1263
      %v1329 = vpop.f32.mrf.mxu0
      %v1330 = vadd.f32 0.0, %v1329
      %v1331 = vpop.f32.mrf.mxu0
      %v1332 = vadd.f32 0.0, %v1331
      %1333 = vmatmul.bf16.gmra.mxu0 %v1266
      %v1334 = vpop.f32.mrf.mxu0
      %v1335 = vadd.f32 0.0, %v1334
      %v1336 = vpop.f32.mrf.mxu0
      %v1337 = vadd.f32 0.0, %v1336
      %1338 = vmatmul.bf16.gmra.mxu0 %v1269
      %v1339 = vpop.f32.mrf.mxu0
      %v1340 = vadd.f32 0.0, %v1339
      %v1341 = vpop.f32.mrf.mxu0
      %v1342 = vadd.f32 0.0, %v1341
      %1343 = vmatmul.bf16.gmra.mxu0 %v1272
      %v1344 = vpop.f32.mrf.mxu0
      %v1345 = vadd.f32 0.0, %v1344
      %v1346 = vpop.f32.mrf.mxu0
      %v1347 = vadd.f32 0.0, %v1346
      %1348 = vmatmul.bf16.gmra.mxu0 %v1275
      %v1349 = vpop.f32.mrf.mxu0
      %v1350 = vadd.f32 0.0, %v1349
      %v1351 = vpop.f32.mrf.mxu0
      %v1352 = vadd.f32 0.0, %v1351
      %1353 = vmatmul.bf16.gmra.mxu0 %v1278
      %v1354 = vpop.f32.mrf.mxu0
      %v1355 = vadd.f32 0.0, %v1354
      %v1356 = vpop.f32.mrf.mxu0
      %v1357 = vadd.f32 0.0, %v1356
      %1358 = vmatmul.bf16.gmra.mxu0 %v1281
      %v1359 = vpop.f32.mrf.mxu0
      %v1360 = vadd.f32 0.0, %v1359
      %v1361 = vpop.f32.mrf.mxu0
      %v1362 = vadd.f32 0.0, %v1361
      %1363 = vmatmul.bf16.gmra.mxu0 %v1284
      %v1364 = vpop.f32.mrf.mxu0
      %v1365 = vadd.f32 0.0, %v1364
      %v1366 = vpop.f32.mrf.mxu0
      %v1367 = vadd.f32 0.0, %v1366
      %1368 = vmatmul.bf16.gmra.mxu0 %v1287
      %v1369 = vpop.f32.mrf.mxu0
      %v1370 = vadd.f32 0.0, %v1369
      %v1371 = vpop.f32.mrf.mxu0
      %v1372 = vadd.f32 0.0, %v1371
      %1373 = vmatmul.bf16.gmra.mxu0 %v1290
      %v1374 = vpop.f32.mrf.mxu0
      %v1375 = vadd.f32 0.0, %v1374
      %v1376 = vpop.f32.mrf.mxu0
      %v1377 = vadd.f32 0.0, %v1376
      %1378 = vmatmul.bf16.gmra.mxu0 %v1293
      %v1379 = vpop.f32.mrf.mxu0
      %v1380 = vadd.f32 0.0, %v1379
      %v1381 = vpop.f32.mrf.mxu0
      %v1382 = vadd.f32 0.0, %v1381
      %1383 = vmatmul.bf16.gmra.mxu0 %v1296
      %v1384 = vpop.f32.mrf.mxu0
      %v1385 = vadd.f32 0.0, %v1384
      %v1386 = vpop.f32.mrf.mxu0
      %v1387 = vadd.f32 0.0, %v1386
      %1388 = vmatmul.bf16.gmra.mxu0 %v1299
      %v1389 = vpop.f32.mrf.mxu0
      %v1390 = vadd.f32 0.0, %v1389
      %v1391 = vpop.f32.mrf.mxu0
      %v1392 = vadd.f32 0.0, %v1391
      %1393 = vdwg.mxu0
      %v1397 = vunpack.c.l.b16 %v804
      %v1398 = vunpack.c.l.b16 %v805
      %v1399 = vunpack.c.l.b16 %v806
      %v1400 = vpack.c.b16 %v1398, %v1397
      %v1401 = vpack.c.b16 %v1399, %v1399
      %v1404 = vsel %vm1252, %v788, 0
      %v1407 = vsel %vm1252, %v789, 0
      %v1410 = vsel %vm1252, %v790, 0
      %v1413 = vsel %vm1252, %v791, 0
      %v1416 = vsel %vm1252, %v792, 0
      %v1419 = vsel %vm1252, %v793, 0
      %v1422 = vsel %vm1252, %v794, 0
      %v1425 = vsel %vm1252, %v795, 0
      %v1428 = vsel %vm1252, %v796, 0
      %v1431 = vsel %vm1252, %v797, 0
      %v1434 = vsel %vm1252, %v798, 0
      %v1437 = vsel %vm1252, %v799, 0
      %v1440 = vsel %vm1252, %v800, 0
      %v1443 = vsel %vm1252, %v801, 0
      %v1446 = vsel %vm1252, %v802, 0
      %v1449 = vsel %vm1252, %v803, 0
      %v1452 = vsel %vm1301, %v1401, 0
      %1454 = vmatpush.bf16.msra.mxu0 0
      %1455 = vmatpush.bf16.msra.mxu0 0
      %1456 = vmatpush.bf16.msra.mxu0 0
      %1457 = vmatpush.bf16.msra.mxu0 0
      %1458 = vmatpush.bf16.msra.mxu0 0
      %1459 = vmatpush.bf16.msra.mxu0 0
      %1460 = vmatpush.bf16.msra.mxu0 %v1452
      %1461 = vmatpush.bf16.msra.mxu0 %v1400
      %1462 = vmatmul.bf16.gmra.mxu0 %v1404
      %v1463 = vpop.f32.mrf.mxu0
      %v1464 = vadd.f32 %v1315, %v1463
      %v1465 = vpop.f32.mrf.mxu0
      %v1466 = vadd.f32 %v1317, %v1465
      %1467 = vmatmul.bf16.gmra.mxu0 %v1407
      %v1468 = vpop.f32.mrf.mxu0
      %v1469 = vadd.f32 %v1320, %v1468
      %v1470 = vpop.f32.mrf.mxu0
      %v1471 = vadd.f32 %v1322, %v1470
      %1472 = vmatmul.bf16.gmra.mxu0 %v1410
      %v1473 = vpop.f32.mrf.mxu0
      %v1474 = vadd.f32 %v1325, %v1473
      %v1475 = vpop.f32.mrf.mxu0
      %v1476 = vadd.f32 %v1327, %v1475
      %1477 = vmatmul.bf16.gmra.mxu0 %v1413
      %v1478 = vpop.f32.mrf.mxu0
      %v1479 = vadd.f32 %v1330, %v1478
      %v1480 = vpop.f32.mrf.mxu0
      %v1481 = vadd.f32 %v1332, %v1480
      %1482 = vmatmul.bf16.gmra.mxu0 %v1416
      %v1483 = vpop.f32.mrf.mxu0
      %v1484 = vadd.f32 %v1335, %v1483
      %v1485 = vpop.f32.mrf.mxu0
      %v1486 = vadd.f32 %v1337, %v1485
      %1487 = vmatmul.bf16.gmra.mxu0 %v1419
      %v1488 = vpop.f32.mrf.mxu0
      %v1489 = vadd.f32 %v1340, %v1488
      %v1490 = vpop.f32.mrf.mxu0
      %v1491 = vadd.f32 %v1342, %v1490
      %1492 = vmatmul.bf16.gmra.mxu0 %v1422
      %v1493 = vpop.f32.mrf.mxu0
      %v1494 = vadd.f32 %v1345, %v1493
      %v1495 = vpop.f32.mrf.mxu0
      %v1496 = vadd.f32 %v1347, %v1495
      %1497 = vmatmul.bf16.gmra.mxu0 %v1425
      %v1498 = vpop.f32.mrf.mxu0
      %v1499 = vadd.f32 %v1350, %v1498
      %v1500 = vpop.f32.mrf.mxu0
      %v1501 = vadd.f32 %v1352, %v1500
      %1502 = vmatmul.bf16.gmra.mxu0 %v1428
      %v1503 = vpop.f32.mrf.mxu0
      %v1504 = vadd.f32 %v1355, %v1503
      %v1505 = vpop.f32.mrf.mxu0
      %v1506 = vadd.f32 %v1357, %v1505
      %1507 = vmatmul.bf16.gmra.mxu0 %v1431
      %v1508 = vpop.f32.mrf.mxu0
      %v1509 = vadd.f32 %v1360, %v1508
      %v1510 = vpop.f32.mrf.mxu0
      %v1511 = vadd.f32 %v1362, %v1510
      %1512 = vmatmul.bf16.gmra.mxu0 %v1434
      %v1513 = vpop.f32.mrf.mxu0
      %v1514 = vadd.f32 %v1365, %v1513
      %v1515 = vpop.f32.mrf.mxu0
      %v1516 = vadd.f32 %v1367, %v1515
      %1517 = vmatmul.bf16.gmra.mxu0 %v1437
      %v1518 = vpop.f32.mrf.mxu0
      %v1519 = vadd.f32 %v1370, %v1518
      %v1520 = vpop.f32.mrf.mxu0
      %v1521 = vadd.f32 %v1372, %v1520
      %1522 = vmatmul.bf16.gmra.mxu0 %v1440
      %v1523 = vpop.f32.mrf.mxu0
      %v1524 = vadd.f32 %v1375, %v1523
      %v1525 = vpop.f32.mrf.mxu0
      %v1526 = vadd.f32 %v1377, %v1525
      %1527 = vmatmul.bf16.gmra.mxu0 %v1443
      %v1528 = vpop.f32.mrf.mxu0
      %v1529 = vadd.f32 %v1380, %v1528
      %v1530 = vpop.f32.mrf.mxu0
      %v1531 = vadd.f32 %v1382, %v1530
      %1532 = vmatmul.bf16.gmra.mxu0 %v1446
      %v1533 = vpop.f32.mrf.mxu0
      %v1534 = vadd.f32 %v1385, %v1533
      %v1535 = vpop.f32.mrf.mxu0
      %v1536 = vadd.f32 %v1387, %v1535
      %1537 = vmatmul.bf16.gmra.mxu0 %v1449
      %v1538 = vpop.f32.mrf.mxu0
      %v1539 = vadd.f32 %v1390, %v1538
      %v1540 = vpop.f32.mrf.mxu0
      %v1541 = vadd.f32 %v1392, %v1540
      %1542 = vdwg.mxu0
      %v1543 = vld [vmem:[#allocation2 + $0x2] sm:$0xff]
      %v1544 = vld [vmem:[#allocation2 + $0xa] sm:$0xff]
      %v1545 = vld [vmem:[#allocation2 + $0x1a] sm:$0xff]
      %v1546 = vld [vmem:[#allocation2 + $0x22] sm:$0xff]
      %v1547 = vld [vmem:[#allocation2 + $0x32] sm:$0xff]
      %v1548 = vld [vmem:[#allocation2 + $0x3a] sm:$0xff]
      %v1549 = vld [vmem:[#allocation2 + $0x4a] sm:$0xff]
      %v1550 = vld [vmem:[#allocation2 + $0x52] sm:$0xff]
      %v1551 = vld [vmem:[#allocation2 + $0x62] sm:$0xff]
      %v1552 = vld [vmem:[#allocation2 + $0x6a] sm:$0xff]
      %v1553 = vld [vmem:[#allocation2 + $0x7a] sm:$0xff]
      %v1554 = vld [vmem:[#allocation2 + $0x82] sm:$0xff]
      %v1555 = vld [vmem:[#allocation2 + $0x92] sm:$0xff]
      %v1556 = vld [vmem:[#allocation2 + $0x9a] sm:$0xff]
      %v1557 = vld [vmem:[#allocation2 + $0xaa] sm:$0xff]
      %v1558 = vld [vmem:[#allocation2 + $0xb2] sm:$0xff]
      %v1559 = vld [vmem:[#allocation2 + $0xc2] sm:$0xff]
      %v1560 = vld [vmem:[#allocation2 + $0xca] sm:$0xff]
      %v1561 = vld [vmem:[#allocation2 + $0xda] sm:$0xff]
      %v1562 = vld [vmem:[#allocation2 + $0xe2] sm:$0xff]
      %v1563 = vld [vmem:[#allocation2 + $0xf2] sm:$0xff]
      %v1564 = vld [vmem:[#allocation2 + $0xfa] sm:$0xff]
      %v1565 = vld [vmem:[#allocation2 + $0x10a] sm:$0xff]
      %v1566 = vld [vmem:[#allocation2 + $0x112] sm:$0xff]
      %v1567 = vld [vmem:[#allocation2 + $0x122] sm:$0xff]
      %v1568 = vld [vmem:[#allocation2 + $0x12a] sm:$0xff]
      %v1569 = vld [vmem:[#allocation2 + $0x13a] sm:$0xff]
      %v1570 = vld [vmem:[#allocation2 + $0x142] sm:$0xff]
      %v1571 = vld [vmem:[#allocation2 + $0x152] sm:$0xff]
      %v1572 = vld [vmem:[#allocation2 + $0x15a] sm:$0xff]
      %v1573 = vld [vmem:[#allocation2 + $0x16a] sm:$0xff]
      %v1574 = vld [vmem:[#allocation2 + $0x172] sm:$0xff]
      %v1575 = vld [vmem:[%s258 + $0x2] sm:$0xff]
      %v1576 = vld [vmem:[%s258 + $0xa] sm:$0xff]
      %v1577 = vld [vmem:[%s258 + $0x1a] sm:$0xff]
      %v1578 = vld [vmem:[%s258 + $0x22] sm:$0xff]
      %v1579 = vld [vmem:[%s258 + $0x32] sm:$0xff]
      %v1580 = vld [vmem:[%s258 + $0x3a] sm:$0xff]
      %v1581 = vld [vmem:[%s258 + $0x4a] sm:$0xff]
      %v1582 = vld [vmem:[%s258 + $0x52] sm:$0xff]
      %v1583 = vld [vmem:[%s258 + $0x62] sm:$0xff]
      %v1584 = vld [vmem:[%s258 + $0x6a] sm:$0xff]
      %v1585 = vld [vmem:[%s258 + $0x7a] sm:$0xff]
      %v1586 = vld [vmem:[%s258 + $0x82] sm:$0xff]
      %v1587 = vld [vmem:[%s258 + $0x92] sm:$0xff]
      %v1588 = vld [vmem:[%s258 + $0x9a] sm:$0xff]
      %v1589 = vld [vmem:[%s258 + $0xaa] sm:$0xff]
      %v1590 = vld [vmem:[%s258 + $0xb2] sm:$0xff]
      %v1591 = vld [vmem:[%s258 + $0xc2] sm:$0xff]
      %v1592 = vld [vmem:[%s258 + $0xca] sm:$0xff]
      %v1593 = vld [vmem:[%s258 + $0xda] sm:$0xff]
      %v1594 = vld [vmem:[%s258 + $0xe2] sm:$0xff]
      %v1595 = vld [vmem:[%s258 + $0xf2] sm:$0xff]
      %v1596 = vld [vmem:[%s258 + $0xfa] sm:$0xff]
      %v1597 = vld [vmem:[%s258 + $0x10a] sm:$0xff]
      %v1598 = vld [vmem:[%s258 + $0x112] sm:$0xff]
      %v1599 = vld [vmem:[%s258 + $0x122] sm:$0xff]
      %v1600 = vld [vmem:[%s258 + $0x12a] sm:$0xff]
      %v1601 = vld [vmem:[%s258 + $0x13a] sm:$0xff]
      %v1602 = vld [vmem:[%s258 + $0x142] sm:$0xff]
      %v1603 = vld [vmem:[%s258 + $0x152] sm:$0xff]
      %v1604 = vld [vmem:[%s258 + $0x15a] sm:$0xff]
      %v1605 = vld [vmem:[%s258 + $0x16a] sm:$0xff]
      %v1606 = vld [vmem:[%s258 + $0x172] sm:$0xff]
      %v1607 = vld [vmem:[%s434 + $0x2] sm:$0xff]
      %v1608 = vld [vmem:[%s434 + $0xa] sm:$0xff]
      %v1609 = vld [vmem:[%s434 + $0x1a] sm:$0xff]
      %v1610 = vld [vmem:[%s434 + $0x22] sm:$0xff]
      %v1611 = vld [vmem:[%s434 + $0x32] sm:$0xff]
      %v1612 = vld [vmem:[%s434 + $0x3a] sm:$0xff]
      %v1613 = vld [vmem:[%s434 + $0x4a] sm:$0xff]
      %v1614 = vld [vmem:[%s434 + $0x52] sm:$0xff]
      %v1615 = vld [vmem:[%s434 + $0x62] sm:$0xff]
      %v1616 = vld [vmem:[%s434 + $0x6a] sm:$0xff]
      %v1617 = vld [vmem:[%s434 + $0x7a] sm:$0xff]
      %v1618 = vld [vmem:[%s434 + $0x82] sm:$0xff]
      %v1619 = vld [vmem:[%s434 + $0x92] sm:$0xff]
      %v1620 = vld [vmem:[%s434 + $0x9a] sm:$0xff]
      %v1621 = vld [vmem:[%s434 + $0xaa] sm:$0xff]
      %v1622 = vld [vmem:[%s434 + $0xb2] sm:$0xff]
      %v1623 = vld [vmem:[%s434 + $0xc2] sm:$0xff]
      %v1624 = vld [vmem:[%s434 + $0xca] sm:$0xff]
      %v1625 = vld [vmem:[%s434 + $0xda] sm:$0xff]
      %v1626 = vld [vmem:[%s434 + $0xe2] sm:$0xff]
      %v1627 = vld [vmem:[%s434 + $0xf2] sm:$0xff]
      %v1628 = vld [vmem:[%s434 + $0xfa] sm:$0xff]
      %v1629 = vld [vmem:[%s434 + $0x10a] sm:$0xff]
      %v1630 = vld [vmem:[%s434 + $0x112] sm:$0xff]
      %v1631 = vld [vmem:[%s434 + $0x122] sm:$0xff]
      %v1632 = vld [vmem:[%s434 + $0x12a] sm:$0xff]
      %v1633 = vld [vmem:[%s434 + $0x13a] sm:$0xff]
      %v1634 = vld [vmem:[%s434 + $0x142] sm:$0xff]
      %v1635 = vld [vmem:[%s434 + $0x152] sm:$0xff]
      %v1636 = vld [vmem:[%s434 + $0x15a] sm:$0xff]
      %v1637 = vld [vmem:[%s434 + $0x16a] sm:$0xff]
      %v1638 = vld [vmem:[%s434 + $0x172] sm:$0xff]
      %1671 = vrot.lane.b32.xlu0 %v1575, 8
      %v1672 = vpop.permute.xlu0 %1671
      %1673 = vrot.lane.b32.xlu0 %v1576, 8
      %v1674 = vpop.permute.xlu0 %1673
      %1675 = vrot.lane.b32.xlu0 %v1577, 8
      %v1676 = vpop.permute.xlu0 %1675
      %1677 = vrot.lane.b32.xlu0 %v1578, 8
      %v1678 = vpop.permute.xlu0 %1677
      %1679 = vrot.lane.b32.xlu0 %v1579, 8
      %v1680 = vpop.permute.xlu0 %1679
      %1681 = vrot.lane.b32.xlu0 %v1580, 8
      %v1682 = vpop.permute.xlu0 %1681
      %1683 = vrot.lane.b32.xlu0 %v1581, 8
      %v1684 = vpop.permute.xlu0 %1683
      %1685 = vrot.lane.b32.xlu0 %v1582, 8
      %v1686 = vpop.permute.xlu0 %1685
      %1687 = vrot.lane.b32.xlu0 %v1583, 8
      %v1688 = vpop.permute.xlu0 %1687
      %1689 = vrot.lane.b32.xlu0 %v1584, 8
      %v1690 = vpop.permute.xlu0 %1689
      %1691 = vrot.lane.b32.xlu0 %v1585, 8
      %v1692 = vpop.permute.xlu0 %1691
      %1693 = vrot.lane.b32.xlu0 %v1586, 8
      %v1694 = vpop.permute.xlu0 %1693
      %1695 = vrot.lane.b32.xlu0 %v1587, 8
      %v1696 = vpop.permute.xlu0 %1695
      %1697 = vrot.lane.b32.xlu0 %v1588, 8
      %v1698 = vpop.permute.xlu0 %1697
      %1699 = vrot.lane.b32.xlu0 %v1589, 8
      %v1700 = vpop.permute.xlu0 %1699
      %1701 = vrot.lane.b32.xlu0 %v1590, 8
      %v1702 = vpop.permute.xlu0 %1701
      %1703 = vrot.lane.b32.xlu0 %v1591, 8
      %v1704 = vpop.permute.xlu0 %1703
      %1705 = vrot.lane.b32.xlu0 %v1592, 8
      %v1706 = vpop.permute.xlu0 %1705
      %1707 = vrot.lane.b32.xlu0 %v1593, 8
      %v1708 = vpop.permute.xlu0 %1707
      %1709 = vrot.lane.b32.xlu0 %v1594, 8
      %v1710 = vpop.permute.xlu0 %1709
      %1711 = vrot.lane.b32.xlu0 %v1595, 8
      %v1712 = vpop.permute.xlu0 %1711
      %1713 = vrot.lane.b32.xlu0 %v1596, 8
      %v1714 = vpop.permute.xlu0 %1713
      %1715 = vrot.lane.b32.xlu0 %v1597, 8
      %v1716 = vpop.permute.xlu0 %1715
      %1717 = vrot.lane.b32.xlu0 %v1598, 8
      %v1718 = vpop.permute.xlu0 %1717
      %1719 = vrot.lane.b32.xlu0 %v1599, 8
      %v1720 = vpop.permute.xlu0 %1719
      %1721 = vrot.lane.b32.xlu0 %v1600, 8
      %v1722 = vpop.permute.xlu0 %1721
      %1723 = vrot.lane.b32.xlu0 %v1601, 8
      %v1724 = vpop.permute.xlu0 %1723
      %1725 = vrot.lane.b32.xlu0 %v1602, 8
      %v1726 = vpop.permute.xlu0 %1725
      %1727 = vrot.lane.b32.xlu0 %v1603, 8
      %v1728 = vpop.permute.xlu0 %1727
      %1729 = vrot.lane.b32.xlu0 %v1604, 8
      %v1730 = vpop.permute.xlu0 %1729
      %1731 = vrot.lane.b32.xlu0 %v1605, 8
      %v1732 = vpop.permute.xlu0 %1731
      %1733 = vrot.lane.b32.xlu0 %v1606, 8
      %v1734 = vpop.permute.xlu0 %1733
      %1799 = vrot.lane.b32.xlu0 %v1607, 16
      %v1800 = vpop.permute.xlu0 %1799
      %1801 = vrot.lane.b32.xlu0 %v1608, 16
      %v1802 = vpop.permute.xlu0 %1801
      %1803 = vrot.lane.b32.xlu0 %v1609, 16
      %v1804 = vpop.permute.xlu0 %1803
      %1805 = vrot.lane.b32.xlu0 %v1610, 16
      %v1806 = vpop.permute.xlu0 %1805
      %1807 = vrot.lane.b32.xlu0 %v1611, 16
      %v1808 = vpop.permute.xlu0 %1807
      %1809 = vrot.lane.b32.xlu0 %v1612, 16
      %v1810 = vpop.permute.xlu0 %1809
      %1811 = vrot.lane.b32.xlu0 %v1613, 16
      %v1812 = vpop.permute.xlu0 %1811
      %1813 = vrot.lane.b32.xlu0 %v1614, 16
      %v1814 = vpop.permute.xlu0 %1813
      %1815 = vrot.lane.b32.xlu0 %v1615, 16
      %v1816 = vpop.permute.xlu0 %1815
      %1817 = vrot.lane.b32.xlu0 %v1616, 16
      %v1818 = vpop.permute.xlu0 %1817
      %1819 = vrot.lane.b32.xlu0 %v1617, 16
      %v1820 = vpop.permute.xlu0 %1819
      %1821 = vrot.lane.b32.xlu0 %v1618, 16
      %v1822 = vpop.permute.xlu0 %1821
      %1823 = vrot.lane.b32.xlu0 %v1619, 16
      %v1824 = vpop.permute.xlu0 %1823
      %1825 = vrot.lane.b32.xlu0 %v1620, 16
      %v1826 = vpop.permute.xlu0 %1825
      %1827 = vrot.lane.b32.xlu0 %v1621, 16
      %v1828 = vpop.permute.xlu0 %1827
      %1829 = vrot.lane.b32.xlu0 %v1622, 16
      %v1830 = vpop.permute.xlu0 %1829
      %1831 = vrot.lane.b32.xlu0 %v1623, 16
      %v1832 = vpop.permute.xlu0 %1831
      %1833 = vrot.lane.b32.xlu0 %v1624, 16
      %v1834 = vpop.permute.xlu0 %1833
      %1835 = vrot.lane.b32.xlu0 %v1625, 16
      %v1836 = vpop.permute.xlu0 %1835
      %1837 = vrot.lane.b32.xlu0 %v1626, 16
      %v1838 = vpop.permute.xlu0 %1837
      %1839 = vrot.lane.b32.xlu0 %v1627, 16
      %v1840 = vpop.permute.xlu0 %1839
      %1841 = vrot.lane.b32.xlu0 %v1628, 16
      %v1842 = vpop.permute.xlu0 %1841
      %1843 = vrot.lane.b32.xlu0 %v1629, 16
      %v1844 = vpop.permute.xlu0 %1843
      %1845 = vrot.lane.b32.xlu0 %v1630, 16
      %v1846 = vpop.permute.xlu0 %1845
      %1847 = vrot.lane.b32.xlu0 %v1631, 16
      %v1848 = vpop.permute.xlu0 %1847
      %1849 = vrot.lane.b32.xlu0 %v1632, 16
      %v1850 = vpop.permute.xlu0 %1849
      %1851 = vrot.lane.b32.xlu0 %v1633, 16
      %v1852 = vpop.permute.xlu0 %1851
      %1853 = vrot.lane.b32.xlu0 %v1634, 16
      %v1854 = vpop.permute.xlu0 %1853
      %1855 = vrot.lane.b32.xlu0 %v1635, 16
      %v1856 = vpop.permute.xlu0 %1855
      %1857 = vrot.lane.b32.xlu0 %v1636, 16
      %v1858 = vpop.permute.xlu0 %1857
      %1859 = vrot.lane.b32.xlu0 %v1637, 16
      %v1860 = vpop.permute.xlu0 %1859
      %1861 = vrot.lane.b32.xlu0 %v1638, 16
      %v1862 = vpop.permute.xlu0 %1861
      %v1895 = vsel %vm259, %v1543, %v1672
      %v1896 = vsel %vm259, %v1544, %v1674
      %v1897 = vsel %vm259, %v1545, %v1676
      %v1898 = vsel %vm259, %v1546, %v1678
      %v1899 = vsel %vm259, %v1547, %v1680
      %v1900 = vsel %vm259, %v1548, %v1682
      %v1901 = vsel %vm259, %v1549, %v1684
      %v1902 = vsel %vm259, %v1550, %v1686
      %v1903 = vsel %vm259, %v1551, %v1688
      %v1904 = vsel %vm259, %v1552, %v1690
      %v1905 = vsel %vm259, %v1553, %v1692
      %v1906 = vsel %vm259, %v1554, %v1694
      %v1907 = vsel %vm259, %v1555, %v1696
      %v1908 = vsel %vm259, %v1556, %v1698
      %v1909 = vsel %vm259, %v1557, %v1700
      %v1910 = vsel %vm259, %v1558, %v1702
      %v1911 = vsel %vm259, %v1559, %v1704
      %v1912 = vsel %vm259, %v1560, %v1706
      %v1913 = vsel %vm259, %v1561, %v1708
      %v1914 = vsel %vm259, %v1562, %v1710
      %v1915 = vsel %vm259, %v1563, %v1712
      %v1916 = vsel %vm259, %v1564, %v1714
      %v1917 = vsel %vm259, %v1565, %v1716
      %v1918 = vsel %vm259, %v1566, %v1718
      %v1919 = vsel %vm259, %v1567, %v1720
      %v1920 = vsel %vm259, %v1568, %v1722
      %v1921 = vsel %vm259, %v1569, %v1724
      %v1922 = vsel %vm259, %v1570, %v1726
      %v1923 = vsel %vm259, %v1571, %v1728
      %v1924 = vsel %vm259, %v1572, %v1730
      %v1925 = vsel %vm259, %v1573, %v1732
      %v1926 = vsel %vm259, %v1574, %v1734
      %v1927 = vsel %vm755, %v1895, %v1800
      %v1928 = vsel %vm755, %v1896, %v1802
      %v1929 = vsel %vm755, %v1897, %v1804
      %v1930 = vsel %vm755, %v1898, %v1806
      %v1931 = vsel %vm755, %v1899, %v1808
      %v1932 = vsel %vm755, %v1900, %v1810
      %v1933 = vsel %vm755, %v1901, %v1812
      %v1934 = vsel %vm755, %v1902, %v1814
      %v1935 = vsel %vm755, %v1903, %v1816
      %v1936 = vsel %vm755, %v1904, %v1818
      %v1937 = vsel %vm755, %v1905, %v1820
      %v1938 = vsel %vm755, %v1906, %v1822
      %v1939 = vsel %vm755, %v1907, %v1824
      %v1940 = vsel %vm755, %v1908, %v1826
      %v1941 = vsel %vm755, %v1909, %v1828
      %v1942 = vsel %vm755, %v1910, %v1830
      %v1943 = vsel %vm755, %v1911, %v1832
      %v1944 = vsel %vm755, %v1912, %v1834
      %v1945 = vsel %vm755, %v1913, %v1836
      %v1946 = vsel %vm755, %v1914, %v1838
      %v1947 = vsel %vm755, %v1915, %v1840
      %v1948 = vsel %vm755, %v1916, %v1842
      %v1949 = vsel %vm755, %v1917, %v1844
      %v1950 = vsel %vm755, %v1918, %v1846
      %v1951 = vsel %vm755, %v1919, %v1848
      %v1952 = vsel %vm755, %v1920, %v1850
      %v1953 = vsel %vm755, %v1921, %v1852
      %v1954 = vsel %vm755, %v1922, %v1854
      %v1955 = vsel %vm755, %v1923, %v1856
      %v1956 = vsel %vm755, %v1924, %v1858
      %v1957 = vsel %vm755, %v1925, %v1860
      %v1958 = vsel %vm755, %v1926, %v1862
      %v1959 = vpack.c.bf16 %v1928, %v1927
      %v1960 = vpack.c.bf16 %v1930, %v1929
      %v1961 = vpack.c.bf16 %v1932, %v1931
      %v1962 = vpack.c.bf16 %v1934, %v1933
      %v1963 = vpack.c.bf16 %v1936, %v1935
      %v1964 = vpack.c.bf16 %v1938, %v1937
      %v1965 = vpack.c.bf16 %v1940, %v1939
      %v1966 = vpack.c.bf16 %v1942, %v1941
      %v1967 = vpack.c.bf16 %v1944, %v1943
      %v1968 = vpack.c.bf16 %v1946, %v1945
      %v1969 = vpack.c.bf16 %v1948, %v1947
      %v1970 = vpack.c.bf16 %v1950, %v1949
      %v1971 = vpack.c.bf16 %v1952, %v1951
      %v1972 = vpack.c.bf16 %v1954, %v1953
      %v1973 = vpack.c.bf16 %v1956, %v1955
      %v1974 = vpack.c.bf16 %v1958, %v1957
      %s1975 = scalar_lea.vmem %s1, 24
      %v1976 = vld [vmem:[%s1975] sm:$0xf]
      %v1977 = vld [vmem:[%s1975 + $0x4] sm:$0xf]
      %v1978 = vld [vmem:[%s1975 + $0x8] sm:$0xf]
      %v1982 = vunpack.c.l.b16 %v1976
      %v1983 = vunpack.c.l.b16 %v1977
      %v1984 = vunpack.c.l.b16 %v1978
      %v1985 = vpack.c.b16 %v1983, %v1982
      %v1986 = vpack.c.b16 %v1984, %v1984
      %v1989 = vsel %vm1252, %v1959, 0
      %v1992 = vsel %vm1252, %v1960, 0
      %v1995 = vsel %vm1252, %v1961, 0
      %v1998 = vsel %vm1252, %v1962, 0
      %v2001 = vsel %vm1252, %v1963, 0
      %v2004 = vsel %vm1252, %v1964, 0
      %v2007 = vsel %vm1252, %v1965, 0
      %v2010 = vsel %vm1252, %v1966, 0
      %v2013 = vsel %vm1252, %v1967, 0
      %v2016 = vsel %vm1252, %v1968, 0
      %v2019 = vsel %vm1252, %v1969, 0
      %v2022 = vsel %vm1252, %v1970, 0
      %v2025 = vsel %vm1252, %v1971, 0
      %v2028 = vsel %vm1252, %v1972, 0
      %v2031 = vsel %vm1252, %v1973, 0
      %v2034 = vsel %vm1252, %v1974, 0
      %v2037 = vsel %vm1301, %v1986, 0
      %2039 = vmatpush.bf16.msra.mxu0 0
      %2040 = vmatpush.bf16.msra.mxu0 0
      %2041 = vmatpush.bf16.msra.mxu0 0
      %2042 = vmatpush.bf16.msra.mxu0 0
      %2043 = vmatpush.bf16.msra.mxu0 0
      %2044 = vmatpush.bf16.msra.mxu0 0
      %2045 = vmatpush.bf16.msra.mxu0 %v2037
      %2046 = vmatpush.bf16.msra.mxu0 %v1985
      %2047 = vmatmul.bf16.gmra.mxu0 %v1989
      %v2048 = vpop.f32.mrf.mxu0
      %v2049 = vadd.f32 0.0, %v2048
      %v2050 = vpop.f32.mrf.mxu0
      %v2051 = vadd.f32 0.0, %v2050
      %2052 = vmatmul.bf16.gmra.mxu0 %v1992
      %v2053 = vpop.f32.mrf.mxu0
      %v2054 = vadd.f32 0.0, %v2053
      %v2055 = vpop.f32.mrf.mxu0
      %v2056 = vadd.f32 0.0, %v2055
      %2057 = vmatmul.bf16.gmra.mxu0 %v1995
      %v2058 = vpop.f32.mrf.mxu0
      %v2059 = vadd.f32 0.0, %v2058
      %v2060 = vpop.f32.mrf.mxu0
      %v2061 = vadd.f32 0.0, %v2060
      %2062 = vmatmul.bf16.gmra.mxu0 %v1998
      %v2063 = vpop.f32.mrf.mxu0
      %v2064 = vadd.f32 0.0, %v2063
      %v2065 = vpop.f32.mrf.mxu0
      %v2066 = vadd.f32 0.0, %v2065
      %2067 = vmatmul.bf16.gmra.mxu0 %v2001
      %v2068 = vpop.f32.mrf.mxu0
      %v2069 = vadd.f32 0.0, %v2068
      %v2070 = vpop.f32.mrf.mxu0
      %v2071 = vadd.f32 0.0, %v2070
      %2072 = vmatmul.bf16.gmra.mxu0 %v2004
      %v2073 = vpop.f32.mrf.mxu0
      %v2074 = vadd.f32 0.0, %v2073
      %v2075 = vpop.f32.mrf.mxu0
      %v2076 = vadd.f32 0.0, %v2075
      %2077 = vmatmul.bf16.gmra.mxu0 %v2007
      %v2078 = vpop.f32.mrf.mxu0
      %v2079 = vadd.f32 0.0, %v2078
      %v2080 = vpop.f32.mrf.mxu0
      %v2081 = vadd.f32 0.0, %v2080
      %2082 = vmatmul.bf16.gmra.mxu0 %v2010
      %v2083 = vpop.f32.mrf.mxu0
      %v2084 = vadd.f32 0.0, %v2083
      %v2085 = vpop.f32.mrf.mxu0
      %v2086 = vadd.f32 0.0, %v2085
      %2087 = vmatmul.bf16.gmra.mxu0 %v2013
      %v2088 = vpop.f32.mrf.mxu0
      %v2089 = vadd.f32 0.0, %v2088
      %v2090 = vpop.f32.mrf.mxu0
      %v2091 = vadd.f32 0.0, %v2090
      %2092 = vmatmul.bf16.gmra.mxu0 %v2016
      %v2093 = vpop.f32.mrf.mxu0
      %v2094 = vadd.f32 0.0, %v2093
      %v2095 = vpop.f32.mrf.mxu0
      %v2096 = vadd.f32 0.0, %v2095
      %2097 = vmatmul.bf16.gmra.mxu0 %v2019
      %v2098 = vpop.f32.mrf.mxu0
      %v2099 = vadd.f32 0.0, %v2098
      %v2100 = vpop.f32.mrf.mxu0
      %v2101 = vadd.f32 0.0, %v2100
      %2102 = vmatmul.bf16.gmra.mxu0 %v2022
      %v2103 = vpop.f32.mrf.mxu0
      %v2104 = vadd.f32 0.0, %v2103
      %v2105 = vpop.f32.mrf.mxu0
      %v2106 = vadd.f32 0.0, %v2105
      %2107 = vmatmul.bf16.gmra.mxu0 %v2025
      %v2108 = vpop.f32.mrf.mxu0
      %v2109 = vadd.f32 0.0, %v2108
      %v2110 = vpop.f32.mrf.mxu0
      %v2111 = vadd.f32 0.0, %v2110
      %2112 = vmatmul.bf16.gmra.mxu0 %v2028
      %v2113 = vpop.f32.mrf.mxu0
      %v2114 = vadd.f32 0.0, %v2113
      %v2115 = vpop.f32.mrf.mxu0
      %v2116 = vadd.f32 0.0, %v2115
      %2117 = vmatmul.bf16.gmra.mxu0 %v2031
      %v2118 = vpop.f32.mrf.mxu0
      %v2119 = vadd.f32 0.0, %v2118
      %v2120 = vpop.f32.mrf.mxu0
      %v2121 = vadd.f32 0.0, %v2120
      %2122 = vmatmul.bf16.gmra.mxu0 %v2034
      %v2123 = vpop.f32.mrf.mxu0
      %v2124 = vadd.f32 0.0, %v2123
      %v2125 = vpop.f32.mrf.mxu0
      %v2126 = vadd.f32 0.0, %v2125
      %2127 = vdwg.mxu0
      %v2128 = vadd.f32 %v1464, %v2049
      %v2129 = vadd.f32 %v1466, %v2051
      %v2130 = vadd.f32 %v1469, %v2054
      %v2131 = vadd.f32 %v1471, %v2056
      %v2132 = vadd.f32 %v1474, %v2059
      %v2133 = vadd.f32 %v1476, %v2061
      %v2134 = vadd.f32 %v1479, %v2064
      %v2135 = vadd.f32 %v1481, %v2066
      %v2136 = vadd.f32 %v1484, %v2069
      %v2137 = vadd.f32 %v1486, %v2071
      %v2138 = vadd.f32 %v1489, %v2074
      %v2139 = vadd.f32 %v1491, %v2076
      %v2140 = vadd.f32 %v1494, %v2079
      %v2141 = vadd.f32 %v1496, %v2081
      %v2142 = vadd.f32 %v1499, %v2084
      %v2143 = vadd.f32 %v1501, %v2086
      %v2144 = vadd.f32 %v1504, %v2089
      %v2145 = vadd.f32 %v1506, %v2091
      %v2146 = vadd.f32 %v1509, %v2094
      %v2147 = vadd.f32 %v1511, %v2096
      %v2148 = vadd.f32 %v1514, %v2099
      %v2149 = vadd.f32 %v1516, %v2101
      %v2150 = vadd.f32 %v1519, %v2104
      %v2151 = vadd.f32 %v1521, %v2106
      %v2152 = vadd.f32 %v1524, %v2109
      %v2153 = vadd.f32 %v1526, %v2111
      %v2154 = vadd.f32 %v1529, %v2114
      %v2155 = vadd.f32 %v1531, %v2116
      %v2156 = vadd.f32 %v1534, %v2119
      %v2157 = vadd.f32 %v1536, %v2121
      %v2158 = vadd.f32 %v1539, %v2124
      %v2159 = vadd.f32 %v1541, %v2126
      %v2160 = vld [vmem:[%s2] sm:$0x1]
      %v2162 = vperm.slane %v2160, 0
      %v2164 = vadd.f32 %v2128, %v2162
      %v2165 = vadd.f32 %v2129, %v2162
      %v2166 = vadd.f32 %v2130, %v2162
      %v2167 = vadd.f32 %v2131, %v2162
      %v2168 = vadd.f32 %v2132, %v2162
      %v2169 = vadd.f32 %v2133, %v2162
      %v2170 = vadd.f32 %v2134, %v2162
      %v2171 = vadd.f32 %v2135, %v2162
      %v2172 = vadd.f32 %v2136, %v2162
      %v2173 = vadd.f32 %v2137, %v2162
      %v2174 = vadd.f32 %v2138, %v2162
      %v2175 = vadd.f32 %v2139, %v2162
      %v2176 = vadd.f32 %v2140, %v2162
      %v2177 = vadd.f32 %v2141, %v2162
      %v2178 = vadd.f32 %v2142, %v2162
      %v2179 = vadd.f32 %v2143, %v2162
      %v2180 = vadd.f32 %v2144, %v2162
      %v2181 = vadd.f32 %v2145, %v2162
      %v2182 = vadd.f32 %v2146, %v2162
      %v2183 = vadd.f32 %v2147, %v2162
      %v2184 = vadd.f32 %v2148, %v2162
      %v2185 = vadd.f32 %v2149, %v2162
      %v2186 = vadd.f32 %v2150, %v2162
      %v2187 = vadd.f32 %v2151, %v2162
      %v2188 = vadd.f32 %v2152, %v2162
      %v2189 = vadd.f32 %v2153, %v2162
      %v2190 = vadd.f32 %v2154, %v2162
      %v2191 = vadd.f32 %v2155, %v2162
      %v2192 = vadd.f32 %v2156, %v2162
      %v2193 = vadd.f32 %v2157, %v2162
      %v2194 = vadd.f32 %v2158, %v2162
      %v2195 = vadd.f32 %v2159, %v2162
      %v2196 = vsel %vm259, %v2164, 0.0
      %v2197 = vsel %vm259, %v2165, 0.0
      %v2198 = vadd.f32 %v2196, %v2197
      %v2199 = vsel %vm259, %v2166, 0.0
      %v2200 = vadd.f32 %v2198, %v2199
      %v2201 = vsel %vm259, %v2167, 0.0
      %v2202 = vadd.f32 %v2200, %v2201
      %v2203 = vsel %vm259, %v2168, 0.0
      %v2204 = vadd.f32 %v2202, %v2203
      %v2205 = vsel %vm259, %v2169, 0.0
      %v2206 = vadd.f32 %v2204, %v2205
      %v2207 = vsel %vm259, %v2170, 0.0
      %v2208 = vadd.f32 %v2206, %v2207
      %v2209 = vsel %vm259, %v2171, 0.0
      %v2210 = vadd.f32 %v2208, %v2209
      %v2211 = vsel %vm259, %v2172, 0.0
      %v2212 = vadd.f32 %v2210, %v2211
      %v2213 = vsel %vm259, %v2173, 0.0
      %v2214 = vadd.f32 %v2212, %v2213
      %v2215 = vsel %vm259, %v2174, 0.0
      %v2216 = vadd.f32 %v2214, %v2215
      %v2217 = vsel %vm259, %v2175, 0.0
      %v2218 = vadd.f32 %v2216, %v2217
      %v2219 = vsel %vm259, %v2176, 0.0
      %v2220 = vadd.f32 %v2218, %v2219
      %v2221 = vsel %vm259, %v2177, 0.0
      %v2222 = vadd.f32 %v2220, %v2221
      %v2223 = vsel %vm259, %v2178, 0.0
      %v2224 = vadd.f32 %v2222, %v2223
      %v2225 = vsel %vm259, %v2179, 0.0
      %v2226 = vadd.f32 %v2224, %v2225
      %v2227 = vsel %vm259, %v2180, 0.0
      %v2228 = vadd.f32 %v2226, %v2227
      %v2229 = vsel %vm259, %v2181, 0.0
      %v2230 = vadd.f32 %v2228, %v2229
      %v2231 = vsel %vm259, %v2182, 0.0
      %v2232 = vadd.f32 %v2230, %v2231
      %v2233 = vsel %vm259, %v2183, 0.0
      %v2234 = vadd.f32 %v2232, %v2233
      %v2235 = vsel %vm259, %v2184, 0.0
      %v2236 = vadd.f32 %v2234, %v2235
      %v2237 = vsel %vm259, %v2185, 0.0
      %v2238 = vadd.f32 %v2236, %v2237
      %v2239 = vsel %vm259, %v2186, 0.0
      %v2240 = vadd.f32 %v2238, %v2239
      %v2241 = vsel %vm259, %v2187, 0.0
      %v2242 = vadd.f32 %v2240, %v2241
      %v2243 = vsel %vm259, %v2188, 0.0
      %v2244 = vadd.f32 %v2242, %v2243
      %v2245 = vsel %vm259, %v2189, 0.0
      %v2246 = vadd.f32 %v2244, %v2245
      %v2247 = vsel %vm259, %v2190, 0.0
      %v2248 = vadd.f32 %v2246, %v2247
      %v2249 = vsel %vm259, %v2191, 0.0
      %v2250 = vadd.f32 %v2248, %v2249
      %v2251 = vsel %vm259, %v2192, 0.0
      %v2252 = vadd.f32 %v2250, %v2251
      %v2253 = vsel %vm259, %v2193, 0.0
      %v2254 = vadd.f32 %v2252, %v2253
      %v2255 = vsel %vm259, %v2194, 0.0
      %v2256 = vadd.f32 %v2254, %v2255
      %v2257 = vsel %vm259, %v2195, 0.0
      %v2258 = vadd.f32 %v2256, %v2257
      %v2259 = vrot.slane %v2258, 4
      %v2260 = vadd.f32 %v2258, %v2259
      %v2261 = vrot.slane %v2260, 2
      %v2262 = vadd.f32 %v2260, %v2261
      %v2263 = vrot.slane %v2262, 1
      %v2264 = vadd.f32 %v2262, %v2263
      %v2265 = vrcp.pop 256.0
      %v2266 = vmul.f32 256.0, %v2265
      %v2267 = vsub.f32 1.0, %v2266
      %v2268 = vmul.f32 %v2265, %v2267
      %v2269 = vadd.f32 %v2265, %v2268
      %vm2270 = vweird.f32 %v2265
      %v2271 = vsel %vm2270, %v2265, %v2269
      %v2272 = vmul.f32 %v2264, %v2271
      %v2273 = vsub.f32 %v2164, %v2272
      %v2274 = vsub.f32 %v2165, %v2272
      %v2275 = vsub.f32 %v2166, %v2272
      %v2276 = vsub.f32 %v2167, %v2272
      %v2277 = vsub.f32 %v2168, %v2272
      %v2278 = vsub.f32 %v2169, %v2272
      %v2279 = vsub.f32 %v2170, %v2272
      %v2280 = vsub.f32 %v2171, %v2272
      %v2281 = vsub.f32 %v2172, %v2272
      %v2282 = vsub.f32 %v2173, %v2272
      %v2283 = vsub.f32 %v2174, %v2272
      %v2284 = vsub.f32 %v2175, %v2272
      %v2285 = vsub.f32 %v2176, %v2272
      %v2286 = vsub.f32 %v2177, %v2272
      %v2287 = vsub.f32 %v2178, %v2272
      %v2288 = vsub.f32 %v2179, %v2272
      %v2289 = vsub.f32 %v2180, %v2272
      %v2290 = vsub.f32 %v2181, %v2272
      %v2291 = vsub.f32 %v2182, %v2272
      %v2292 = vsub.f32 %v2183, %v2272
      %v2293 = vsub.f32 %v2184, %v2272
      %v2294 = vsub.f32 %v2185, %v2272
      %v2295 = vsub.f32 %v2186, %v2272
      %v2296 = vsub.f32 %v2187, %v2272
      %v2297 = vsub.f32 %v2188, %v2272
      %v2298 = vsub.f32 %v2189, %v2272
      %v2299 = vsub.f32 %v2190, %v2272
      %v2300 = vsub.f32 %v2191, %v2272
      %v2301 = vsub.f32 %v2192, %v2272
      %v2302 = vsub.f32 %v2193, %v2272
      %v2303 = vsub.f32 %v2194, %v2272
      %v2304 = vsub.f32 %v2195, %v2272
      %v2305 = vmul.f32 %v2273, %v2273
      %v2306 = vmul.f32 %v2274, %v2274
      %v2307 = vmul.f32 %v2275, %v2275
      %v2308 = vmul.f32 %v2276, %v2276
      %v2309 = vmul.f32 %v2277, %v2277
      %v2310 = vmul.f32 %v2278, %v2278
      %v2311 = vmul.f32 %v2279, %v2279
      %v2312 = vmul.f32 %v2280, %v2280
      %v2313 = vmul.f32 %v2281, %v2281
      %v2314 = vmul.f32 %v2282, %v2282
      %v2315 = vmul.f32 %v2283, %v2283
      %v2316 = vmul.f32 %v2284, %v2284
      %v2317 = vmul.f32 %v2285, %v2285
      %v2318 = vmul.f32 %v2286, %v2286
      %v2319 = vmul.f32 %v2287, %v2287
      %v2320 = vmul.f32 %v2288, %v2288
      %v2321 = vmul.f32 %v2289, %v2289
      %v2322 = vmul.f32 %v2290, %v2290
      %v2323 = vmul.f32 %v2291, %v2291
      %v2324 = vmul.f32 %v2292, %v2292
      %v2325 = vmul.f32 %v2293, %v2293
      %v2326 = vmul.f32 %v2294, %v2294
      %v2327 = vmul.f32 %v2295, %v2295
      %v2328 = vmul.f32 %v2296, %v2296
      %v2329 = vmul.f32 %v2297, %v2297
      %v2330 = vmul.f32 %v2298, %v2298
      %v2331 = vmul.f32 %v2299, %v2299
      %v2332 = vmul.f32 %v2300, %v2300
      %v2333 = vmul.f32 %v2301, %v2301
      %v2334 = vmul.f32 %v2302, %v2302
      %v2335 = vmul.f32 %v2303, %v2303
      %v2336 = vmul.f32 %v2304, %v2304
      %v2337 = vsel %vm259, %v2305, 0.0
      %v2338 = vsel %vm259, %v2306, 0.0
      %v2339 = vadd.f32 %v2337, %v2338
      %v2340 = vsel %vm259, %v2307, 0.0
      %v2341 = vadd.f32 %v2339, %v2340
      %v2342 = vsel %vm259, %v2308, 0.0
      %v2343 = vadd.f32 %v2341, %v2342
      %v2344 = vsel %vm259, %v2309, 0.0
      %v2345 = vadd.f32 %v2343, %v2344
      %v2346 = vsel %vm259, %v2310, 0.0
      %v2347 = vadd.f32 %v2345, %v2346
      %v2348 = vsel %vm259, %v2311, 0.0
      %v2349 = vadd.f32 %v2347, %v2348
      %v2350 = vsel %vm259, %v2312, 0.0
      %v2351 = vadd.f32 %v2349, %v2350
      %v2352 = vsel %vm259, %v2313, 0.0
      %v2353 = vadd.f32 %v2351, %v2352
      %v2354 = vsel %vm259, %v2314, 0.0
      %v2355 = vadd.f32 %v2353, %v2354
      %v2356 = vsel %vm259, %v2315, 0.0
      %v2357 = vadd.f32 %v2355, %v2356
      %v2358 = vsel %vm259, %v2316, 0.0
      %v2359 = vadd.f32 %v2357, %v2358
      %v2360 = vsel %vm259, %v2317, 0.0
      %v2361 = vadd.f32 %v2359, %v2360
      %v2362 = vsel %vm259, %v2318, 0.0
      %v2363 = vadd.f32 %v2361, %v2362
      %v2364 = vsel %vm259, %v2319, 0.0
      %v2365 = vadd.f32 %v2363, %v2364
      %v2366 = vsel %vm259, %v2320, 0.0
      %v2367 = vadd.f32 %v2365, %v2366
      %v2368 = vsel %vm259, %v2321, 0.0
      %v2369 = vadd.f32 %v2367, %v2368
      %v2370 = vsel %vm259, %v2322, 0.0
      %v2371 = vadd.f32 %v2369, %v2370
      %v2372 = vsel %vm259, %v2323, 0.0
      %v2373 = vadd.f32 %v2371, %v2372
      %v2374 = vsel %vm259, %v2324, 0.0
      %v2375 = vadd.f32 %v2373, %v2374
      %v2376 = vsel %vm259, %v2325, 0.0
      %v2377 = vadd.f32 %v2375, %v2376
      %v2378 = vsel %vm259, %v2326, 0.0
      %v2379 = vadd.f32 %v2377, %v2378
      %v2380 = vsel %vm259, %v2327, 0.0
      %v2381 = vadd.f32 %v2379, %v2380
      %v2382 = vsel %vm259, %v2328, 0.0
      %v2383 = vadd.f32 %v2381, %v2382
      %v2384 = vsel %vm259, %v2329, 0.0
      %v2385 = vadd.f32 %v2383, %v2384
      %v2386 = vsel %vm259, %v2330, 0.0
      %v2387 = vadd.f32 %v2385, %v2386
      %v2388 = vsel %vm259, %v2331, 0.0
      %v2389 = vadd.f32 %v2387, %v2388
      %v2390 = vsel %vm259, %v2332, 0.0
      %v2391 = vadd.f32 %v2389, %v2390
      %v2392 = vsel %vm259, %v2333, 0.0
      %v2393 = vadd.f32 %v2391, %v2392
      %v2394 = vsel %vm259, %v2334, 0.0
      %v2395 = vadd.f32 %v2393, %v2394
      %v2396 = vsel %vm259, %v2335, 0.0
      %v2397 = vadd.f32 %v2395, %v2396
      %v2398 = vsel %vm259, %v2336, 0.0
      %v2399 = vadd.f32 %v2397, %v2398
      %v2400 = vrot.slane %v2399, 4
      %v2401 = vadd.f32 %v2399, %v2400
      %v2402 = vrot.slane %v2401, 2
      %v2403 = vadd.f32 %v2401, %v2402
      %v2404 = vrot.slane %v2403, 1
      %v2405 = vadd.f32 %v2403, %v2404
      %v2406 = vmul.f32 %v2405, %v2271
      %v2407 = vadd.f32 %v2406, 1e-05
      %v2408 = vrsqrt.pop %v2407
      %v2409 = vmul.f32 %v2408, %v2407
      %v2410 = vmul.f32 %v2409, %v2408
      %v2411 = vmul.f32 0.5, %v2410
      %v2412 = vsub.f32 1.5, %v2411
      %v2413 = vmul.f32 %v2408, %v2412
      %vm2414 = vweird.f32 %v2407
      %vm2415 = vweird.f32 %v2408
      %vm2416 = vmor %vm2414, %vm2415
      %v2417 = vsel %vm2416, %v2408, %v2413
      %v2418 = vmul.f32 %v2273, %v2417
      %v2419 = vmul.f32 %v2274, %v2417
      %v2420 = vmul.f32 %v2275, %v2417
      %v2421 = vmul.f32 %v2276, %v2417
      %v2422 = vmul.f32 %v2277, %v2417
      %v2423 = vmul.f32 %v2278, %v2417
      %v2424 = vmul.f32 %v2279, %v2417
      %v2425 = vmul.f32 %v2280, %v2417
      %v2426 = vmul.f32 %v2281, %v2417
      %v2427 = vmul.f32 %v2282, %v2417
      %v2428 = vmul.f32 %v2283, %v2417
      %v2429 = vmul.f32 %v2284, %v2417
      %v2430 = vmul.f32 %v2285, %v2417
      %v2431 = vmul.f32 %v2286, %v2417
      %v2432 = vmul.f32 %v2287, %v2417
      %v2433 = vmul.f32 %v2288, %v2417
      %v2434 = vmul.f32 %v2289, %v2417
      %v2435 = vmul.f32 %v2290, %v2417
      %v2436 = vmul.f32 %v2291, %v2417
      %v2437 = vmul.f32 %v2292, %v2417
      %v2438 = vmul.f32 %v2293, %v2417
      %v2439 = vmul.f32 %v2294, %v2417
      %v2440 = vmul.f32 %v2295, %v2417
      %v2441 = vmul.f32 %v2296, %v2417
      %v2442 = vmul.f32 %v2297, %v2417
      %v2443 = vmul.f32 %v2298, %v2417
      %v2444 = vmul.f32 %v2299, %v2417
      %v2445 = vmul.f32 %v2300, %v2417
      %v2446 = vmul.f32 %v2301, %v2417
      %v2447 = vmul.f32 %v2302, %v2417
      %v2448 = vmul.f32 %v2303, %v2417
      %v2449 = vmul.f32 %v2304, %v2417
      %v2450 = vmax.f32 %v2418, 0.0
      %v2451 = vmax.f32 %v2419, 0.0
      %v2452 = vmax.f32 %v2420, 0.0
      %v2453 = vmax.f32 %v2421, 0.0
      %v2454 = vmax.f32 %v2422, 0.0
      %v2455 = vmax.f32 %v2423, 0.0
      %v2456 = vmax.f32 %v2424, 0.0
      %v2457 = vmax.f32 %v2425, 0.0
      %v2458 = vmax.f32 %v2426, 0.0
      %v2459 = vmax.f32 %v2427, 0.0
      %v2460 = vmax.f32 %v2428, 0.0
      %v2461 = vmax.f32 %v2429, 0.0
      %v2462 = vmax.f32 %v2430, 0.0
      %v2463 = vmax.f32 %v2431, 0.0
      %v2464 = vmax.f32 %v2432, 0.0
      %v2465 = vmax.f32 %v2433, 0.0
      %v2466 = vmax.f32 %v2434, 0.0
      %v2467 = vmax.f32 %v2435, 0.0
      %v2468 = vmax.f32 %v2436, 0.0
      %v2469 = vmax.f32 %v2437, 0.0
      %v2470 = vmax.f32 %v2438, 0.0
      %v2471 = vmax.f32 %v2439, 0.0
      %v2472 = vmax.f32 %v2440, 0.0
      %v2473 = vmax.f32 %v2441, 0.0
      %v2474 = vmax.f32 %v2442, 0.0
      %v2475 = vmax.f32 %v2443, 0.0
      %v2476 = vmax.f32 %v2444, 0.0
      %v2477 = vmax.f32 %v2445, 0.0
      %v2478 = vmax.f32 %v2446, 0.0
      %v2479 = vmax.f32 %v2447, 0.0
      %v2480 = vmax.f32 %v2448, 0.0
      %v2481 = vmax.f32 %v2449, 0.0
      %2482 = vst.msk [vmem:[%s258 + $0x1] sm:$0xff] %vm259, %v2450
      %2483 = vst.msk [vmem:[%s258 + $0x9] sm:$0xff] %vm259, %v2451
      %2484 = vst.msk [vmem:[%s258 + $0x19] sm:$0xff] %vm259, %v2452
      %2485 = vst.msk [vmem:[%s258 + $0x21] sm:$0xff] %vm259, %v2453
      %2486 = vst.msk [vmem:[%s258 + $0x31] sm:$0xff] %vm259, %v2454
      %2487 = vst.msk [vmem:[%s258 + $0x39] sm:$0xff] %vm259, %v2455
      %2488 = vst.msk [vmem:[%s258 + $0x49] sm:$0xff] %vm259, %v2456
      %2489 = vst.msk [vmem:[%s258 + $0x51] sm:$0xff] %vm259, %v2457
      %2490 = vst.msk [vmem:[%s258 + $0x61] sm:$0xff] %vm259, %v2458
      %2491 = vst.msk [vmem:[%s258 + $0x69] sm:$0xff] %vm259, %v2459
      %2492 = vst.msk [vmem:[%s258 + $0x79] sm:$0xff] %vm259, %v2460
      %2493 = vst.msk [vmem:[%s258 + $0x81] sm:$0xff] %vm259, %v2461
      %2494 = vst.msk [vmem:[%s258 + $0x91] sm:$0xff] %vm259, %v2462
      %2495 = vst.msk [vmem:[%s258 + $0x99] sm:$0xff] %vm259, %v2463
      %2496 = vst.msk [vmem:[%s258 + $0xa9] sm:$0xff] %vm259, %v2464
      %2497 = vst.msk [vmem:[%s258 + $0xb1] sm:$0xff] %vm259, %v2465
      %2498 = vst.msk [vmem:[%s258 + $0xc1] sm:$0xff] %vm259, %v2466
      %2499 = vst.msk [vmem:[%s258 + $0xc9] sm:$0xff] %vm259, %v2467
      %2500 = vst.msk [vmem:[%s258 + $0xd9] sm:$0xff] %vm259, %v2468
      %2501 = vst.msk [vmem:[%s258 + $0xe1] sm:$0xff] %vm259, %v2469
      %2502 = vst.msk [vmem:[%s258 + $0xf1] sm:$0xff] %vm259, %v2470
      %2503 = vst.msk [vmem:[%s258 + $0xf9] sm:$0xff] %vm259, %v2471
      %2504 = vst.msk [vmem:[%s258 + $0x109] sm:$0xff] %vm259, %v2472
      %2505 = vst.msk [vmem:[%s258 + $0x111] sm:$0xff] %vm259, %v2473
      %2506 = vst.msk [vmem:[%s258 + $0x121] sm:$0xff] %vm259, %v2474
      %2507 = vst.msk [vmem:[%s258 + $0x129] sm:$0xff] %vm259, %v2475
      %2508 = vst.msk [vmem:[%s258 + $0x139] sm:$0xff] %vm259, %v2476
      %2509 = vst.msk [vmem:[%s258 + $0x141] sm:$0xff] %vm259, %v2477
      %2510 = vst.msk [vmem:[%s258 + $0x151] sm:$0xff] %vm259, %v2478
      %2511 = vst.msk [vmem:[%s258 + $0x159] sm:$0xff] %vm259, %v2479
      %2512 = vst.msk [vmem:[%s258 + $0x169] sm:$0xff] %vm259, %v2480
      %2513 = vst.msk [vmem:[%s258 + $0x171] sm:$0xff] %vm259, %v2481
      %2514 = vst.msk [vmem:[#allocation2 + $0x1] sm:$0xff] %vm259, %v2452
      %2515 = vst.msk [vmem:[#allocation2 + $0x9] sm:$0xff] %vm259, %v2453
      %2516 = vst.msk [vmem:[%s294 + $0x1] sm:$0xff] %vm259, %v2478
      %2517 = vst.msk [vmem:[%s294 + $0x9] sm:$0xff] %vm259, %v2479
      %v2518 = vld [vmem:[#allocation2 + $0x2] sm:$0x1]
      %v2519 = vld [vmem:[#allocation2 + $0x1a] sm:$0x1]
      %v2520 = vld [vmem:[#allocation2 + $0x32] sm:$0x1]
      %v2521 = vld [vmem:[#allocation2 + $0x4a] sm:$0x1]
      %v2522 = vld [vmem:[#allocation2 + $0x62] sm:$0x1]
      %v2523 = vld [vmem:[#allocation2 + $0x7a] sm:$0x1]
      %v2524 = vld [vmem:[#allocation2 + $0x92] sm:$0x1]
      %v2525 = vld [vmem:[#allocation2 + $0xaa] sm:$0x1]
      %v2526 = vld [vmem:[#allocation2 + $0xc2] sm:$0x1]
      %v2527 = vld [vmem:[#allocation2 + $0xda] sm:$0x1]
      %v2528 = vld [vmem:[#allocation2 + $0xf2] sm:$0x1]
      %v2529 = vld [vmem:[#allocation2 + $0x10a] sm:$0x1]
      %v2530 = vld [vmem:[#allocation2 + $0x122] sm:$0x1]
      %v2531 = vld [vmem:[#allocation2 + $0x13a] sm:$0x1]
      %v2532 = vld [vmem:[#allocation2 + $0x152] sm:$0x1]
      %v2533 = vld [vmem:[#allocation2 + $0x16a] sm:$0x1]
      %v2534 = vld [vmem:[#allocation2 + $0x182] sm:$0x1]
      %v2535 = vld [vmem:[#allocation2 + $0x19a] sm:$0x1]
      %2536 = vst.msk [vmem:[#allocation2] sm:$0x1] %vm315, %v2518
      %2537 = vst.msk [vmem:[#allocation2 + $0x18] sm:$0x1] %vm315, %v2519
      %2538 = vst.msk [vmem:[#allocation2 + $0x30] sm:$0x1] %vm315, %v2520
      %2539 = vst.msk [vmem:[#allocation2 + $0x48] sm:$0x1] %vm315, %v2521
      %2540 = vst.msk [vmem:[#allocation2 + $0x60] sm:$0x1] %vm315, %v2522
      %2541 = vst.msk [vmem:[#allocation2 + $0x78] sm:$0x1] %vm315, %v2523
      %2542 = vst.msk [vmem:[#allocation2 + $0x90] sm:$0x1] %vm315, %v2524
      %2543 = vst.msk [vmem:[#allocation2 + $0xa8] sm:$0x1] %vm315, %v2525
      %2544 = vst.msk [vmem:[#allocation2 + $0xc0] sm:$0x1] %vm315, %v2526
      %2545 = vst.msk [vmem:[#allocation2 + $0xd8] sm:$0x1] %vm315, %v2527
      %2546 = vst.msk [vmem:[#allocation2 + $0xf0] sm:$0x1] %vm315, %v2528
      %2547 = vst.msk [vmem:[#allocation2 + $0x108] sm:$0x1] %vm315, %v2529
      %2548 = vst.msk [vmem:[#allocation2 + $0x120] sm:$0x1] %vm315, %v2530
      %2549 = vst.msk [vmem:[#allocation2 + $0x138] sm:$0x1] %vm315, %v2531
      %2550 = vst.msk [vmem:[#allocation2 + $0x150] sm:$0x1] %vm315, %v2532
      %2551 = vst.msk [vmem:[#allocation2 + $0x168] sm:$0x1] %vm315, %v2533
      %2552 = vst.msk [vmem:[#allocation2 + $0x180] sm:$0x1] %vm315, %v2534
      %2553 = vst.msk [vmem:[#allocation2 + $0x198] sm:$0x1] %vm315, %v2535
      %v2554 = vld [vmem:[#allocation2 + $0xf] sm:$0x1]
      %v2555 = vld [vmem:[#allocation2 + $0x27] sm:$0x1]
      %v2556 = vld [vmem:[#allocation2 + $0x3f] sm:$0x1]
      %v2557 = vld [vmem:[#allocation2 + $0x57] sm:$0x1]
      %v2558 = vld [vmem:[#allocation2 + $0x6f] sm:$0x1]
      %v2559 = vld [vmem:[#allocation2 + $0x87] sm:$0x1]
      %v2560 = vld [vmem:[#allocation2 + $0x9f] sm:$0x1]
      %v2561 = vld [vmem:[#allocation2 + $0xb7] sm:$0x1]
      %v2562 = vld [vmem:[#allocation2 + $0xcf] sm:$0x1]
      %v2563 = vld [vmem:[#allocation2 + $0xe7] sm:$0x1]
      %v2564 = vld [vmem:[#allocation2 + $0xff] sm:$0x1]
      %v2565 = vld [vmem:[#allocation2 + $0x117] sm:$0x1]
      %v2566 = vld [vmem:[#allocation2 + $0x12f] sm:$0x1]
      %v2567 = vld [vmem:[#allocation2 + $0x147] sm:$0x1]
      %v2568 = vld [vmem:[#allocation2 + $0x15f] sm:$0x1]
      %v2569 = vld [vmem:[#allocation2 + $0x177] sm:$0x1]
      %v2570 = vld [vmem:[#allocation2 + $0x18f] sm:$0x1]
      %v2571 = vld [vmem:[#allocation2 + $0x1a7] sm:$0x1]
      %2572 = vst.msk [vmem:[#allocation2 + $0x11] sm:$0x1] %vm315, %v2554
      %2573 = vst.msk [vmem:[#allocation2 + $0x29] sm:$0x1] %vm315, %v2555
      %2574 = vst.msk [vmem:[#allocation2 + $0x41] sm:$0x1] %vm315, %v2556
      %2575 = vst.msk [vmem:[#allocation2 + $0x59] sm:$0x1] %vm315, %v2557
      %2576 = vst.msk [vmem:[#allocation2 + $0x71] sm:$0x1] %vm315, %v2558
      %2577 = vst.msk [vmem:[#allocation2 + $0x89] sm:$0x1] %vm315, %v2559
      %2578 = vst.msk [vmem:[#allocation2 + $0xa1] sm:$0x1] %vm315, %v2560
      %2579 = vst.msk [vmem:[#allocation2 + $0xb9] sm:$0x1] %vm315, %v2561
      %2580 = vst.msk [vmem:[#allocation2 + $0xd1] sm:$0x1] %vm315, %v2562
      %2581 = vst.msk [vmem:[#allocation2 + $0xe9] sm:$0x1] %vm315, %v2563
      %2582 = vst.msk [vmem:[#allocation2 + $0x101] sm:$0x1] %vm315, %v2564
      %2583 = vst.msk [vmem:[#allocation2 + $0x119] sm:$0x1] %vm315, %v2565
      %2584 = vst.msk [vmem:[#allocation2 + $0x131] sm:$0x1] %vm315, %v2566
      %2585 = vst.msk [vmem:[#allocation2 + $0x149] sm:$0x1] %vm315, %v2567
      %2586 = vst.msk [vmem:[#allocation2 + $0x161] sm:$0x1] %vm315, %v2568
      %2587 = vst.msk [vmem:[#allocation2 + $0x179] sm:$0x1] %vm315, %v2569
      %2588 = vst.msk [vmem:[#allocation2 + $0x191] sm:$0x1] %vm315, %v2570
      %2589 = vst.msk [vmem:[#allocation2 + $0x1a9] sm:$0x1] %vm315, %v2571
      %v2590 = vld [vmem:[#allocation2] sm:$0xff]
      %v2591 = vld [vmem:[#allocation2 + $0x8] sm:$0xff]
      %v2592 = vld [vmem:[#allocation2 + $0x18] sm:$0xff]
      %v2593 = vld [vmem:[#allocation2 + $0x20] sm:$0xff]
      %v2594 = vld [vmem:[#allocation2 + $0x30] sm:$0xff]
      %v2595 = vld [vmem:[#allocation2 + $0x38] sm:$0xff]
      %v2596 = vld [vmem:[#allocation2 + $0x48] sm:$0xff]
      %v2597 = vld [vmem:[#allocation2 + $0x50] sm:$0xff]
      %v2598 = vld [vmem:[#allocation2 + $0x60] sm:$0xff]
      %v2599 = vld [vmem:[#allocation2 + $0x68] sm:$0xff]
      %v2600 = vld [vmem:[#allocation2 + $0x78] sm:$0xff]
      %v2601 = vld [vmem:[#allocation2 + $0x80] sm:$0xff]
      %v2602 = vld [vmem:[#allocation2 + $0x90] sm:$0xff]
      %v2603 = vld [vmem:[#allocation2 + $0x98] sm:$0xff]
      %v2604 = vld [vmem:[#allocation2 + $0xa8] sm:$0xff]
      %v2605 = vld [vmem:[#allocation2 + $0xb0] sm:$0xff]
      %v2606 = vld [vmem:[#allocation2 + $0xc0] sm:$0xff]
      %v2607 = vld [vmem:[#allocation2 + $0xc8] sm:$0xff]
      %v2608 = vld [vmem:[#allocation2 + $0xd8] sm:$0xff]
      %v2609 = vld [vmem:[#allocation2 + $0xe0] sm:$0xff]
      %v2610 = vld [vmem:[#allocation2 + $0xf0] sm:$0xff]
      %v2611 = vld [vmem:[#allocation2 + $0xf8] sm:$0xff]
      %v2612 = vld [vmem:[#allocation2 + $0x108] sm:$0xff]
      %v2613 = vld [vmem:[#allocation2 + $0x110] sm:$0xff]
      %v2614 = vld [vmem:[#allocation2 + $0x120] sm:$0xff]
      %v2615 = vld [vmem:[#allocation2 + $0x128] sm:$0xff]
      %v2616 = vld [vmem:[#allocation2 + $0x138] sm:$0xff]
      %v2617 = vld [vmem:[#allocation2 + $0x140] sm:$0xff]
      %v2618 = vld [vmem:[#allocation2 + $0x150] sm:$0xff]
      %v2619 = vld [vmem:[#allocation2 + $0x158] sm:$0xff]
      %v2620 = vld [vmem:[#allocation2 + $0x168] sm:$0xff]
      %v2621 = vld [vmem:[#allocation2 + $0x170] sm:$0xff]
      %v2622 = vld [vmem:[%s258] sm:$0xff]
      %v2623 = vld [vmem:[%s258 + $0x8] sm:$0xff]
      %v2624 = vld [vmem:[%s258 + $0x18] sm:$0xff]
      %v2625 = vld [vmem:[%s258 + $0x20] sm:$0xff]
      %v2626 = vld [vmem:[%s258 + $0x30] sm:$0xff]
      %v2627 = vld [vmem:[%s258 + $0x38] sm:$0xff]
      %v2628 = vld [vmem:[%s258 + $0x48] sm:$0xff]
      %v2629 = vld [vmem:[%s258 + $0x50] sm:$0xff]
      %v2630 = vld [vmem:[%s258 + $0x60] sm:$0xff]
      %v2631 = vld [vmem:[%s258 + $0x68] sm:$0xff]
      %v2632 = vld [vmem:[%s258 + $0x78] sm:$0xff]
      %v2633 = vld [vmem:[%s258 + $0x80] sm:$0xff]
      %v2634 = vld [vmem:[%s258 + $0x90] sm:$0xff]
      %v2635 = vld [vmem:[%s258 + $0x98] sm:$0xff]
      %v2636 = vld [vmem:[%s258 + $0xa8] sm:$0xff]
      %v2637 = vld [vmem:[%s258 + $0xb0] sm:$0xff]
      %v2638 = vld [vmem:[%s258 + $0xc0] sm:$0xff]
      %v2639 = vld [vmem:[%s258 + $0xc8] sm:$0xff]
      %v2640 = vld [vmem:[%s258 + $0xd8] sm:$0xff]
      %v2641 = vld [vmem:[%s258 + $0xe0] sm:$0xff]
      %v2642 = vld [vmem:[%s258 + $0xf0] sm:$0xff]
      %v2643 = vld [vmem:[%s258 + $0xf8] sm:$0xff]
      %v2644 = vld [vmem:[%s258 + $0x108] sm:$0xff]
      %v2645 = vld [vmem:[%s258 + $0x110] sm:$0xff]
      %v2646 = vld [vmem:[%s258 + $0x120] sm:$0xff]
      %v2647 = vld [vmem:[%s258 + $0x128] sm:$0xff]
      %v2648 = vld [vmem:[%s258 + $0x138] sm:$0xff]
      %v2649 = vld [vmem:[%s258 + $0x140] sm:$0xff]
      %v2650 = vld [vmem:[%s258 + $0x150] sm:$0xff]
      %v2651 = vld [vmem:[%s258 + $0x158] sm:$0xff]
      %v2652 = vld [vmem:[%s258 + $0x168] sm:$0xff]
      %v2653 = vld [vmem:[%s258 + $0x170] sm:$0xff]
      %v2654 = vld [vmem:[%s434] sm:$0xff]
      %v2655 = vld [vmem:[%s434 + $0x8] sm:$0xff]
      %v2656 = vld [vmem:[%s434 + $0x18] sm:$0xff]
      %v2657 = vld [vmem:[%s434 + $0x20] sm:$0xff]
      %v2658 = vld [vmem:[%s434 + $0x30] sm:$0xff]
      %v2659 = vld [vmem:[%s434 + $0x38] sm:$0xff]
      %v2660 = vld [vmem:[%s434 + $0x48] sm:$0xff]
      %v2661 = vld [vmem:[%s434 + $0x50] sm:$0xff]
      %v2662 = vld [vmem:[%s434 + $0x60] sm:$0xff]
      %v2663 = vld [vmem:[%s434 + $0x68] sm:$0xff]
      %v2664 = vld [vmem:[%s434 + $0x78] sm:$0xff]
      %v2665 = vld [vmem:[%s434 + $0x80] sm:$0xff]
      %v2666 = vld [vmem:[%s434 + $0x90] sm:$0xff]
      %v2667 = vld [vmem:[%s434 + $0x98] sm:$0xff]
      %v2668 = vld [vmem:[%s434 + $0xa8] sm:$0xff]
      %v2669 = vld [vmem:[%s434 + $0xb0] sm:$0xff]
      %v2670 = vld [vmem:[%s434 + $0xc0] sm:$0xff]
      %v2671 = vld [vmem:[%s434 + $0xc8] sm:$0xff]
      %v2672 = vld [vmem:[%s434 + $0xd8] sm:$0xff]
      %v2673 = vld [vmem:[%s434 + $0xe0] sm:$0xff]
      %v2674 = vld [vmem:[%s434 + $0xf0] sm:$0xff]
      %v2675 = vld [vmem:[%s434 + $0xf8] sm:$0xff]
      %v2676 = vld [vmem:[%s434 + $0x108] sm:$0xff]
      %v2677 = vld [vmem:[%s434 + $0x110] sm:$0xff]
      %v2678 = vld [vmem:[%s434 + $0x120] sm:$0xff]
      %v2679 = vld [vmem:[%s434 + $0x128] sm:$0xff]
      %v2680 = vld [vmem:[%s434 + $0x138] sm:$0xff]
      %v2681 = vld [vmem:[%s434 + $0x140] sm:$0xff]
      %v2682 = vld [vmem:[%s434 + $0x150] sm:$0xff]
      %v2683 = vld [vmem:[%s434 + $0x158] sm:$0xff]
      %v2684 = vld [vmem:[%s434 + $0x168] sm:$0xff]
      %v2685 = vld [vmem:[%s434 + $0x170] sm:$0xff]
      %2718 = vrot.lane.b32.xlu0 %v2622, 8
      %v2719 = vpop.permute.xlu0 %2718
      %2720 = vrot.lane.b32.xlu0 %v2623, 8
      %v2721 = vpop.permute.xlu0 %2720
      %2722 = vrot.lane.b32.xlu0 %v2624, 8
      %v2723 = vpop.permute.xlu0 %2722
      %2724 = vrot.lane.b32.xlu0 %v2625, 8
      %v2725 = vpop.permute.xlu0 %2724
      %2726 = vrot.lane.b32.xlu0 %v2626, 8
      %v2727 = vpop.permute.xlu0 %2726
      %2728 = vrot.lane.b32.xlu0 %v2627, 8
      %v2729 = vpop.permute.xlu0 %2728
      %2730 = vrot.lane.b32.xlu0 %v2628, 8
      %v2731 = vpop.permute.xlu0 %2730
      %2732 = vrot.lane.b32.xlu0 %v2629, 8
      %v2733 = vpop.permute.xlu0 %2732
      %2734 = vrot.lane.b32.xlu0 %v2630, 8
      %v2735 = vpop.permute.xlu0 %2734
      %2736 = vrot.lane.b32.xlu0 %v2631, 8
      %v2737 = vpop.permute.xlu0 %2736
      %2738 = vrot.lane.b32.xlu0 %v2632, 8
      %v2739 = vpop.permute.xlu0 %2738
      %2740 = vrot.lane.b32.xlu0 %v2633, 8
      %v2741 = vpop.permute.xlu0 %2740
      %2742 = vrot.lane.b32.xlu0 %v2634, 8
      %v2743 = vpop.permute.xlu0 %2742
      %2744 = vrot.lane.b32.xlu0 %v2635, 8
      %v2745 = vpop.permute.xlu0 %2744
      %2746 = vrot.lane.b32.xlu0 %v2636, 8
      %v2747 = vpop.permute.xlu0 %2746
      %2748 = vrot.lane.b32.xlu0 %v2637, 8
      %v2749 = vpop.permute.xlu0 %2748
      %2750 = vrot.lane.b32.xlu0 %v2638, 8
      %v2751 = vpop.permute.xlu0 %2750
      %2752 = vrot.lane.b32.xlu0 %v2639, 8
      %v2753 = vpop.permute.xlu0 %2752
      %2754 = vrot.lane.b32.xlu0 %v2640, 8
      %v2755 = vpop.permute.xlu0 %2754
      %2756 = vrot.lane.b32.xlu0 %v2641, 8
      %v2757 = vpop.permute.xlu0 %2756
      %2758 = vrot.lane.b32.xlu0 %v2642, 8
      %v2759 = vpop.permute.xlu0 %2758
      %2760 = vrot.lane.b32.xlu0 %v2643, 8
      %v2761 = vpop.permute.xlu0 %2760
      %2762 = vrot.lane.b32.xlu0 %v2644, 8
      %v2763 = vpop.permute.xlu0 %2762
      %2764 = vrot.lane.b32.xlu0 %v2645, 8
      %v2765 = vpop.permute.xlu0 %2764
      %2766 = vrot.lane.b32.xlu0 %v2646, 8
      %v2767 = vpop.permute.xlu0 %2766
      %2768 = vrot.lane.b32.xlu0 %v2647, 8
      %v2769 = vpop.permute.xlu0 %2768
      %2770 = vrot.lane.b32.xlu0 %v2648, 8
      %v2771 = vpop.permute.xlu0 %2770
      %2772 = vrot.lane.b32.xlu0 %v2649, 8
      %v2773 = vpop.permute.xlu0 %2772
      %2774 = vrot.lane.b32.xlu0 %v2650, 8
      %v2775 = vpop.permute.xlu0 %2774
      %2776 = vrot.lane.b32.xlu0 %v2651, 8
      %v2777 = vpop.permute.xlu0 %2776
      %2778 = vrot.lane.b32.xlu0 %v2652, 8
      %v2779 = vpop.permute.xlu0 %2778
      %2780 = vrot.lane.b32.xlu0 %v2653, 8
      %v2781 = vpop.permute.xlu0 %2780
      %2846 = vrot.lane.b32.xlu0 %v2654, 16
      %v2847 = vpop.permute.xlu0 %2846
      %2848 = vrot.lane.b32.xlu0 %v2655, 16
      %v2849 = vpop.permute.xlu0 %2848
      %2850 = vrot.lane.b32.xlu0 %v2656, 16
      %v2851 = vpop.permute.xlu0 %2850
      %2852 = vrot.lane.b32.xlu0 %v2657, 16
      %v2853 = vpop.permute.xlu0 %2852
      %2854 = vrot.lane.b32.xlu0 %v2658, 16
      %v2855 = vpop.permute.xlu0 %2854
      %2856 = vrot.lane.b32.xlu0 %v2659, 16
      %v2857 = vpop.permute.xlu0 %2856
      %2858 = vrot.lane.b32.xlu0 %v2660, 16
      %v2859 = vpop.permute.xlu0 %2858
      %2860 = vrot.lane.b32.xlu0 %v2661, 16
      %v2861 = vpop.permute.xlu0 %2860
      %2862 = vrot.lane.b32.xlu0 %v2662, 16
      %v2863 = vpop.permute.xlu0 %2862
      %2864 = vrot.lane.b32.xlu0 %v2663, 16
      %v2865 = vpop.permute.xlu0 %2864
      %2866 = vrot.lane.b32.xlu0 %v2664, 16
      %v2867 = vpop.permute.xlu0 %2866
      %2868 = vrot.lane.b32.xlu0 %v2665, 16
      %v2869 = vpop.permute.xlu0 %2868
      %2870 = vrot.lane.b32.xlu0 %v2666, 16
      %v2871 = vpop.permute.xlu0 %2870
      %2872 = vrot.lane.b32.xlu0 %v2667, 16
      %v2873 = vpop.permute.xlu0 %2872
      %2874 = vrot.lane.b32.xlu0 %v2668, 16
      %v2875 = vpop.permute.xlu0 %2874
      %2876 = vrot.lane.b32.xlu0 %v2669, 16
      %v2877 = vpop.permute.xlu0 %2876
      %2878 = vrot.lane.b32.xlu0 %v2670, 16
      %v2879 = vpop.permute.xlu0 %2878
      %2880 = vrot.lane.b32.xlu0 %v2671, 16
      %v2881 = vpop.permute.xlu0 %2880
      %2882 = vrot.lane.b32.xlu0 %v2672, 16
      %v2883 = vpop.permute.xlu0 %2882
      %2884 = vrot.lane.b32.xlu0 %v2673, 16
      %v2885 = vpop.permute.xlu0 %2884
      %2886 = vrot.lane.b32.xlu0 %v2674, 16
      %v2887 = vpop.permute.xlu0 %2886
      %2888 = vrot.lane.b32.xlu0 %v2675, 16
      %v2889 = vpop.permute.xlu0 %2888
      %2890 = vrot.lane.b32.xlu0 %v2676, 16
      %v2891 = vpop.permute.xlu0 %2890
      %2892 = vrot.lane.b32.xlu0 %v2677, 16
      %v2893 = vpop.permute.xlu0 %2892
      %2894 = vrot.lane.b32.xlu0 %v2678, 16
      %v2895 = vpop.permute.xlu0 %2894
      %2896 = vrot.lane.b32.xlu0 %v2679, 16
      %v2897 = vpop.permute.xlu0 %2896
      %2898 = vrot.lane.b32.xlu0 %v2680, 16
      %v2899 = vpop.permute.xlu0 %2898
      %2900 = vrot.lane.b32.xlu0 %v2681, 16
      %v2901 = vpop.permute.xlu0 %2900
      %2902 = vrot.lane.b32.xlu0 %v2682, 16
      %v2903 = vpop.permute.xlu0 %2902
      %2904 = vrot.lane.b32.xlu0 %v2683, 16
      %v2905 = vpop.permute.xlu0 %2904
      %2906 = vrot.lane.b32.xlu0 %v2684, 16
      %v2907 = vpop.permute.xlu0 %2906
      %2908 = vrot.lane.b32.xlu0 %v2685, 16
      %v2909 = vpop.permute.xlu0 %2908
      %v2942 = vsel %vm259, %v2590, %v2719
      %v2943 = vsel %vm259, %v2591, %v2721
      %v2944 = vsel %vm259, %v2592, %v2723
      %v2945 = vsel %vm259, %v2593, %v2725
      %v2946 = vsel %vm259, %v2594, %v2727
      %v2947 = vsel %vm259, %v2595, %v2729
      %v2948 = vsel %vm259, %v2596, %v2731
      %v2949 = vsel %vm259, %v2597, %v2733
      %v2950 = vsel %vm259, %v2598, %v2735
      %v2951 = vsel %vm259, %v2599, %v2737
      %v2952 = vsel %vm259, %v2600, %v2739
      %v2953 = vsel %vm259, %v2601, %v2741
      %v2954 = vsel %vm259, %v2602, %v2743
      %v2955 = vsel %vm259, %v2603, %v2745
      %v2956 = vsel %vm259, %v2604, %v2747
      %v2957 = vsel %vm259, %v2605, %v2749
      %v2958 = vsel %vm259, %v2606, %v2751
      %v2959 = vsel %vm259, %v2607, %v2753
      %v2960 = vsel %vm259, %v2608, %v2755
      %v2961 = vsel %vm259, %v2609, %v2757
      %v2962 = vsel %vm259, %v2610, %v2759
      %v2963 = vsel %vm259, %v2611, %v2761
      %v2964 = vsel %vm259, %v2612, %v2763
      %v2965 = vsel %vm259, %v2613, %v2765
      %v2966 = vsel %vm259, %v2614, %v2767
      %v2967 = vsel %vm259, %v2615, %v2769
      %v2968 = vsel %vm259, %v2616, %v2771
      %v2969 = vsel %vm259, %v2617, %v2773
      %v2970 = vsel %vm259, %v2618, %v2775
      %v2971 = vsel %vm259, %v2619, %v2777
      %v2972 = vsel %vm259, %v2620, %v2779
      %v2973 = vsel %vm259, %v2621, %v2781
      %v2974 = vsel %vm755, %v2942, %v2847
      %v2975 = vsel %vm755, %v2943, %v2849
      %v2976 = vsel %vm755, %v2944, %v2851
      %v2977 = vsel %vm755, %v2945, %v2853
      %v2978 = vsel %vm755, %v2946, %v2855
      %v2979 = vsel %vm755, %v2947, %v2857
      %v2980 = vsel %vm755, %v2948, %v2859
      %v2981 = vsel %vm755, %v2949, %v2861
      %v2982 = vsel %vm755, %v2950, %v2863
      %v2983 = vsel %vm755, %v2951, %v2865
      %v2984 = vsel %vm755, %v2952, %v2867
      %v2985 = vsel %vm755, %v2953, %v2869
      %v2986 = vsel %vm755, %v2954, %v2871
      %v2987 = vsel %vm755, %v2955, %v2873
      %v2988 = vsel %vm755, %v2956, %v2875
      %v2989 = vsel %vm755, %v2957, %v2877
      %v2990 = vsel %vm755, %v2958, %v2879
      %v2991 = vsel %vm755, %v2959, %v2881
      %v2992 = vsel %vm755, %v2960, %v2883
      %v2993 = vsel %vm755, %v2961, %v2885
      %v2994 = vsel %vm755, %v2962, %v2887
      %v2995 = vsel %vm755, %v2963, %v2889
      %v2996 = vsel %vm755, %v2964, %v2891
      %v2997 = vsel %vm755, %v2965, %v2893
      %v2998 = vsel %vm755, %v2966, %v2895
      %v2999 = vsel %vm755, %v2967, %v2897
      %v3000 = vsel %vm755, %v2968, %v2899
      %v3001 = vsel %vm755, %v2969, %v2901
      %v3002 = vsel %vm755, %v2970, %v2903
      %v3003 = vsel %vm755, %v2971, %v2905
      %v3004 = vsel %vm755, %v2972, %v2907
      %v3005 = vsel %vm755, %v2973, %v2909
      %v3006 = vpack.c.bf16 %v2975, %v2974
      %v3007 = vpack.c.bf16 %v2977, %v2976
      %v3008 = vpack.c.bf16 %v2979, %v2978
      %v3009 = vpack.c.bf16 %v2981, %v2980
      %v3010 = vpack.c.bf16 %v2983, %v2982
      %v3011 = vpack.c.bf16 %v2985, %v2984
      %v3012 = vpack.c.bf16 %v2987, %v2986
      %v3013 = vpack.c.bf16 %v2989, %v2988
      %v3014 = vpack.c.bf16 %v2991, %v2990
      %v3015 = vpack.c.bf16 %v2993, %v2992
      %v3016 = vpack.c.bf16 %v2995, %v2994
      %v3017 = vpack.c.bf16 %v2997, %v2996
      %v3018 = vpack.c.bf16 %v2999, %v2998
      %v3019 = vpack.c.bf16 %v3001, %v3000
      %v3020 = vpack.c.bf16 %v3003, %v3002
      %v3021 = vpack.c.bf16 %v3005, %v3004
      %v3022 = vld [vmem:[%s3] sm:$0xf]
      %v3023 = vld [vmem:[%s3 + $0x4] sm:$0xf]
      %v3024 = vld [vmem:[%s3 + $0x8] sm:$0xf]
      %v3025 = vld [vmem:[#allocation2 + $0x1] sm:$0xff]
      %v3026 = vld [vmem:[#allocation2 + $0x9] sm:$0xff]
      %v3027 = vld [vmem:[#allocation2 + $0x19] sm:$0xff]
      %v3028 = vld [vmem:[#allocation2 + $0x21] sm:$0xff]
      %v3029 = vld [vmem:[#allocation2 + $0x31] sm:$0xff]
      %v3030 = vld [vmem:[#allocation2 + $0x39] sm:$0xff]
      %v3031 = vld [vmem:[#allocation2 + $0x49] sm:$0xff]
      %v3032 = vld [vmem:[#allocation2 + $0x51] sm:$0xff]
      %v3033 = vld [vmem:[#allocation2 + $0x61] sm:$0xff]
      %v3034 = vld [vmem:[#allocation2 + $0x69] sm:$0xff]
      %v3035 = vld [vmem:[#allocation2 + $0x79] sm:$0xff]
      %v3036 = vld [vmem:[#allocation2 + $0x81] sm:$0xff]
      %v3037 = vld [vmem:[#allocation2 + $0x91] sm:$0xff]
      %v3038 = vld [vmem:[#allocation2 + $0x99] sm:$0xff]
      %v3039 = vld [vmem:[#allocation2 + $0xa9] sm:$0xff]
      %v3040 = vld [vmem:[#allocation2 + $0xb1] sm:$0xff]
      %v3041 = vld [vmem:[#allocation2 + $0xc1] sm:$0xff]
      %v3042 = vld [vmem:[#allocation2 + $0xc9] sm:$0xff]
      %v3043 = vld [vmem:[#allocation2 + $0xd9] sm:$0xff]
      %v3044 = vld [vmem:[#allocation2 + $0xe1] sm:$0xff]
      %v3045 = vld [vmem:[#allocation2 + $0xf1] sm:$0xff]
      %v3046 = vld [vmem:[#allocation2 + $0xf9] sm:$0xff]
      %v3047 = vld [vmem:[#allocation2 + $0x109] sm:$0xff]
      %v3048 = vld [vmem:[#allocation2 + $0x111] sm:$0xff]
      %v3049 = vld [vmem:[#allocation2 + $0x121] sm:$0xff]
      %v3050 = vld [vmem:[#allocation2 + $0x129] sm:$0xff]
      %v3051 = vld [vmem:[#allocation2 + $0x139] sm:$0xff]
      %v3052 = vld [vmem:[#allocation2 + $0x141] sm:$0xff]
      %v3053 = vld [vmem:[#allocation2 + $0x151] sm:$0xff]
      %v3054 = vld [vmem:[#allocation2 + $0x159] sm:$0xff]
      %v3055 = vld [vmem:[#allocation2 + $0x169] sm:$0xff]
      %v3056 = vld [vmem:[#allocation2 + $0x171] sm:$0xff]
      %v3057 = vld [vmem:[%s258 + $0x1] sm:$0xff]
      %v3058 = vld [vmem:[%s258 + $0x9] sm:$0xff]
      %v3059 = vld [vmem:[%s258 + $0x19] sm:$0xff]
      %v3060 = vld [vmem:[%s258 + $0x21] sm:$0xff]
      %v3061 = vld [vmem:[%s258 + $0x31] sm:$0xff]
      %v3062 = vld [vmem:[%s258 + $0x39] sm:$0xff]
      %v3063 = vld [vmem:[%s258 + $0x49] sm:$0xff]
      %v3064 = vld [vmem:[%s258 + $0x51] sm:$0xff]
      %v3065 = vld [vmem:[%s258 + $0x61] sm:$0xff]
      %v3066 = vld [vmem:[%s258 + $0x69] sm:$0xff]
      %v3067 = vld [vmem:[%s258 + $0x79] sm:$0xff]
      %v3068 = vld [vmem:[%s258 + $0x81] sm:$0xff]
      %v3069 = vld [vmem:[%s258 + $0x91] sm:$0xff]
      %v3070 = vld [vmem:[%s258 + $0x99] sm:$0xff]
      %v3071 = vld [vmem:[%s258 + $0xa9] sm:$0xff]
      %v3072 = vld [vmem:[%s258 + $0xb1] sm:$0xff]
      %v3073 = vld [vmem:[%s258 + $0xc1] sm:$0xff]
      %v3074 = vld [vmem:[%s258 + $0xc9] sm:$0xff]
      %v3075 = vld [vmem:[%s258 + $0xd9] sm:$0xff]
      %v3076 = vld [vmem:[%s258 + $0xe1] sm:$0xff]
      %v3077 = vld [vmem:[%s258 + $0xf1] sm:$0xff]
      %v3078 = vld [vmem:[%s258 + $0xf9] sm:$0xff]
      %v3079 = vld [vmem:[%s258 + $0x109] sm:$0xff]
      %v3080 = vld [vmem:[%s258 + $0x111] sm:$0xff]
      %v3081 = vld [vmem:[%s258 + $0x121] sm:$0xff]
      %v3082 = vld [vmem:[%s258 + $0x129] sm:$0xff]
      %v3083 = vld [vmem:[%s258 + $0x139] sm:$0xff]
      %v3084 = vld [vmem:[%s258 + $0x141] sm:$0xff]
      %v3085 = vld [vmem:[%s258 + $0x151] sm:$0xff]
      %v3086 = vld [vmem:[%s258 + $0x159] sm:$0xff]
      %v3087 = vld [vmem:[%s258 + $0x169] sm:$0xff]
      %v3088 = vld [vmem:[%s258 + $0x171] sm:$0xff]
      %v3089 = vld [vmem:[%s434 + $0x1] sm:$0xff]
      %v3090 = vld [vmem:[%s434 + $0x9] sm:$0xff]
      %v3091 = vld [vmem:[%s434 + $0x19] sm:$0xff]
      %v3092 = vld [vmem:[%s434 + $0x21] sm:$0xff]
      %v3093 = vld [vmem:[%s434 + $0x31] sm:$0xff]
      %v3094 = vld [vmem:[%s434 + $0x39] sm:$0xff]
      %v3095 = vld [vmem:[%s434 + $0x49] sm:$0xff]
      %v3096 = vld [vmem:[%s434 + $0x51] sm:$0xff]
      %v3097 = vld [vmem:[%s434 + $0x61] sm:$0xff]
      %v3098 = vld [vmem:[%s434 + $0x69] sm:$0xff]
      %v3099 = vld [vmem:[%s434 + $0x79] sm:$0xff]
      %v3100 = vld [vmem:[%s434 + $0x81] sm:$0xff]
      %v3101 = vld [vmem:[%s434 + $0x91] sm:$0xff]
      %v3102 = vld [vmem:[%s434 + $0x99] sm:$0xff]
      %v3103 = vld [vmem:[%s434 + $0xa9] sm:$0xff]
      %v3104 = vld [vmem:[%s434 + $0xb1] sm:$0xff]
      %v3105 = vld [vmem:[%s434 + $0xc1] sm:$0xff]
      %v3106 = vld [vmem:[%s434 + $0xc9] sm:$0xff]
      %v3107 = vld [vmem:[%s434 + $0xd9] sm:$0xff]
      %v3108 = vld [vmem:[%s434 + $0xe1] sm:$0xff]
      %v3109 = vld [vmem:[%s434 + $0xf1] sm:$0xff]
      %v3110 = vld [vmem:[%s434 + $0xf9] sm:$0xff]
      %v3111 = vld [vmem:[%s434 + $0x109] sm:$0xff]
      %v3112 = vld [vmem:[%s434 + $0x111] sm:$0xff]
      %v3113 = vld [vmem:[%s434 + $0x121] sm:$0xff]
      %v3114 = vld [vmem:[%s434 + $0x129] sm:$0xff]
      %v3115 = vld [vmem:[%s434 + $0x139] sm:$0xff]
      %v3116 = vld [vmem:[%s434 + $0x141] sm:$0xff]
      %v3117 = vld [vmem:[%s434 + $0x151] sm:$0xff]
      %v3118 = vld [vmem:[%s434 + $0x159] sm:$0xff]
      %v3119 = vld [vmem:[%s434 + $0x169] sm:$0xff]
      %v3120 = vld [vmem:[%s434 + $0x171] sm:$0xff]
      %3153 = vrot.lane.b32.xlu0 %v3057, 8
      %v3154 = vpop.permute.xlu0 %3153
      %3155 = vrot.lane.b32.xlu0 %v3058, 8
      %v3156 = vpop.permute.xlu0 %3155
      %3157 = vrot.lane.b32.xlu0 %v3059, 8
      %v3158 = vpop.permute.xlu0 %3157
      %3159 = vrot.lane.b32.xlu0 %v3060, 8
      %v3160 = vpop.permute.xlu0 %3159
      %3161 = vrot.lane.b32.xlu0 %v3061, 8
      %v3162 = vpop.permute.xlu0 %3161
      %3163 = vrot.lane.b32.xlu0 %v3062, 8
      %v3164 = vpop.permute.xlu0 %3163
      %3165 = vrot.lane.b32.xlu0 %v3063, 8
      %v3166 = vpop.permute.xlu0 %3165
      %3167 = vrot.lane.b32.xlu0 %v3064, 8
      %v3168 = vpop.permute.xlu0 %3167
      %3169 = vrot.lane.b32.xlu0 %v3065, 8
      %v3170 = vpop.permute.xlu0 %3169
      %3171 = vrot.lane.b32.xlu0 %v3066, 8
      %v3172 = vpop.permute.xlu0 %3171
      %3173 = vrot.lane.b32.xlu0 %v3067, 8
      %v3174 = vpop.permute.xlu0 %3173
      %3175 = vrot.lane.b32.xlu0 %v3068, 8
      %v3176 = vpop.permute.xlu0 %3175
      %3177 = vrot.lane.b32.xlu0 %v3069, 8
      %v3178 = vpop.permute.xlu0 %3177
      %3179 = vrot.lane.b32.xlu0 %v3070, 8
      %v3180 = vpop.permute.xlu0 %3179
      %3181 = vrot.lane.b32.xlu0 %v3071, 8
      %v3182 = vpop.permute.xlu0 %3181
      %3183 = vrot.lane.b32.xlu0 %v3072, 8
      %v3184 = vpop.permute.xlu0 %3183
      %3185 = vrot.lane.b32.xlu0 %v3073, 8
      %v3186 = vpop.permute.xlu0 %3185
      %3187 = vrot.lane.b32.xlu0 %v3074, 8
      %v3188 = vpop.permute.xlu0 %3187
      %3189 = vrot.lane.b32.xlu0 %v3075, 8
      %v3190 = vpop.permute.xlu0 %3189
      %3191 = vrot.lane.b32.xlu0 %v3076, 8
      %v3192 = vpop.permute.xlu0 %3191
      %3193 = vrot.lane.b32.xlu0 %v3077, 8
      %v3194 = vpop.permute.xlu0 %3193
      %3195 = vrot.lane.b32.xlu0 %v3078, 8
      %v3196 = vpop.permute.xlu0 %3195
      %3197 = vrot.lane.b32.xlu0 %v3079, 8
      %v3198 = vpop.permute.xlu0 %3197
      %3199 = vrot.lane.b32.xlu0 %v3080, 8
      %v3200 = vpop.permute.xlu0 %3199
      %3201 = vrot.lane.b32.xlu0 %v3081, 8
      %v3202 = vpop.permute.xlu0 %3201
      %3203 = vrot.lane.b32.xlu0 %v3082, 8
      %v3204 = vpop.permute.xlu0 %3203
      %3205 = vrot.lane.b32.xlu0 %v3083, 8
      %v3206 = vpop.permute.xlu0 %3205
      %3207 = vrot.lane.b32.xlu0 %v3084, 8
      %v3208 = vpop.permute.xlu0 %3207
      %3209 = vrot.lane.b32.xlu0 %v3085, 8
      %v3210 = vpop.permute.xlu0 %3209
      %3211 = vrot.lane.b32.xlu0 %v3086, 8
      %v3212 = vpop.permute.xlu0 %3211
      %3213 = vrot.lane.b32.xlu0 %v3087, 8
      %v3214 = vpop.permute.xlu0 %3213
      %3215 = vrot.lane.b32.xlu0 %v3088, 8
      %v3216 = vpop.permute.xlu0 %3215
      %3281 = vrot.lane.b32.xlu0 %v3089, 16
      %v3282 = vpop.permute.xlu0 %3281
      %3283 = vrot.lane.b32.xlu0 %v3090, 16
      %v3284 = vpop.permute.xlu0 %3283
      %3285 = vrot.lane.b32.xlu0 %v3091, 16
      %v3286 = vpop.permute.xlu0 %3285
      %3287 = vrot.lane.b32.xlu0 %v3092, 16
      %v3288 = vpop.permute.xlu0 %3287
      %3289 = vrot.lane.b32.xlu0 %v3093, 16
      %v3290 = vpop.permute.xlu0 %3289
      %3291 = vrot.lane.b32.xlu0 %v3094, 16
      %v3292 = vpop.permute.xlu0 %3291
      %3293 = vrot.lane.b32.xlu0 %v3095, 16
      %v3294 = vpop.permute.xlu0 %3293
      %3295 = vrot.lane.b32.xlu0 %v3096, 16
      %v3296 = vpop.permute.xlu0 %3295
      %3297 = vrot.lane.b32.xlu0 %v3097, 16
      %v3298 = vpop.permute.xlu0 %3297
      %3299 = vrot.lane.b32.xlu0 %v3098, 16
      %v3300 = vpop.permute.xlu0 %3299
      %3301 = vrot.lane.b32.xlu0 %v3099, 16
      %v3302 = vpop.permute.xlu0 %3301
      %3303 = vrot.lane.b32.xlu0 %v3100, 16
      %v3304 = vpop.permute.xlu0 %3303
      %3305 = vrot.lane.b32.xlu0 %v3101, 16
      %v3306 = vpop.permute.xlu0 %3305
      %3307 = vrot.lane.b32.xlu0 %v3102, 16
      %v3308 = vpop.permute.xlu0 %3307
      %3309 = vrot.lane.b32.xlu0 %v3103, 16
      %v3310 = vpop.permute.xlu0 %3309
      %3311 = vrot.lane.b32.xlu0 %v3104, 16
      %v3312 = vpop.permute.xlu0 %3311
      %3313 = vrot.lane.b32.xlu0 %v3105, 16
      %v3314 = vpop.permute.xlu0 %3313
      %3315 = vrot.lane.b32.xlu0 %v3106, 16
      %v3316 = vpop.permute.xlu0 %3315
      %3317 = vrot.lane.b32.xlu0 %v3107, 16
      %v3318 = vpop.permute.xlu0 %3317
      %3319 = vrot.lane.b32.xlu0 %v3108, 16
      %v3320 = vpop.permute.xlu0 %3319
      %3321 = vrot.lane.b32.xlu0 %v3109, 16
      %v3322 = vpop.permute.xlu0 %3321
      %3323 = vrot.lane.b32.xlu0 %v3110, 16
      %v3324 = vpop.permute.xlu0 %3323
      %3325 = vrot.lane.b32.xlu0 %v3111, 16
      %v3326 = vpop.permute.xlu0 %3325
      %3327 = vrot.lane.b32.xlu0 %v3112, 16
      %v3328 = vpop.permute.xlu0 %3327
      %3329 = vrot.lane.b32.xlu0 %v3113, 16
      %v3330 = vpop.permute.xlu0 %3329
      %3331 = vrot.lane.b32.xlu0 %v3114, 16
      %v3332 = vpop.permute.xlu0 %3331
      %3333 = vrot.lane.b32.xlu0 %v3115, 16
      %v3334 = vpop.permute.xlu0 %3333
      %3335 = vrot.lane.b32.xlu0 %v3116, 16
      %v3336 = vpop.permute.xlu0 %3335
      %3337 = vrot.lane.b32.xlu0 %v3117, 16
      %v3338 = vpop.permute.xlu0 %3337
      %3339 = vrot.lane.b32.xlu0 %v3118, 16
      %v3340 = vpop.permute.xlu0 %3339
      %3341 = vrot.lane.b32.xlu0 %v3119, 16
      %v3342 = vpop.permute.xlu0 %3341
      %3343 = vrot.lane.b32.xlu0 %v3120, 16
      %v3344 = vpop.permute.xlu0 %3343
      %v3377 = vsel %vm259, %v3025, %v3154
      %v3378 = vsel %vm259, %v3026, %v3156
      %v3379 = vsel %vm259, %v3027, %v3158
      %v3380 = vsel %vm259, %v3028, %v3160
      %v3381 = vsel %vm259, %v3029, %v3162
      %v3382 = vsel %vm259, %v3030, %v3164
      %v3383 = vsel %vm259, %v3031, %v3166
      %v3384 = vsel %vm259, %v3032, %v3168
      %v3385 = vsel %vm259, %v3033, %v3170
      %v3386 = vsel %vm259, %v3034, %v3172
      %v3387 = vsel %vm259, %v3035, %v3174
      %v3388 = vsel %vm259, %v3036, %v3176
      %v3389 = vsel %vm259, %v3037, %v3178
      %v3390 = vsel %vm259, %v3038, %v3180
      %v3391 = vsel %vm259, %v3039, %v3182
      %v3392 = vsel %vm259, %v3040, %v3184
      %v3393 = vsel %vm259, %v3041, %v3186
      %v3394 = vsel %vm259, %v3042, %v3188
      %v3395 = vsel %vm259, %v3043, %v3190
      %v3396 = vsel %vm259, %v3044, %v3192
      %v3397 = vsel %vm259, %v3045, %v3194
      %v3398 = vsel %vm259, %v3046, %v3196
      %v3399 = vsel %vm259, %v3047, %v3198
      %v3400 = vsel %vm259, %v3048, %v3200
      %v3401 = vsel %vm259, %v3049, %v3202
      %v3402 = vsel %vm259, %v3050, %v3204
      %v3403 = vsel %vm259, %v3051, %v3206
      %v3404 = vsel %vm259, %v3052, %v3208
      %v3405 = vsel %vm259, %v3053, %v3210
      %v3406 = vsel %vm259, %v3054, %v3212
      %v3407 = vsel %vm259, %v3055, %v3214
      %v3408 = vsel %vm259, %v3056, %v3216
      %v3409 = vsel %vm755, %v3377, %v3282
      %v3410 = vsel %vm755, %v3378, %v3284
      %v3411 = vsel %vm755, %v3379, %v3286
      %v3412 = vsel %vm755, %v3380, %v3288
      %v3413 = vsel %vm755, %v3381, %v3290
      %v3414 = vsel %vm755, %v3382, %v3292
      %v3415 = vsel %vm755, %v3383, %v3294
      %v3416 = vsel %vm755, %v3384, %v3296
      %v3417 = vsel %vm755, %v3385, %v3298
      %v3418 = vsel %vm755, %v3386, %v3300
      %v3419 = vsel %vm755, %v3387, %v3302
      %v3420 = vsel %vm755, %v3388, %v3304
      %v3421 = vsel %vm755, %v3389, %v3306
      %v3422 = vsel %vm755, %v3390, %v3308
      %v3423 = vsel %vm755, %v3391, %v3310
      %v3424 = vsel %vm755, %v3392, %v3312
      %v3425 = vsel %vm755, %v3393, %v3314
      %v3426 = vsel %vm755, %v3394, %v3316
      %v3427 = vsel %vm755, %v3395, %v3318
      %v3428 = vsel %vm755, %v3396, %v3320
      %v3429 = vsel %vm755, %v3397, %v3322
      %v3430 = vsel %vm755, %v3398, %v3324
      %v3431 = vsel %vm755, %v3399, %v3326
      %v3432 = vsel %vm755, %v3400, %v3328
      %v3433 = vsel %vm755, %v3401, %v3330
      %v3434 = vsel %vm755, %v3402, %v3332
      %v3435 = vsel %vm755, %v3403, %v3334
      %v3436 = vsel %vm755, %v3404, %v3336
      %v3437 = vsel %vm755, %v3405, %v3338
      %v3438 = vsel %vm755, %v3406, %v3340
      %v3439 = vsel %vm755, %v3407, %v3342
      %v3440 = vsel %vm755, %v3408, %v3344
      %v3441 = vpack.c.bf16 %v3410, %v3409
      %v3442 = vpack.c.bf16 %v3412, %v3411
      %v3443 = vpack.c.bf16 %v3414, %v3413
      %v3444 = vpack.c.bf16 %v3416, %v3415
      %v3445 = vpack.c.bf16 %v3418, %v3417
      %v3446 = vpack.c.bf16 %v3420, %v3419
      %v3447 = vpack.c.bf16 %v3422, %v3421
      %v3448 = vpack.c.bf16 %v3424, %v3423
      %v3449 = vpack.c.bf16 %v3426, %v3425
      %v3450 = vpack.c.bf16 %v3428, %v3427
      %v3451 = vpack.c.bf16 %v3430, %v3429
      %v3452 = vpack.c.bf16 %v3432, %v3431
      %v3453 = vpack.c.bf16 %v3434, %v3433
      %v3454 = vpack.c.bf16 %v3436, %v3435
      %v3455 = vpack.c.bf16 %v3438, %v3437
      %v3456 = vpack.c.bf16 %v3440, %v3439
      %s3457 = scalar_lea.vmem %s3, 12
      %v3458 = vld [vmem:[%s3457] sm:$0xf]
      %v3459 = vld [vmem:[%s3457 + $0x4] sm:$0xf]
      %v3460 = vld [vmem:[%s3457 + $0x8] sm:$0xf]
      %v3464 = vunpack.c.l.b16 %v3458
      %v3465 = vunpack.c.l.b16 %v3459
      %v3466 = vunpack.c.l.b16 %v3460
      %v3467 = vpack.c.b16 %v3465, %v3464
      %v3468 = vpack.c.b16 %v3466, %v3466
      %v3471 = vsel %vm1252, %v3441, 0
      %v3474 = vsel %vm1252, %v3442, 0
      %v3477 = vsel %vm1252, %v3443, 0
      %v3480 = vsel %vm1252, %v3444, 0
      %v3483 = vsel %vm1252, %v3445, 0
      %v3486 = vsel %vm1252, %v3446, 0
      %v3489 = vsel %vm1252, %v3447, 0
      %v3492 = vsel %vm1252, %v3448, 0
      %v3495 = vsel %vm1252, %v3449, 0
      %v3498 = vsel %vm1252, %v3450, 0
      %v3501 = vsel %vm1252, %v3451, 0
      %v3504 = vsel %vm1252, %v3452, 0
      %v3507 = vsel %vm1252, %v3453, 0
      %v3510 = vsel %vm1252, %v3454, 0
      %v3513 = vsel %vm1252, %v3455, 0
      %v3516 = vsel %vm1252, %v3456, 0
      %v3519 = vsel %vm1301, %v3468, 0
      %3521 = vmatpush.bf16.msra.mxu0 0
      %3522 = vmatpush.bf16.msra.mxu0 0
      %3523 = vmatpush.bf16.msra.mxu0 0
      %3524 = vmatpush.bf16.msra.mxu0 0
      %3525 = vmatpush.bf16.msra.mxu0 0
      %3526 = vmatpush.bf16.msra.mxu0 0
      %3527 = vmatpush.bf16.msra.mxu0 %v3519
      %3528 = vmatpush.bf16.msra.mxu0 %v3467
      %3529 = vmatmul.bf16.gmra.mxu0 %v3471
      %v3530 = vpop.f32.mrf.mxu0
      %v3531 = vadd.f32 0.0, %v3530
      %v3532 = vpop.f32.mrf.mxu0
      %v3533 = vadd.f32 0.0, %v3532
      %3534 = vmatmul.bf16.gmra.mxu0 %v3474
      %v3535 = vpop.f32.mrf.mxu0
      %v3536 = vadd.f32 0.0, %v3535
      %v3537 = vpop.f32.mrf.mxu0
      %v3538 = vadd.f32 0.0, %v3537
      %3539 = vmatmul.bf16.gmra.mxu0 %v3477
      %v3540 = vpop.f32.mrf.mxu0
      %v3541 = vadd.f32 0.0, %v3540
      %v3542 = vpop.f32.mrf.mxu0
      %v3543 = vadd.f32 0.0, %v3542
      %3544 = vmatmul.bf16.gmra.mxu0 %v3480
      %v3545 = vpop.f32.mrf.mxu0
      %v3546 = vadd.f32 0.0, %v3545
      %v3547 = vpop.f32.mrf.mxu0
      %v3548 = vadd.f32 0.0, %v3547
      %3549 = vmatmul.bf16.gmra.mxu0 %v3483
      %v3550 = vpop.f32.mrf.mxu0
      %v3551 = vadd.f32 0.0, %v3550
      %v3552 = vpop.f32.mrf.mxu0
      %v3553 = vadd.f32 0.0, %v3552
      %3554 = vmatmul.bf16.gmra.mxu0 %v3486
      %v3555 = vpop.f32.mrf.mxu0
      %v3556 = vadd.f32 0.0, %v3555
      %v3557 = vpop.f32.mrf.mxu0
      %v3558 = vadd.f32 0.0, %v3557
      %3559 = vmatmul.bf16.gmra.mxu0 %v3489
      %v3560 = vpop.f32.mrf.mxu0
      %v3561 = vadd.f32 0.0, %v3560
      %v3562 = vpop.f32.mrf.mxu0
      %v3563 = vadd.f32 0.0, %v3562
      %3564 = vmatmul.bf16.gmra.mxu0 %v3492
      %v3565 = vpop.f32.mrf.mxu0
      %v3566 = vadd.f32 0.0, %v3565
      %v3567 = vpop.f32.mrf.mxu0
      %v3568 = vadd.f32 0.0, %v3567
      %3569 = vmatmul.bf16.gmra.mxu0 %v3495
      %v3570 = vpop.f32.mrf.mxu0
      %v3571 = vadd.f32 0.0, %v3570
      %v3572 = vpop.f32.mrf.mxu0
      %v3573 = vadd.f32 0.0, %v3572
      %3574 = vmatmul.bf16.gmra.mxu0 %v3498
      %v3575 = vpop.f32.mrf.mxu0
      %v3576 = vadd.f32 0.0, %v3575
      %v3577 = vpop.f32.mrf.mxu0
      %v3578 = vadd.f32 0.0, %v3577
      %3579 = vmatmul.bf16.gmra.mxu0 %v3501
      %v3580 = vpop.f32.mrf.mxu0
      %v3581 = vadd.f32 0.0, %v3580
      %v3582 = vpop.f32.mrf.mxu0
      %v3583 = vadd.f32 0.0, %v3582
      %3584 = vmatmul.bf16.gmra.mxu0 %v3504
      %v3585 = vpop.f32.mrf.mxu0
      %v3586 = vadd.f32 0.0, %v3585
      %v3587 = vpop.f32.mrf.mxu0
      %v3588 = vadd.f32 0.0, %v3587
      %3589 = vmatmul.bf16.gmra.mxu0 %v3507
      %v3590 = vpop.f32.mrf.mxu0
      %v3591 = vadd.f32 0.0, %v3590
      %v3592 = vpop.f32.mrf.mxu0
      %v3593 = vadd.f32 0.0, %v3592
      %3594 = vmatmul.bf16.gmra.mxu0 %v3510
      %v3595 = vpop.f32.mrf.mxu0
      %v3596 = vadd.f32 0.0, %v3595
      %v3597 = vpop.f32.mrf.mxu0
      %v3598 = vadd.f32 0.0, %v3597
      %3599 = vmatmul.bf16.gmra.mxu0 %v3513
      %v3600 = vpop.f32.mrf.mxu0
      %v3601 = vadd.f32 0.0, %v3600
      %v3602 = vpop.f32.mrf.mxu0
      %v3603 = vadd.f32 0.0, %v3602
      %3604 = vmatmul.bf16.gmra.mxu0 %v3516
      %v3605 = vpop.f32.mrf.mxu0
      %v3606 = vadd.f32 0.0, %v3605
      %v3607 = vpop.f32.mrf.mxu0
      %v3608 = vadd.f32 0.0, %v3607
      %3609 = vdwg.mxu0
      %v3613 = vunpack.c.l.b16 %v3022
      %v3614 = vunpack.c.l.b16 %v3023
      %v3615 = vunpack.c.l.b16 %v3024
      %v3616 = vpack.c.b16 %v3614, %v3613
      %v3617 = vpack.c.b16 %v3615, %v3615
      %v3620 = vsel %vm1252, %v3006, 0
      %v3623 = vsel %vm1252, %v3007, 0
      %v3626 = vsel %vm1252, %v3008, 0
      %v3629 = vsel %vm1252, %v3009, 0
      %v3632 = vsel %vm1252, %v3010, 0
      %v3635 = vsel %vm1252, %v3011, 0
      %v3638 = vsel %vm1252, %v3012, 0
      %v3641 = vsel %vm1252, %v3013, 0
      %v3644 = vsel %vm1252, %v3014, 0
      %v3647 = vsel %vm1252, %v3015, 0
      %v3650 = vsel %vm1252, %v3016, 0
      %v3653 = vsel %vm1252, %v3017, 0
      %v3656 = vsel %vm1252, %v3018, 0
      %v3659 = vsel %vm1252, %v3019, 0
      %v3662 = vsel %vm1252, %v3020, 0
      %v3665 = vsel %vm1252, %v3021, 0
      %v3668 = vsel %vm1301, %v3617, 0
      %3670 = vmatpush.bf16.msra.mxu0 0
      %3671 = vmatpush.bf16.msra.mxu0 0
      %3672 = vmatpush.bf16.msra.mxu0 0
      %3673 = vmatpush.bf16.msra.mxu0 0
      %3674 = vmatpush.bf16.msra.mxu0 0
      %3675 = vmatpush.bf16.msra.mxu0 0
      %3676 = vmatpush.bf16.msra.mxu0 %v3668
      %3677 = vmatpush.bf16.msra.mxu0 %v3616
      %3678 = vmatmul.bf16.gmra.mxu0 %v3620
      %v3679 = vpop.f32.mrf.mxu0
      %v3680 = vadd.f32 %v3531, %v3679
      %v3681 = vpop.f32.mrf.mxu0
      %v3682 = vadd.f32 %v3533, %v3681
      %3683 = vmatmul.bf16.gmra.mxu0 %v3623
      %v3684 = vpop.f32.mrf.mxu0
      %v3685 = vadd.f32 %v3536, %v3684
      %v3686 = vpop.f32.mrf.mxu0
      %v3687 = vadd.f32 %v3538, %v3686
      %3688 = vmatmul.bf16.gmra.mxu0 %v3626
      %v3689 = vpop.f32.mrf.mxu0
      %v3690 = vadd.f32 %v3541, %v3689
      %v3691 = vpop.f32.mrf.mxu0
      %v3692 = vadd.f32 %v3543, %v3691
      %3693 = vmatmul.bf16.gmra.mxu0 %v3629
      %v3694 = vpop.f32.mrf.mxu0
      %v3695 = vadd.f32 %v3546, %v3694
      %v3696 = vpop.f32.mrf.mxu0
      %v3697 = vadd.f32 %v3548, %v3696
      %3698 = vmatmul.bf16.gmra.mxu0 %v3632
      %v3699 = vpop.f32.mrf.mxu0
      %v3700 = vadd.f32 %v3551, %v3699
      %v3701 = vpop.f32.mrf.mxu0
      %v3702 = vadd.f32 %v3553, %v3701
      %3703 = vmatmul.bf16.gmra.mxu0 %v3635
      %v3704 = vpop.f32.mrf.mxu0
      %v3705 = vadd.f32 %v3556, %v3704
      %v3706 = vpop.f32.mrf.mxu0
      %v3707 = vadd.f32 %v3558, %v3706
      %3708 = vmatmul.bf16.gmra.mxu0 %v3638
      %v3709 = vpop.f32.mrf.mxu0
      %v3710 = vadd.f32 %v3561, %v3709
      %v3711 = vpop.f32.mrf.mxu0
      %v3712 = vadd.f32 %v3563, %v3711
      %3713 = vmatmul.bf16.gmra.mxu0 %v3641
      %v3714 = vpop.f32.mrf.mxu0
      %v3715 = vadd.f32 %v3566, %v3714
      %v3716 = vpop.f32.mrf.mxu0
      %v3717 = vadd.f32 %v3568, %v3716
      %3718 = vmatmul.bf16.gmra.mxu0 %v3644
      %v3719 = vpop.f32.mrf.mxu0
      %v3720 = vadd.f32 %v3571, %v3719
      %v3721 = vpop.f32.mrf.mxu0
      %v3722 = vadd.f32 %v3573, %v3721
      %3723 = vmatmul.bf16.gmra.mxu0 %v3647
      %v3724 = vpop.f32.mrf.mxu0
      %v3725 = vadd.f32 %v3576, %v3724
      %v3726 = vpop.f32.mrf.mxu0
      %v3727 = vadd.f32 %v3578, %v3726
      %3728 = vmatmul.bf16.gmra.mxu0 %v3650
      %v3729 = vpop.f32.mrf.mxu0
      %v3730 = vadd.f32 %v3581, %v3729
      %v3731 = vpop.f32.mrf.mxu0
      %v3732 = vadd.f32 %v3583, %v3731
      %3733 = vmatmul.bf16.gmra.mxu0 %v3653
      %v3734 = vpop.f32.mrf.mxu0
      %v3735 = vadd.f32 %v3586, %v3734
      %v3736 = vpop.f32.mrf.mxu0
      %v3737 = vadd.f32 %v3588, %v3736
      %3738 = vmatmul.bf16.gmra.mxu0 %v3656
      %v3739 = vpop.f32.mrf.mxu0
      %v3740 = vadd.f32 %v3591, %v3739
      %v3741 = vpop.f32.mrf.mxu0
      %v3742 = vadd.f32 %v3593, %v3741
      %3743 = vmatmul.bf16.gmra.mxu0 %v3659
      %v3744 = vpop.f32.mrf.mxu0
      %v3745 = vadd.f32 %v3596, %v3744
      %v3746 = vpop.f32.mrf.mxu0
      %v3747 = vadd.f32 %v3598, %v3746
      %3748 = vmatmul.bf16.gmra.mxu0 %v3662
      %v3749 = vpop.f32.mrf.mxu0
      %v3750 = vadd.f32 %v3601, %v3749
      %v3751 = vpop.f32.mrf.mxu0
      %v3752 = vadd.f32 %v3603, %v3751
      %3753 = vmatmul.bf16.gmra.mxu0 %v3665
      %v3754 = vpop.f32.mrf.mxu0
      %v3755 = vadd.f32 %v3606, %v3754
      %v3756 = vpop.f32.mrf.mxu0
      %v3757 = vadd.f32 %v3608, %v3756
      %3758 = vdwg.mxu0
      %v3759 = vld [vmem:[#allocation2 + $0x2] sm:$0xff]
      %v3760 = vld [vmem:[#allocation2 + $0xa] sm:$0xff]
      %v3761 = vld [vmem:[#allocation2 + $0x1a] sm:$0xff]
      %v3762 = vld [vmem:[#allocation2 + $0x22] sm:$0xff]
      %v3763 = vld [vmem:[#allocation2 + $0x32] sm:$0xff]
      %v3764 = vld [vmem:[#allocation2 + $0x3a] sm:$0xff]
      %v3765 = vld [vmem:[#allocation2 + $0x4a] sm:$0xff]
      %v3766 = vld [vmem:[#allocation2 + $0x52] sm:$0xff]
      %v3767 = vld [vmem:[#allocation2 + $0x62] sm:$0xff]
      %v3768 = vld [vmem:[#allocation2 + $0x6a] sm:$0xff]
      %v3769 = vld [vmem:[#allocation2 + $0x7a] sm:$0xff]
      %v3770 = vld [vmem:[#allocation2 + $0x82] sm:$0xff]
      %v3771 = vld [vmem:[#allocation2 + $0x92] sm:$0xff]
      %v3772 = vld [vmem:[#allocation2 + $0x9a] sm:$0xff]
      %v3773 = vld [vmem:[#allocation2 + $0xaa] sm:$0xff]
      %v3774 = vld [vmem:[#allocation2 + $0xb2] sm:$0xff]
      %v3775 = vld [vmem:[#allocation2 + $0xc2] sm:$0xff]
      %v3776 = vld [vmem:[#allocation2 + $0xca] sm:$0xff]
      %v3777 = vld [vmem:[#allocation2 + $0xda] sm:$0xff]
      %v3778 = vld [vmem:[#allocation2 + $0xe2] sm:$0xff]
      %v3779 = vld [vmem:[#allocation2 + $0xf2] sm:$0xff]
      %v3780 = vld [vmem:[#allocation2 + $0xfa] sm:$0xff]
      %v3781 = vld [vmem:[#allocation2 + $0x10a] sm:$0xff]
      %v3782 = vld [vmem:[#allocation2 + $0x112] sm:$0xff]
      %v3783 = vld [vmem:[#allocation2 + $0x122] sm:$0xff]
      %v3784 = vld [vmem:[#allocation2 + $0x12a] sm:$0xff]
      %v3785 = vld [vmem:[#allocation2 + $0x13a] sm:$0xff]
      %v3786 = vld [vmem:[#allocation2 + $0x142] sm:$0xff]
      %v3787 = vld [vmem:[#allocation2 + $0x152] sm:$0xff]
      %v3788 = vld [vmem:[#allocation2 + $0x15a] sm:$0xff]
      %v3789 = vld [vmem:[#allocation2 + $0x16a] sm:$0xff]
      %v3790 = vld [vmem:[#allocation2 + $0x172] sm:$0xff]
      %v3791 = vld [vmem:[%s258 + $0x2] sm:$0xff]
      %v3792 = vld [vmem:[%s258 + $0xa] sm:$0xff]
      %v3793 = vld [vmem:[%s258 + $0x1a] sm:$0xff]
      %v3794 = vld [vmem:[%s258 + $0x22] sm:$0xff]
      %v3795 = vld [vmem:[%s258 + $0x32] sm:$0xff]
      %v3796 = vld [vmem:[%s258 + $0x3a] sm:$0xff]
      %v3797 = vld [vmem:[%s258 + $0x4a] sm:$0xff]
      %v3798 = vld [vmem:[%s258 + $0x52] sm:$0xff]
      %v3799 = vld [vmem:[%s258 + $0x62] sm:$0xff]
      %v3800 = vld [vmem:[%s258 + $0x6a] sm:$0xff]
      %v3801 = vld [vmem:[%s258 + $0x7a] sm:$0xff]
      %v3802 = vld [vmem:[%s258 + $0x82] sm:$0xff]
      %v3803 = vld [vmem:[%s258 + $0x92] sm:$0xff]
      %v3804 = vld [vmem:[%s258 + $0x9a] sm:$0xff]
      %v3805 = vld [vmem:[%s258 + $0xaa] sm:$0xff]
      %v3806 = vld [vmem:[%s258 + $0xb2] sm:$0xff]
      %v3807 = vld [vmem:[%s258 + $0xc2] sm:$0xff]
      %v3808 = vld [vmem:[%s258 + $0xca] sm:$0xff]
      %v3809 = vld [vmem:[%s258 + $0xda] sm:$0xff]
      %v3810 = vld [vmem:[%s258 + $0xe2] sm:$0xff]
      %v3811 = vld [vmem:[%s258 + $0xf2] sm:$0xff]
      %v3812 = vld [vmem:[%s258 + $0xfa] sm:$0xff]
      %v3813 = vld [vmem:[%s258 + $0x10a] sm:$0xff]
      %v3814 = vld [vmem:[%s258 + $0x112] sm:$0xff]
      %v3815 = vld [vmem:[%s258 + $0x122] sm:$0xff]
      %v3816 = vld [vmem:[%s258 + $0x12a] sm:$0xff]
      %v3817 = vld [vmem:[%s258 + $0x13a] sm:$0xff]
      %v3818 = vld [vmem:[%s258 + $0x142] sm:$0xff]
      %v3819 = vld [vmem:[%s258 + $0x152] sm:$0xff]
      %v3820 = vld [vmem:[%s258 + $0x15a] sm:$0xff]
      %v3821 = vld [vmem:[%s258 + $0x16a] sm:$0xff]
      %v3822 = vld [vmem:[%s258 + $0x172] sm:$0xff]
      %v3823 = vld [vmem:[%s434 + $0x2] sm:$0xff]
      %v3824 = vld [vmem:[%s434 + $0xa] sm:$0xff]
      %v3825 = vld [vmem:[%s434 + $0x1a] sm:$0xff]
      %v3826 = vld [vmem:[%s434 + $0x22] sm:$0xff]
      %v3827 = vld [vmem:[%s434 + $0x32] sm:$0xff]
      %v3828 = vld [vmem:[%s434 + $0x3a] sm:$0xff]
      %v3829 = vld [vmem:[%s434 + $0x4a] sm:$0xff]
      %v3830 = vld [vmem:[%s434 + $0x52] sm:$0xff]
      %v3831 = vld [vmem:[%s434 + $0x62] sm:$0xff]
      %v3832 = vld [vmem:[%s434 + $0x6a] sm:$0xff]
      %v3833 = vld [vmem:[%s434 + $0x7a] sm:$0xff]
      %v3834 = vld [vmem:[%s434 + $0x82] sm:$0xff]
      %v3835 = vld [vmem:[%s434 + $0x92] sm:$0xff]
      %v3836 = vld [vmem:[%s434 + $0x9a] sm:$0xff]
      %v3837 = vld [vmem:[%s434 + $0xaa] sm:$0xff]
      %v3838 = vld [vmem:[%s434 + $0xb2] sm:$0xff]
      %v3839 = vld [vmem:[%s434 + $0xc2] sm:$0xff]
      %v3840 = vld [vmem:[%s434 + $0xca] sm:$0xff]
      %v3841 = vld [vmem:[%s434 + $0xda] sm:$0xff]
      %v3842 = vld [vmem:[%s434 + $0xe2] sm:$0xff]
      %v3843 = vld [vmem:[%s434 + $0xf2] sm:$0xff]
      %v3844 = vld [vmem:[%s434 + $0xfa] sm:$0xff]
      %v3845 = vld [vmem:[%s434 + $0x10a] sm:$0xff]
      %v3846 = vld [vmem:[%s434 + $0x112] sm:$0xff]
      %v3847 = vld [vmem:[%s434 + $0x122] sm:$0xff]
      %v3848 = vld [vmem:[%s434 + $0x12a] sm:$0xff]
      %v3849 = vld [vmem:[%s434 + $0x13a] sm:$0xff]
      %v3850 = vld [vmem:[%s434 + $0x142] sm:$0xff]
      %v3851 = vld [vmem:[%s434 + $0x152] sm:$0xff]
      %v3852 = vld [vmem:[%s434 + $0x15a] sm:$0xff]
      %v3853 = vld [vmem:[%s434 + $0x16a] sm:$0xff]
      %v3854 = vld [vmem:[%s434 + $0x172] sm:$0xff]
      %3887 = vrot.lane.b32.xlu0 %v3791, 8
      %v3888 = vpop.permute.xlu0 %3887
      %3889 = vrot.lane.b32.xlu0 %v3792, 8
      %v3890 = vpop.permute.xlu0 %3889
      %3891 = vrot.lane.b32.xlu0 %v3793, 8
      %v3892 = vpop.permute.xlu0 %3891
      %3893 = vrot.lane.b32.xlu0 %v3794, 8
      %v3894 = vpop.permute.xlu0 %3893
      %3895 = vrot.lane.b32.xlu0 %v3795, 8
      %v3896 = vpop.permute.xlu0 %3895
      %3897 = vrot.lane.b32.xlu0 %v3796, 8
      %v3898 = vpop.permute.xlu0 %3897
      %3899 = vrot.lane.b32.xlu0 %v3797, 8
      %v3900 = vpop.permute.xlu0 %3899
      %3901 = vrot.lane.b32.xlu0 %v3798, 8
      %v3902 = vpop.permute.xlu0 %3901
      %3903 = vrot.lane.b32.xlu0 %v3799, 8
      %v3904 = vpop.permute.xlu0 %3903
      %3905 = vrot.lane.b32.xlu0 %v3800, 8
      %v3906 = vpop.permute.xlu0 %3905
      %3907 = vrot.lane.b32.xlu0 %v3801, 8
      %v3908 = vpop.permute.xlu0 %3907
      %3909 = vrot.lane.b32.xlu0 %v3802, 8
      %v3910 = vpop.permute.xlu0 %3909
      %3911 = vrot.lane.b32.xlu0 %v3803, 8
      %v3912 = vpop.permute.xlu0 %3911
      %3913 = vrot.lane.b32.xlu0 %v3804, 8
      %v3914 = vpop.permute.xlu0 %3913
      %3915 = vrot.lane.b32.xlu0 %v3805, 8
      %v3916 = vpop.permute.xlu0 %3915
      %3917 = vrot.lane.b32.xlu0 %v3806, 8
      %v3918 = vpop.permute.xlu0 %3917
      %3919 = vrot.lane.b32.xlu0 %v3807, 8
      %v3920 = vpop.permute.xlu0 %3919
      %3921 = vrot.lane.b32.xlu0 %v3808, 8
      %v3922 = vpop.permute.xlu0 %3921
      %3923 = vrot.lane.b32.xlu0 %v3809, 8
      %v3924 = vpop.permute.xlu0 %3923
      %3925 = vrot.lane.b32.xlu0 %v3810, 8
      %v3926 = vpop.permute.xlu0 %3925
      %3927 = vrot.lane.b32.xlu0 %v3811, 8
      %v3928 = vpop.permute.xlu0 %3927
      %3929 = vrot.lane.b32.xlu0 %v3812, 8
      %v3930 = vpop.permute.xlu0 %3929
      %3931 = vrot.lane.b32.xlu0 %v3813, 8
      %v3932 = vpop.permute.xlu0 %3931
      %3933 = vrot.lane.b32.xlu0 %v3814, 8
      %v3934 = vpop.permute.xlu0 %3933
      %3935 = vrot.lane.b32.xlu0 %v3815, 8
      %v3936 = vpop.permute.xlu0 %3935
      %3937 = vrot.lane.b32.xlu0 %v3816, 8
      %v3938 = vpop.permute.xlu0 %3937
      %3939 = vrot.lane.b32.xlu0 %v3817, 8
      %v3940 = vpop.permute.xlu0 %3939
      %3941 = vrot.lane.b32.xlu0 %v3818, 8
      %v3942 = vpop.permute.xlu0 %3941
      %3943 = vrot.lane.b32.xlu0 %v3819, 8
      %v3944 = vpop.permute.xlu0 %3943
      %3945 = vrot.lane.b32.xlu0 %v3820, 8
      %v3946 = vpop.permute.xlu0 %3945
      %3947 = vrot.lane.b32.xlu0 %v3821, 8
      %v3948 = vpop.permute.xlu0 %3947
      %3949 = vrot.lane.b32.xlu0 %v3822, 8
      %v3950 = vpop.permute.xlu0 %3949
      %4015 = vrot.lane.b32.xlu0 %v3823, 16
      %v4016 = vpop.permute.xlu0 %4015
      %4017 = vrot.lane.b32.xlu0 %v3824, 16
      %v4018 = vpop.permute.xlu0 %4017
      %4019 = vrot.lane.b32.xlu0 %v3825, 16
      %v4020 = vpop.permute.xlu0 %4019
      %4021 = vrot.lane.b32.xlu0 %v3826, 16
      %v4022 = vpop.permute.xlu0 %4021
      %4023 = vrot.lane.b32.xlu0 %v3827, 16
      %v4024 = vpop.permute.xlu0 %4023
      %4025 = vrot.lane.b32.xlu0 %v3828, 16
      %v4026 = vpop.permute.xlu0 %4025
      %4027 = vrot.lane.b32.xlu0 %v3829, 16
      %v4028 = vpop.permute.xlu0 %4027
      %4029 = vrot.lane.b32.xlu0 %v3830, 16
      %v4030 = vpop.permute.xlu0 %4029
      %4031 = vrot.lane.b32.xlu0 %v3831, 16
      %v4032 = vpop.permute.xlu0 %4031
      %4033 = vrot.lane.b32.xlu0 %v3832, 16
      %v4034 = vpop.permute.xlu0 %4033
      %4035 = vrot.lane.b32.xlu0 %v3833, 16
      %v4036 = vpop.permute.xlu0 %4035
      %4037 = vrot.lane.b32.xlu0 %v3834, 16
      %v4038 = vpop.permute.xlu0 %4037
      %4039 = vrot.lane.b32.xlu0 %v3835, 16
      %v4040 = vpop.permute.xlu0 %4039
      %4041 = vrot.lane.b32.xlu0 %v3836, 16
      %v4042 = vpop.permute.xlu0 %4041
      %4043 = vrot.lane.b32.xlu0 %v3837, 16
      %v4044 = vpop.permute.xlu0 %4043
      %4045 = vrot.lane.b32.xlu0 %v3838, 16
      %v4046 = vpop.permute.xlu0 %4045
      %4047 = vrot.lane.b32.xlu0 %v3839, 16
      %v4048 = vpop.permute.xlu0 %4047
      %4049 = vrot.lane.b32.xlu0 %v3840, 16
      %v4050 = vpop.permute.xlu0 %4049
      %4051 = vrot.lane.b32.xlu0 %v3841, 16
      %v4052 = vpop.permute.xlu0 %4051
      %4053 = vrot.lane.b32.xlu0 %v3842, 16
      %v4054 = vpop.permute.xlu0 %4053
      %4055 = vrot.lane.b32.xlu0 %v3843, 16
      %v4056 = vpop.permute.xlu0 %4055
      %4057 = vrot.lane.b32.xlu0 %v3844, 16
      %v4058 = vpop.permute.xlu0 %4057
      %4059 = vrot.lane.b32.xlu0 %v3845, 16
      %v4060 = vpop.permute.xlu0 %4059
      %4061 = vrot.lane.b32.xlu0 %v3846, 16
      %v4062 = vpop.permute.xlu0 %4061
      %4063 = vrot.lane.b32.xlu0 %v3847, 16
      %v4064 = vpop.permute.xlu0 %4063
      %4065 = vrot.lane.b32.xlu0 %v3848, 16
      %v4066 = vpop.permute.xlu0 %4065
      %4067 = vrot.lane.b32.xlu0 %v3849, 16
      %v4068 = vpop.permute.xlu0 %4067
      %4069 = vrot.lane.b32.xlu0 %v3850, 16
      %v4070 = vpop.permute.xlu0 %4069
      %4071 = vrot.lane.b32.xlu0 %v3851, 16
      %v4072 = vpop.permute.xlu0 %4071
      %4073 = vrot.lane.b32.xlu0 %v3852, 16
      %v4074 = vpop.permute.xlu0 %4073
      %4075 = vrot.lane.b32.xlu0 %v3853, 16
      %v4076 = vpop.permute.xlu0 %4075
      %4077 = vrot.lane.b32.xlu0 %v3854, 16
      %v4078 = vpop.permute.xlu0 %4077
      %v4111 = vsel %vm259, %v3759, %v3888
      %v4112 = vsel %vm259, %v3760, %v3890
      %v4113 = vsel %vm259, %v3761, %v3892
      %v4114 = vsel %vm259, %v3762, %v3894
      %v4115 = vsel %vm259, %v3763, %v3896
      %v4116 = vsel %vm259, %v3764, %v3898
      %v4117 = vsel %vm259, %v3765, %v3900
      %v4118 = vsel %vm259, %v3766, %v3902
      %v4119 = vsel %vm259, %v3767, %v3904
      %v4120 = vsel %vm259, %v3768, %v3906
      %v4121 = vsel %vm259, %v3769, %v3908
      %v4122 = vsel %vm259, %v3770, %v3910
      %v4123 = vsel %vm259, %v3771, %v3912
      %v4124 = vsel %vm259, %v3772, %v3914
      %v4125 = vsel %vm259, %v3773, %v3916
      %v4126 = vsel %vm259, %v3774, %v3918
      %v4127 = vsel %vm259, %v3775, %v3920
      %v4128 = vsel %vm259, %v3776, %v3922
      %v4129 = vsel %vm259, %v3777, %v3924
      %v4130 = vsel %vm259, %v3778, %v3926
      %v4131 = vsel %vm259, %v3779, %v3928
      %v4132 = vsel %vm259, %v3780, %v3930
      %v4133 = vsel %vm259, %v3781, %v3932
      %v4134 = vsel %vm259, %v3782, %v3934
      %v4135 = vsel %vm259, %v3783, %v3936
      %v4136 = vsel %vm259, %v3784, %v3938
      %v4137 = vsel %vm259, %v3785, %v3940
      %v4138 = vsel %vm259, %v3786, %v3942
      %v4139 = vsel %vm259, %v3787, %v3944
      %v4140 = vsel %vm259, %v3788, %v3946
      %v4141 = vsel %vm259, %v3789, %v3948
      %v4142 = vsel %vm259, %v3790, %v3950
      %v4143 = vsel %vm755, %v4111, %v4016
      %v4144 = vsel %vm755, %v4112, %v4018
      %v4145 = vsel %vm755, %v4113, %v4020
      %v4146 = vsel %vm755, %v4114, %v4022
      %v4147 = vsel %vm755, %v4115, %v4024
      %v4148 = vsel %vm755, %v4116, %v4026
      %v4149 = vsel %vm755, %v4117, %v4028
      %v4150 = vsel %vm755, %v4118, %v4030
      %v4151 = vsel %vm755, %v4119, %v4032
      %v4152 = vsel %vm755, %v4120, %v4034
      %v4153 = vsel %vm755, %v4121, %v4036
      %v4154 = vsel %vm755, %v4122, %v4038
      %v4155 = vsel %vm755, %v4123, %v4040
      %v4156 = vsel %vm755, %v4124, %v4042
      %v4157 = vsel %vm755, %v4125, %v4044
      %v4158 = vsel %vm755, %v4126, %v4046
      %v4159 = vsel %vm755, %v4127, %v4048
      %v4160 = vsel %vm755, %v4128, %v4050
      %v4161 = vsel %vm755, %v4129, %v4052
      %v4162 = vsel %vm755, %v4130, %v4054
      %v4163 = vsel %vm755, %v4131, %v4056
      %v4164 = vsel %vm755, %v4132, %v4058
      %v4165 = vsel %vm755, %v4133, %v4060
      %v4166 = vsel %vm755, %v4134, %v4062
      %v4167 = vsel %vm755, %v4135, %v4064
      %v4168 = vsel %vm755, %v4136, %v4066
      %v4169 = vsel %vm755, %v4137, %v4068
      %v4170 = vsel %vm755, %v4138, %v4070
      %v4171 = vsel %vm755, %v4139, %v4072
      %v4172 = vsel %vm755, %v4140, %v4074
      %v4173 = vsel %vm755, %v4141, %v4076
      %v4174 = vsel %vm755, %v4142, %v4078
      %v4175 = vpack.c.bf16 %v4144, %v4143
      %v4176 = vpack.c.bf16 %v4146, %v4145
      %v4177 = vpack.c.bf16 %v4148, %v4147
      %v4178 = vpack.c.bf16 %v4150, %v4149
      %v4179 = vpack.c.bf16 %v4152, %v4151
      %v4180 = vpack.c.bf16 %v4154, %v4153
      %v4181 = vpack.c.bf16 %v4156, %v4155
      %v4182 = vpack.c.bf16 %v4158, %v4157
      %v4183 = vpack.c.bf16 %v4160, %v4159
      %v4184 = vpack.c.bf16 %v4162, %v4161
      %v4185 = vpack.c.bf16 %v4164, %v4163
      %v4186 = vpack.c.bf16 %v4166, %v4165
      %v4187 = vpack.c.bf16 %v4168, %v4167
      %v4188 = vpack.c.bf16 %v4170, %v4169
      %v4189 = vpack.c.bf16 %v4172, %v4171
      %v4190 = vpack.c.bf16 %v4174, %v4173
      %s4191 = scalar_lea.vmem %s3, 24
      %v4192 = vld [vmem:[%s4191] sm:$0xf]
      %v4193 = vld [vmem:[%s4191 + $0x4] sm:$0xf]
      %v4194 = vld [vmem:[%s4191 + $0x8] sm:$0xf]
      %v4198 = vunpack.c.l.b16 %v4192
      %v4199 = vunpack.c.l.b16 %v4193
      %v4200 = vunpack.c.l.b16 %v4194
      %v4201 = vpack.c.b16 %v4199, %v4198
      %v4202 = vpack.c.b16 %v4200, %v4200
      %v4205 = vsel %vm1252, %v4175, 0
      %v4208 = vsel %vm1252, %v4176, 0
      %v4211 = vsel %vm1252, %v4177, 0
      %v4214 = vsel %vm1252, %v4178, 0
      %v4217 = vsel %vm1252, %v4179, 0
      %v4220 = vsel %vm1252, %v4180, 0
      %v4223 = vsel %vm1252, %v4181, 0
      %v4226 = vsel %vm1252, %v4182, 0
      %v4229 = vsel %vm1252, %v4183, 0
      %v4232 = vsel %vm1252, %v4184, 0
      %v4235 = vsel %vm1252, %v4185, 0
      %v4238 = vsel %vm1252, %v4186, 0
      %v4241 = vsel %vm1252, %v4187, 0
      %v4244 = vsel %vm1252, %v4188, 0
      %v4247 = vsel %vm1252, %v4189, 0
      %v4250 = vsel %vm1252, %v4190, 0
      %v4253 = vsel %vm1301, %v4202, 0
      %4255 = vmatpush.bf16.msra.mxu0 0
      %4256 = vmatpush.bf16.msra.mxu0 0
      %4257 = vmatpush.bf16.msra.mxu0 0
      %4258 = vmatpush.bf16.msra.mxu0 0
      %4259 = vmatpush.bf16.msra.mxu0 0
      %4260 = vmatpush.bf16.msra.mxu0 0
      %4261 = vmatpush.bf16.msra.mxu0 %v4253
      %4262 = vmatpush.bf16.msra.mxu0 %v4201
      %4263 = vmatmul.bf16.gmra.mxu0 %v4205
      %v4264 = vpop.f32.mrf.mxu0
      %v4265 = vadd.f32 0.0, %v4264
      %v4266 = vpop.f32.mrf.mxu0
      %v4267 = vadd.f32 0.0, %v4266
      %4268 = vmatmul.bf16.gmra.mxu0 %v4208
      %v4269 = vpop.f32.mrf.mxu0
      %v4270 = vadd.f32 0.0, %v4269
      %v4271 = vpop.f32.mrf.mxu0
      %v4272 = vadd.f32 0.0, %v4271
      %4273 = vmatmul.bf16.gmra.mxu0 %v4211
      %v4274 = vpop.f32.mrf.mxu0
      %v4275 = vadd.f32 0.0, %v4274
      %v4276 = vpop.f32.mrf.mxu0
      %v4277 = vadd.f32 0.0, %v4276
      %4278 = vmatmul.bf16.gmra.mxu0 %v4214
      %v4279 = vpop.f32.mrf.mxu0
      %v4280 = vadd.f32 0.0, %v4279
      %v4281 = vpop.f32.mrf.mxu0
      %v4282 = vadd.f32 0.0, %v4281
      %4283 = vmatmul.bf16.gmra.mxu0 %v4217
      %v4284 = vpop.f32.mrf.mxu0
      %v4285 = vadd.f32 0.0, %v4284
      %v4286 = vpop.f32.mrf.mxu0
      %v4287 = vadd.f32 0.0, %v4286
      %4288 = vmatmul.bf16.gmra.mxu0 %v4220
      %v4289 = vpop.f32.mrf.mxu0
      %v4290 = vadd.f32 0.0, %v4289
      %v4291 = vpop.f32.mrf.mxu0
      %v4292 = vadd.f32 0.0, %v4291
      %4293 = vmatmul.bf16.gmra.mxu0 %v4223
      %v4294 = vpop.f32.mrf.mxu0
      %v4295 = vadd.f32 0.0, %v4294
      %v4296 = vpop.f32.mrf.mxu0
      %v4297 = vadd.f32 0.0, %v4296
      %4298 = vmatmul.bf16.gmra.mxu0 %v4226
      %v4299 = vpop.f32.mrf.mxu0
      %v4300 = vadd.f32 0.0, %v4299
      %v4301 = vpop.f32.mrf.mxu0
      %v4302 = vadd.f32 0.0, %v4301
      %4303 = vmatmul.bf16.gmra.mxu0 %v4229
      %v4304 = vpop.f32.mrf.mxu0
      %v4305 = vadd.f32 0.0, %v4304
      %v4306 = vpop.f32.mrf.mxu0
      %v4307 = vadd.f32 0.0, %v4306
      %4308 = vmatmul.bf16.gmra.mxu0 %v4232
      %v4309 = vpop.f32.mrf.mxu0
      %v4310 = vadd.f32 0.0, %v4309
      %v4311 = vpop.f32.mrf.mxu0
      %v4312 = vadd.f32 0.0, %v4311
      %4313 = vmatmul.bf16.gmra.mxu0 %v4235
      %v4314 = vpop.f32.mrf.mxu0
      %v4315 = vadd.f32 0.0, %v4314
      %v4316 = vpop.f32.mrf.mxu0
      %v4317 = vadd.f32 0.0, %v4316
      %4318 = vmatmul.bf16.gmra.mxu0 %v4238
      %v4319 = vpop.f32.mrf.mxu0
      %v4320 = vadd.f32 0.0, %v4319
      %v4321 = vpop.f32.mrf.mxu0
      %v4322 = vadd.f32 0.0, %v4321
      %4323 = vmatmul.bf16.gmra.mxu0 %v4241
      %v4324 = vpop.f32.mrf.mxu0
      %v4325 = vadd.f32 0.0, %v4324
      %v4326 = vpop.f32.mrf.mxu0
      %v4327 = vadd.f32 0.0, %v4326
      %4328 = vmatmul.bf16.gmra.mxu0 %v4244
      %v4329 = vpop.f32.mrf.mxu0
      %v4330 = vadd.f32 0.0, %v4329
      %v4331 = vpop.f32.mrf.mxu0
      %v4332 = vadd.f32 0.0, %v4331
      %4333 = vmatmul.bf16.gmra.mxu0 %v4247
      %v4334 = vpop.f32.mrf.mxu0
      %v4335 = vadd.f32 0.0, %v4334
      %v4336 = vpop.f32.mrf.mxu0
      %v4337 = vadd.f32 0.0, %v4336
      %4338 = vmatmul.bf16.gmra.mxu0 %v4250
      %v4339 = vpop.f32.mrf.mxu0
      %v4340 = vadd.f32 0.0, %v4339
      %v4341 = vpop.f32.mrf.mxu0
      %v4342 = vadd.f32 0.0, %v4341
      %4343 = vdwg.mxu0
      %v4344 = vadd.f32 %v3680, %v4265
      %v4345 = vadd.f32 %v3682, %v4267
      %v4346 = vadd.f32 %v3685, %v4270
      %v4347 = vadd.f32 %v3687, %v4272
      %v4348 = vadd.f32 %v3690, %v4275
      %v4349 = vadd.f32 %v3692, %v4277
      %v4350 = vadd.f32 %v3695, %v4280
      %v4351 = vadd.f32 %v3697, %v4282
      %v4352 = vadd.f32 %v3700, %v4285
      %v4353 = vadd.f32 %v3702, %v4287
      %v4354 = vadd.f32 %v3705, %v4290
      %v4355 = vadd.f32 %v3707, %v4292
      %v4356 = vadd.f32 %v3710, %v4295
      %v4357 = vadd.f32 %v3712, %v4297
      %v4358 = vadd.f32 %v3715, %v4300
      %v4359 = vadd.f32 %v3717, %v4302
      %v4360 = vadd.f32 %v3720, %v4305
      %v4361 = vadd.f32 %v3722, %v4307
      %v4362 = vadd.f32 %v3725, %v4310
      %v4363 = vadd.f32 %v3727, %v4312
      %v4364 = vadd.f32 %v3730, %v4315
      %v4365 = vadd.f32 %v3732, %v4317
      %v4366 = vadd.f32 %v3735, %v4320
      %v4367 = vadd.f32 %v3737, %v4322
      %v4368 = vadd.f32 %v3740, %v4325
      %v4369 = vadd.f32 %v3742, %v4327
      %v4370 = vadd.f32 %v3745, %v4330
      %v4371 = vadd.f32 %v3747, %v4332
      %v4372 = vadd.f32 %v3750, %v4335
      %v4373 = vadd.f32 %v3752, %v4337
      %v4374 = vadd.f32 %v3755, %v4340
      %v4375 = vadd.f32 %v3757, %v4342
      %v4376 = vld [vmem:[%s4] sm:$0x1]
      %v4378 = vperm.slane %v4376, 0
      %v4380 = vadd.f32 %v4344, %v4378
      %v4381 = vadd.f32 %v4345, %v4378
      %v4382 = vadd.f32 %v4346, %v4378
      %v4383 = vadd.f32 %v4347, %v4378
      %v4384 = vadd.f32 %v4348, %v4378
      %v4385 = vadd.f32 %v4349, %v4378
      %v4386 = vadd.f32 %v4350, %v4378
      %v4387 = vadd.f32 %v4351, %v4378
      %v4388 = vadd.f32 %v4352, %v4378
      %v4389 = vadd.f32 %v4353, %v4378
      %v4390 = vadd.f32 %v4354, %v4378
      %v4391 = vadd.f32 %v4355, %v4378
      %v4392 = vadd.f32 %v4356, %v4378
      %v4393 = vadd.f32 %v4357, %v4378
      %v4394 = vadd.f32 %v4358, %v4378
      %v4395 = vadd.f32 %v4359, %v4378
      %v4396 = vadd.f32 %v4360, %v4378
      %v4397 = vadd.f32 %v4361, %v4378
      %v4398 = vadd.f32 %v4362, %v4378
      %v4399 = vadd.f32 %v4363, %v4378
      %v4400 = vadd.f32 %v4364, %v4378
      %v4401 = vadd.f32 %v4365, %v4378
      %v4402 = vadd.f32 %v4366, %v4378
      %v4403 = vadd.f32 %v4367, %v4378
      %v4404 = vadd.f32 %v4368, %v4378
      %v4405 = vadd.f32 %v4369, %v4378
      %v4406 = vadd.f32 %v4370, %v4378
      %v4407 = vadd.f32 %v4371, %v4378
      %v4408 = vadd.f32 %v4372, %v4378
      %v4409 = vadd.f32 %v4373, %v4378
      %v4410 = vadd.f32 %v4374, %v4378
      %v4411 = vadd.f32 %v4375, %v4378
      %v4412 = vsel %vm259, %v4380, 0.0
      %v4413 = vsel %vm259, %v4381, 0.0
      %v4414 = vadd.f32 %v4412, %v4413
      %v4415 = vsel %vm259, %v4382, 0.0
      %v4416 = vadd.f32 %v4414, %v4415
      %v4417 = vsel %vm259, %v4383, 0.0
      %v4418 = vadd.f32 %v4416, %v4417
      %v4419 = vsel %vm259, %v4384, 0.0
      %v4420 = vadd.f32 %v4418, %v4419
      %v4421 = vsel %vm259, %v4385, 0.0
      %v4422 = vadd.f32 %v4420, %v4421
      %v4423 = vsel %vm259, %v4386, 0.0
      %v4424 = vadd.f32 %v4422, %v4423
      %v4425 = vsel %vm259, %v4387, 0.0
      %v4426 = vadd.f32 %v4424, %v4425
      %v4427 = vsel %vm259, %v4388, 0.0
      %v4428 = vadd.f32 %v4426, %v4427
      %v4429 = vsel %vm259, %v4389, 0.0
      %v4430 = vadd.f32 %v4428, %v4429
      %v4431 = vsel %vm259, %v4390, 0.0
      %v4432 = vadd.f32 %v4430, %v4431
      %v4433 = vsel %vm259, %v4391, 0.0
      %v4434 = vadd.f32 %v4432, %v4433
      %v4435 = vsel %vm259, %v4392, 0.0
      %v4436 = vadd.f32 %v4434, %v4435
      %v4437 = vsel %vm259, %v4393, 0.0
      %v4438 = vadd.f32 %v4436, %v4437
      %v4439 = vsel %vm259, %v4394, 0.0
      %v4440 = vadd.f32 %v4438, %v4439
      %v4441 = vsel %vm259, %v4395, 0.0
      %v4442 = vadd.f32 %v4440, %v4441
      %v4443 = vsel %vm259, %v4396, 0.0
      %v4444 = vadd.f32 %v4442, %v4443
      %v4445 = vsel %vm259, %v4397, 0.0
      %v4446 = vadd.f32 %v4444, %v4445
      %v4447 = vsel %vm259, %v4398, 0.0
      %v4448 = vadd.f32 %v4446, %v4447
      %v4449 = vsel %vm259, %v4399, 0.0
      %v4450 = vadd.f32 %v4448, %v4449
      %v4451 = vsel %vm259, %v4400, 0.0
      %v4452 = vadd.f32 %v4450, %v4451
      %v4453 = vsel %vm259, %v4401, 0.0
      %v4454 = vadd.f32 %v4452, %v4453
      %v4455 = vsel %vm259, %v4402, 0.0
      %v4456 = vadd.f32 %v4454, %v4455
      %v4457 = vsel %vm259, %v4403, 0.0
      %v4458 = vadd.f32 %v4456, %v4457
      %v4459 = vsel %vm259, %v4404, 0.0
      %v4460 = vadd.f32 %v4458, %v4459
      %v4461 = vsel %vm259, %v4405, 0.0
      %v4462 = vadd.f32 %v4460, %v4461
      %v4463 = vsel %vm259, %v4406, 0.0
      %v4464 = vadd.f32 %v4462, %v4463
      %v4465 = vsel %vm259, %v4407, 0.0
      %v4466 = vadd.f32 %v4464, %v4465
      %v4467 = vsel %vm259, %v4408, 0.0
      %v4468 = vadd.f32 %v4466, %v4467
      %v4469 = vsel %vm259, %v4409, 0.0
      %v4470 = vadd.f32 %v4468, %v4469
      %v4471 = vsel %vm259, %v4410, 0.0
      %v4472 = vadd.f32 %v4470, %v4471
      %v4473 = vsel %vm259, %v4411, 0.0
      %v4474 = vadd.f32 %v4472, %v4473
      %v4475 = vrot.slane %v4474, 4
      %v4476 = vadd.f32 %v4474, %v4475
      %v4477 = vrot.slane %v4476, 2
      %v4478 = vadd.f32 %v4476, %v4477
      %v4479 = vrot.slane %v4478, 1
      %v4480 = vadd.f32 %v4478, %v4479
      %v4481 = vmul.f32 %v4480, %v2271
      %v4482 = vsub.f32 %v4380, %v4481
      %v4483 = vsub.f32 %v4381, %v4481
      %v4484 = vsub.f32 %v4382, %v4481
      %v4485 = vsub.f32 %v4383, %v4481
      %v4486 = vsub.f32 %v4384, %v4481
      %v4487 = vsub.f32 %v4385, %v4481
      %v4488 = vsub.f32 %v4386, %v4481
      %v4489 = vsub.f32 %v4387, %v4481
      %v4490 = vsub.f32 %v4388, %v4481
      %v4491 = vsub.f32 %v4389, %v4481
      %v4492 = vsub.f32 %v4390, %v4481
      %v4493 = vsub.f32 %v4391, %v4481
      %v4494 = vsub.f32 %v4392, %v4481
      %v4495 = vsub.f32 %v4393, %v4481
      %v4496 = vsub.f32 %v4394, %v4481
      %v4497 = vsub.f32 %v4395, %v4481
      %v4498 = vsub.f32 %v4396, %v4481
      %v4499 = vsub.f32 %v4397, %v4481
      %v4500 = vsub.f32 %v4398, %v4481
      %v4501 = vsub.f32 %v4399, %v4481
      %v4502 = vsub.f32 %v4400, %v4481
      %v4503 = vsub.f32 %v4401, %v4481
      %v4504 = vsub.f32 %v4402, %v4481
      %v4505 = vsub.f32 %v4403, %v4481
      %v4506 = vsub.f32 %v4404, %v4481
      %v4507 = vsub.f32 %v4405, %v4481
      %v4508 = vsub.f32 %v4406, %v4481
      %v4509 = vsub.f32 %v4407, %v4481
      %v4510 = vsub.f32 %v4408, %v4481
      %v4511 = vsub.f32 %v4409, %v4481
      %v4512 = vsub.f32 %v4410, %v4481
      %v4513 = vsub.f32 %v4411, %v4481
      %v4514 = vmul.f32 %v4482, %v4482
      %v4515 = vmul.f32 %v4483, %v4483
      %v4516 = vmul.f32 %v4484, %v4484
      %v4517 = vmul.f32 %v4485, %v4485
      %v4518 = vmul.f32 %v4486, %v4486
      %v4519 = vmul.f32 %v4487, %v4487
      %v4520 = vmul.f32 %v4488, %v4488
      %v4521 = vmul.f32 %v4489, %v4489
      %v4522 = vmul.f32 %v4490, %v4490
      %v4523 = vmul.f32 %v4491, %v4491
      %v4524 = vmul.f32 %v4492, %v4492
      %v4525 = vmul.f32 %v4493, %v4493
      %v4526 = vmul.f32 %v4494, %v4494
      %v4527 = vmul.f32 %v4495, %v4495
      %v4528 = vmul.f32 %v4496, %v4496
      %v4529 = vmul.f32 %v4497, %v4497
      %v4530 = vmul.f32 %v4498, %v4498
      %v4531 = vmul.f32 %v4499, %v4499
      %v4532 = vmul.f32 %v4500, %v4500
      %v4533 = vmul.f32 %v4501, %v4501
      %v4534 = vmul.f32 %v4502, %v4502
      %v4535 = vmul.f32 %v4503, %v4503
      %v4536 = vmul.f32 %v4504, %v4504
      %v4537 = vmul.f32 %v4505, %v4505
      %v4538 = vmul.f32 %v4506, %v4506
      %v4539 = vmul.f32 %v4507, %v4507
      %v4540 = vmul.f32 %v4508, %v4508
      %v4541 = vmul.f32 %v4509, %v4509
      %v4542 = vmul.f32 %v4510, %v4510
      %v4543 = vmul.f32 %v4511, %v4511
      %v4544 = vmul.f32 %v4512, %v4512
      %v4545 = vmul.f32 %v4513, %v4513
      %v4546 = vsel %vm259, %v4514, 0.0
      %v4547 = vsel %vm259, %v4515, 0.0
      %v4548 = vadd.f32 %v4546, %v4547
      %v4549 = vsel %vm259, %v4516, 0.0
      %v4550 = vadd.f32 %v4548, %v4549
      %v4551 = vsel %vm259, %v4517, 0.0
      %v4552 = vadd.f32 %v4550, %v4551
      %v4553 = vsel %vm259, %v4518, 0.0
      %v4554 = vadd.f32 %v4552, %v4553
      %v4555 = vsel %vm259, %v4519, 0.0
      %v4556 = vadd.f32 %v4554, %v4555
      %v4557 = vsel %vm259, %v4520, 0.0
      %v4558 = vadd.f32 %v4556, %v4557
      %v4559 = vsel %vm259, %v4521, 0.0
      %v4560 = vadd.f32 %v4558, %v4559
      %v4561 = vsel %vm259, %v4522, 0.0
      %v4562 = vadd.f32 %v4560, %v4561
      %v4563 = vsel %vm259, %v4523, 0.0
      %v4564 = vadd.f32 %v4562, %v4563
      %v4565 = vsel %vm259, %v4524, 0.0
      %v4566 = vadd.f32 %v4564, %v4565
      %v4567 = vsel %vm259, %v4525, 0.0
      %v4568 = vadd.f32 %v4566, %v4567
      %v4569 = vsel %vm259, %v4526, 0.0
      %v4570 = vadd.f32 %v4568, %v4569
      %v4571 = vsel %vm259, %v4527, 0.0
      %v4572 = vadd.f32 %v4570, %v4571
      %v4573 = vsel %vm259, %v4528, 0.0
      %v4574 = vadd.f32 %v4572, %v4573
      %v4575 = vsel %vm259, %v4529, 0.0
      %v4576 = vadd.f32 %v4574, %v4575
      %v4577 = vsel %vm259, %v4530, 0.0
      %v4578 = vadd.f32 %v4576, %v4577
      %v4579 = vsel %vm259, %v4531, 0.0
      %v4580 = vadd.f32 %v4578, %v4579
      %v4581 = vsel %vm259, %v4532, 0.0
      %v4582 = vadd.f32 %v4580, %v4581
      %v4583 = vsel %vm259, %v4533, 0.0
      %v4584 = vadd.f32 %v4582, %v4583
      %v4585 = vsel %vm259, %v4534, 0.0
      %v4586 = vadd.f32 %v4584, %v4585
      %v4587 = vsel %vm259, %v4535, 0.0
      %v4588 = vadd.f32 %v4586, %v4587
      %v4589 = vsel %vm259, %v4536, 0.0
      %v4590 = vadd.f32 %v4588, %v4589
      %v4591 = vsel %vm259, %v4537, 0.0
      %v4592 = vadd.f32 %v4590, %v4591
      %v4593 = vsel %vm259, %v4538, 0.0
      %v4594 = vadd.f32 %v4592, %v4593
      %v4595 = vsel %vm259, %v4539, 0.0
      %v4596 = vadd.f32 %v4594, %v4595
      %v4597 = vsel %vm259, %v4540, 0.0
      %v4598 = vadd.f32 %v4596, %v4597
      %v4599 = vsel %vm259, %v4541, 0.0
      %v4600 = vadd.f32 %v4598, %v4599
      %v4601 = vsel %vm259, %v4542, 0.0
      %v4602 = vadd.f32 %v4600, %v4601
      %v4603 = vsel %vm259, %v4543, 0.0
      %v4604 = vadd.f32 %v4602, %v4603
      %v4605 = vsel %vm259, %v4544, 0.0
      %v4606 = vadd.f32 %v4604, %v4605
      %v4607 = vsel %vm259, %v4545, 0.0
      %v4608 = vadd.f32 %v4606, %v4607
      %v4609 = vrot.slane %v4608, 4
      %v4610 = vadd.f32 %v4608, %v4609
      %v4611 = vrot.slane %v4610, 2
      %v4612 = vadd.f32 %v4610, %v4611
      %v4613 = vrot.slane %v4612, 1
      %v4614 = vadd.f32 %v4612, %v4613
      %v4615 = vmul.f32 %v4614, %v2271
      %v4616 = vadd.f32 %v4615, 1e-05
      %v4617 = vrsqrt.pop %v4616
      %v4618 = vmul.f32 %v4617, %v4616
      %v4619 = vmul.f32 %v4618, %v4617
      %v4620 = vmul.f32 0.5, %v4619
      %v4621 = vsub.f32 1.5, %v4620
      %v4622 = vmul.f32 %v4617, %v4621
      %vm4623 = vweird.f32 %v4616
      %vm4624 = vweird.f32 %v4617
      %vm4625 = vmor %vm4623, %vm4624
      %v4626 = vsel %vm4625, %v4617, %v4622
      %v4627 = vmul.f32 %v4482, %v4626
      %v4628 = vmul.f32 %v4483, %v4626
      %v4629 = vmul.f32 %v4484, %v4626
      %v4630 = vmul.f32 %v4485, %v4626
      %v4631 = vmul.f32 %v4486, %v4626
      %v4632 = vmul.f32 %v4487, %v4626
      %v4633 = vmul.f32 %v4488, %v4626
      %v4634 = vmul.f32 %v4489, %v4626
      %v4635 = vmul.f32 %v4490, %v4626
      %v4636 = vmul.f32 %v4491, %v4626
      %v4637 = vmul.f32 %v4492, %v4626
      %v4638 = vmul.f32 %v4493, %v4626
      %v4639 = vmul.f32 %v4494, %v4626
      %v4640 = vmul.f32 %v4495, %v4626
      %v4641 = vmul.f32 %v4496, %v4626
      %v4642 = vmul.f32 %v4497, %v4626
      %v4643 = vmul.f32 %v4498, %v4626
      %v4644 = vmul.f32 %v4499, %v4626
      %v4645 = vmul.f32 %v4500, %v4626
      %v4646 = vmul.f32 %v4501, %v4626
      %v4647 = vmul.f32 %v4502, %v4626
      %v4648 = vmul.f32 %v4503, %v4626
      %v4649 = vmul.f32 %v4504, %v4626
      %v4650 = vmul.f32 %v4505, %v4626
      %v4651 = vmul.f32 %v4506, %v4626
      %v4652 = vmul.f32 %v4507, %v4626
      %v4653 = vmul.f32 %v4508, %v4626
      %v4654 = vmul.f32 %v4509, %v4626
      %v4655 = vmul.f32 %v4510, %v4626
      %v4656 = vmul.f32 %v4511, %v4626
      %v4657 = vmul.f32 %v4512, %v4626
      %v4658 = vmul.f32 %v4513, %v4626
      %v4659 = vadd.f32 %v226, %v4627
      %v4660 = vadd.f32 %v227, %v4628
      %v4661 = vadd.f32 %v228, %v4629
      %v4662 = vadd.f32 %v229, %v4630
      %v4663 = vadd.f32 %v230, %v4631
      %v4664 = vadd.f32 %v231, %v4632
      %v4665 = vadd.f32 %v232, %v4633
      %v4666 = vadd.f32 %v233, %v4634
      %v4667 = vadd.f32 %v234, %v4635
      %v4668 = vadd.f32 %v235, %v4636
      %v4669 = vadd.f32 %v236, %v4637
      %v4670 = vadd.f32 %v237, %v4638
      %v4671 = vadd.f32 %v238, %v4639
      %v4672 = vadd.f32 %v239, %v4640
      %v4673 = vadd.f32 %v240, %v4641
      %v4674 = vadd.f32 %v241, %v4642
      %v4675 = vadd.f32 %v242, %v4643
      %v4676 = vadd.f32 %v243, %v4644
      %v4677 = vadd.f32 %v244, %v4645
      %v4678 = vadd.f32 %v245, %v4646
      %v4679 = vadd.f32 %v246, %v4647
      %v4680 = vadd.f32 %v247, %v4648
      %v4681 = vadd.f32 %v248, %v4649
      %v4682 = vadd.f32 %v249, %v4650
      %v4683 = vadd.f32 %v250, %v4651
      %v4684 = vadd.f32 %v251, %v4652
      %v4685 = vadd.f32 %v252, %v4653
      %v4686 = vadd.f32 %v253, %v4654
      %v4687 = vadd.f32 %v254, %v4655
      %v4688 = vadd.f32 %v255, %v4656
      %v4689 = vadd.f32 %v256, %v4657
      %v4690 = vadd.f32 %v257, %v4658
      %4691 = vst.msk [vmem:[%s224] sm:$0xff] %vm259, %v4659
      %4692 = vst.msk [vmem:[%s224 + $0x8] sm:$0xff] %vm259, %v4660
      %4693 = vst.msk [vmem:[%s224 + $0x10] sm:$0xff] %vm259, %v4661
      %4694 = vst.msk [vmem:[%s224 + $0x18] sm:$0xff] %vm259, %v4662
      %4695 = vst.msk [vmem:[%s224 + $0x20] sm:$0xff] %vm259, %v4663
      %4696 = vst.msk [vmem:[%s224 + $0x28] sm:$0xff] %vm259, %v4664
      %4697 = vst.msk [vmem:[%s224 + $0x30] sm:$0xff] %vm259, %v4665
      %4698 = vst.msk [vmem:[%s224 + $0x38] sm:$0xff] %vm259, %v4666
      %4699 = vst.msk [vmem:[%s224 + $0x40] sm:$0xff] %vm259, %v4667
      %4700 = vst.msk [vmem:[%s224 + $0x48] sm:$0xff] %vm259, %v4668
      %4701 = vst.msk [vmem:[%s224 + $0x50] sm:$0xff] %vm259, %v4669
      %4702 = vst.msk [vmem:[%s224 + $0x58] sm:$0xff] %vm259, %v4670
      %4703 = vst.msk [vmem:[%s224 + $0x60] sm:$0xff] %vm259, %v4671
      %4704 = vst.msk [vmem:[%s224 + $0x68] sm:$0xff] %vm259, %v4672
      %4705 = vst.msk [vmem:[%s224 + $0x70] sm:$0xff] %vm259, %v4673
      %4706 = vst.msk [vmem:[%s224 + $0x78] sm:$0xff] %vm259, %v4674
      %4707 = vst.msk [vmem:[%s224 + $0x80] sm:$0xff] %vm259, %v4675
      %4708 = vst.msk [vmem:[%s224 + $0x88] sm:$0xff] %vm259, %v4676
      %4709 = vst.msk [vmem:[%s224 + $0x90] sm:$0xff] %vm259, %v4677
      %4710 = vst.msk [vmem:[%s224 + $0x98] sm:$0xff] %vm259, %v4678
      %4711 = vst.msk [vmem:[%s224 + $0xa0] sm:$0xff] %vm259, %v4679
      %4712 = vst.msk [vmem:[%s224 + $0xa8] sm:$0xff] %vm259, %v4680
      %4713 = vst.msk [vmem:[%s224 + $0xb0] sm:$0xff] %vm259, %v4681
      %4714 = vst.msk [vmem:[%s224 + $0xb8] sm:$0xff] %vm259, %v4682
      %4715 = vst.msk [vmem:[%s224 + $0xc0] sm:$0xff] %vm259, %v4683
      %4716 = vst.msk [vmem:[%s224 + $0xc8] sm:$0xff] %vm259, %v4684
      %4717 = vst.msk [vmem:[%s224 + $0xd0] sm:$0xff] %vm259, %v4685
      %4718 = vst.msk [vmem:[%s224 + $0xd8] sm:$0xff] %vm259, %v4686
      %4719 = vst.msk [vmem:[%s224 + $0xe0] sm:$0xff] %vm259, %v4687
      %4720 = vst.msk [vmem:[%s224 + $0xe8] sm:$0xff] %vm259, %v4688
      %4721 = vst.msk [vmem:[%s224 + $0xf0] sm:$0xff] %vm259, %v4689
      %4722 = vst.msk [vmem:[%s224 + $0xf8] sm:$0xff] %vm259, %v4690
      %p4723 = scmp.lt.s32.totalorder %s16, 1
      %s4724 = scalar_select %p4723, %s16, 1
      %s4725 = smul.addr %s4724, 32
      %s4726 = smul.addr %s4725, 8
      %s4727 = scalar_lea.vmem %s5, %s4726
      // Predicated region
      $region41: #{resnet_block_nhwc.1} parent=39 // pred_check
        %p4728 = pneg %p144
      $region42: #{resnet_block_nhwc.1} parent=39 // pred_check_branch
        %4730 = sbr.rel (%p4728) target = $region44
      $region43: #{resnet_block_nhwc.1} parent=39 // pred_region
        _
      $region44: #{resnet_block_nhwc.1} parent=39 // pred_fallthru
        _
    $region40: #{resnet_block_nhwc.1} parent=5 // pred_fallthru
      _
    %p4731 = scmp.le.s32.totalorder 2, %s11
    // Predicated region
    $region45: #{resnet_block_nhwc.1} parent=5 // pred_check
      %p4732 = pneg %p4731
    $region46: #{resnet_block_nhwc.1} parent=5 // pred_check_branch
      %4734 = sbr.rel (%p4732) target = $region48
    $region47: #{resnet_block_nhwc.1} parent=5 // pred_region
      %s4735 = ssub.s32 %s11, 2
      // Predicated region
      $region49: #{resnet_block_nhwc.1} parent=47 // pred_check
        %p4736 = pneg %p150
      $region50: #{resnet_block_nhwc.1} parent=47 // pred_check_branch
        %4738 = sbr.rel (%p4736) target = $region52
      $region51: #{resnet_block_nhwc.1} parent=47 // pred_region
        %p4739 = scmp.lt.s32.totalorder %s17, 1
        %s4740 = scalar_select %p4739, %s17, 1
        %s4741 = smul.addr %s4740, 32
        %s4742 = smul.addr %s4741, 8
        %s4743 = scalar_lea.vmem %s5, %s4742
      $region52: #{resnet_block_nhwc.1} parent=47 // pred_fallthru
        _
    $region48: #{resnet_block_nhwc.1} parent=5 // pred_fallthru
      _
  $region6: #{resnet_block_nhwc.1} parent=0 // loop_footer
    %s15 = sadd.s32 1, %s11
  $region7: #{resnet_block_nhwc.1} parent=0 // loop_footer_branch
    %10 = sbr.rel target = $region3
  $region8: #{resnet_block_nhwc.1} parent=0 // loop_exit
    _

</llo_original>
